<compile_context>
chip_gen: v7x
topology: tpu7x:2x2x1
jax: 0.10.0
libtpu: 0.0.40
codegen_flags: <defaults>
</compile_context>

<pallas_src>
import functools

import jax
import jax.numpy as jnp
from jax.experimental import pallas as pl
from jax.experimental.pallas import tpu as pltpu


def _round_up(x, m):
    return ((x + m - 1) // m) * m


_VMEM_LIMIT = 32 * 1024 * 1024  # safe on v5e/v6e (128 MiB) and v7x (64 MiB)


# ----------------------------- Pallas kernels ------------------------------

def _gemm_bias_act_single_kernel(x_ref, w_ref, b_ref, o_ref, *, relu):
    """Single-K / single-N tile: out = act(x @ w + b), written directly
    (no accumulator scratch, no pl.when)."""
    out = jnp.dot(x_ref[...], w_ref[...], preferred_element_type=jnp.float32)
    out = out + b_ref[...]
    if relu:
        out = jnp.maximum(out, 0.0)
    o_ref[...] = out.astype(o_ref.dtype)


def _gemm_bias_act_kernel(x_ref, w_ref, b_ref, o_ref, acc_ref, *, relu):
    """General path: one (tm, tn) output tile; K is the last ("arbitrary")
    grid axis with an f32 VMEM accumulator."""
    k = pl.program_id(2)

    @pl.when(k == 0)
    def _():
        acc_ref[...] = jnp.zeros_like(acc_ref)

    acc_ref[...] += jnp.dot(x_ref[...], w_ref[...],
                            preferred_element_type=jnp.float32)

    @pl.when(k == pl.num_programs(2) - 1)
    def _():
        out = acc_ref[...] + b_ref[...]
        if relu:
            out = jnp.maximum(out, 0.0)
        o_ref[...] = out.astype(o_ref.dtype)


def _noisy_head_kernel(x_ref, w1_ref, b1_ref, w2_ref, b2_ref, o_ref, *,
                       n_actions, atoms_pad):
    """Fused noisy1 + ReLU + noisy2 + per-action softmax.

    The action dimension is folded into the matmul N dim:
      w2: (512, n_actions*atoms_pad), each action's atoms occupy one
      lane-aligned 128-wide slab.  Padded atom lanes carry bias = -1e30
      (and zero weight columns) so they vanish from the softmax for free.
    """
    h = jnp.dot(x_ref[...], w1_ref[...], preferred_element_type=jnp.float32)
    h = jnp.maximum(h + b1_ref[...], 0.0)

    logits = jnp.dot(h.astype(jnp.bfloat16), w2_ref[...],
                     preferred_element_type=jnp.float32)
    logits = logits + b2_ref[...]

    for a in range(n_actions):                      # static unroll (n_actions small)
        lo = a * atoms_pad
        hi = lo + atoms_pad
        sl = logits[:, lo:hi]                       # lane-aligned 128-wide slab
        m = jnp.max(sl, axis=-1, keepdims=True)
        e = jnp.exp(sl - m)                         # padded lanes -> exp(-1e30-m) = 0
        s = jnp.sum(e, axis=-1, keepdims=True)
        o_ref[:, lo:hi] = (e / s).astype(o_ref.dtype)


# ----------------------------- Pallas wrappers ------------------------------

def _pad2(a, rows, cols):
    pr, pc = rows - a.shape[0], cols - a.shape[1]
    if pr == 0 and pc == 0:
        return a
    return jnp.pad(a, ((0, pr), (0, pc)))


def pallas_matmul_bias_relu(x, w, b, *, relu, out_dtype=jnp.bfloat16,
                            tm_max=1024, tn_max=256, tk_max=1024):
    """out = act(x @ w + b).  x:(M,K), w:(K,N), b:(N,).  bf16 MXU, f32 acc."""
    M, K = x.shape
    Kw, N = w.shape
    assert K == Kw, (K, Kw)
    b = b.reshape(1, -1)

    tm = min(tm_max, _round_up(M, 16))
    Mp = _round_up(M, tm)
    if N <= 128:
        tn, Np = N, N                      # block == full dim is allowed
    else:
        tn = min(tn_max, _round_up(N, 128))
        Np = _round_up(N, tn)
    Kp128 = _round_up(K, 128)
    tk = Kp128 if Kp128 <= tk_max else 512
    Kp = _round_up(Kp128, tk)

    xp = _pad2(x.astype(jnp.bfloat16), Mp, Kp)
    wp = _pad2(w.astype(jnp.bfloat16), Kp, Np)
    bp = _pad2(b.astype(jnp.float32), 1, Np)

    n_m, n_n, n_k = Mp // tm, Np // tn, Kp // tk

    if n_n == 1 and n_k == 1:
        # Hot path for this network (Cout<=64, K<=640): 1-D M-only grid,
        # no accumulator round-trip.
        out = pl.pallas_call(
            functools.partial(_gemm_bias_act_single_kernel, relu=relu),
            out_shape=jax.ShapeDtypeStruct((Mp, Np), out_dtype),
            grid_spec=pltpu.PrefetchScalarGridSpec(
                num_scalar_prefetch=0,
                grid=(n_m,),
                in_specs=[
                    pl.BlockSpec((tm, Kp), lambda i: (i, 0)),
                    pl.BlockSpec((Kp, Np), lambda i: (0, 0)),
                    pl.BlockSpec((1, Np), lambda i: (0, 0)),
                ],
                out_specs=pl.BlockSpec((tm, Np), lambda i: (i, 0)),
            ),
            compiler_params=pltpu.CompilerParams(
                dimension_semantics=("parallel",),
                vmem_limit_bytes=_VMEM_LIMIT),
        )(xp, wp, bp)
    else:
        out = pl.pallas_call(
            functools.partial(_gemm_bias_act_kernel, relu=relu),
            out_shape=jax.ShapeDtypeStruct((Mp, Np), out_dtype),
            grid_spec=pltpu.PrefetchScalarGridSpec(
                num_scalar_prefetch=0,
                grid=(n_m, n_n, n_k),
                in_specs=[
                    pl.BlockSpec((tm, tk), lambda i, j, k: (i, k)),
                    pl.BlockSpec((tk, tn), lambda i, j, k: (k, j)),
                    pl.BlockSpec((1, tn), lambda i, j, k: (0, j)),
                ],
                out_specs=pl.BlockSpec((tm, tn), lambda i, j, k: (i, j)),
                scratch_shapes=[pltpu.VMEM((tm, tn), jnp.float32)],
            ),
            compiler_params=pltpu.CompilerParams(
                dimension_semantics=("parallel", "parallel", "arbitrary"),
                vmem_limit_bytes=_VMEM_LIMIT),
        )(xp, wp, bp)

    if Mp > M or Np > N:
        out = out[:M, :N]
    return out


def pallas_noisy_head(flat, w1, b1, w2, b2, *, n_actions, atoms, atoms_pad,
                      tm_max=256):
    """Fused noisy1+ReLU+noisy2+softmax.  Returns (M, n_actions, atoms) f32."""
    M, K = flat.shape
    Kp, hidden = w1.shape                 # K already padded to 128-multiple in w1
    Nout = n_actions * atoms_pad
    assert w2.shape == (hidden, Nout)

    # Aim for >=2 M tiles at realistic batch sizes so the "parallel" grid axis
    # spans both TensorCores on v7x; rounded to 16 rows for bf16 tiling.
    tm = min(tm_max, _round_up(max(1, (M + 1) // 2), 16))
    Mp = _round_up(M, tm)
    xp = _pad2(flat.astype(jnp.bfloat16), Mp, Kp)

    out = pl.pallas_call(
        functools.partial(_noisy_head_kernel, n_actions=n_actions,
                          atoms_pad=atoms_pad),
        out_shape=jax.ShapeDtypeStruct((Mp, Nout), jnp.float32),
        grid_spec=pltpu.PrefetchScalarGridSpec(
            num_scalar_prefetch=0,
            grid=(Mp // tm,),
            in_specs=[
                pl.BlockSpec((tm, Kp), lambda i: (i, 0)),
                pl.BlockSpec((Kp, hidden), lambda i: (0, 0)),
                pl.BlockSpec((1, hidden), lambda i: (0, 0)),
                pl.BlockSpec((hidden, Nout), lambda i: (0, 0)),
                pl.BlockSpec((1, Nout), lambda i: (0, 0)),
            ],
            out_specs=pl.BlockSpec((tm, Nout), lambda i: (i, 0)),
        ),
        compiler_params=pltpu.CompilerParams(
            dimension_semantics=("parallel",),
            vmem_limit_bytes=_VMEM_LIMIT),
    )(xp, w1, b1, w2, b2)

    # (Mp, A*atoms_pad) -> (M, A, atoms); padded lanes are zeros and dropped.
    return out.reshape(Mp, n_actions, atoms_pad)[:M, :, :atoms]


# ------------------------------- JAX glue ----------------------------------

def im2col_nhwc(x, kh, kw, stride):
    """x: (N, H, W, C) -> (N*OH*OW, KH*KW*C), K ordering = (KH, KW, C)."""
    n, h, w, c = x.shape
    oh = (h - kh) // stride + 1
    ow = (w - kw) // stride + 1
    cols = []
    for i in range(kh):
        for j in range(kw):
            cols.append(x[:, i:i + stride * oh:stride,
                          j:j + stride * ow:stride, :])
    p = jnp.concatenate(cols, axis=-1)           # (N, OH, OW, KH*KW*C)
    return p.reshape(n * oh * ow, kh * kw * c), oh, ow


def conv2d_relu_nhwc(x, w_gemm, b, kh, kw, stride):
    """x: (N,H,W,C) bf16; w_gemm: (KH*KW*Cin, Cout) bf16.  Returns NHWC bf16."""
    n = x.shape[0]
    patches, oh, ow = im2col_nhwc(x, kh, kw, stride)
    cout = w_gemm.shape[1]
    out = pallas_matmul_bias_relu(patches, w_gemm, b, relu=True,
                                  out_dtype=jnp.bfloat16)
    return out.reshape(n, oh, ow, cout)


# --------------------------- parameter construction -------------------------

def _scale_noise(key, size):
    x = jax.random.normal(key, (size,), dtype=jnp.float32)
    return jnp.sign(x) * jnp.sqrt(jnp.abs(x))


def make_conv_params(key, cout, cin, k):
    kw_, kb_ = jax.random.split(key)
    fan_in = cin * k * k
    bound = 1.0 / (fan_in ** 0.5)
    w = jax.random.uniform(kw_, (cout, cin, k, k), jnp.float32, -bound, bound)
    b = jax.random.uniform(kb_, (cout,), jnp.float32, -bound, bound)
    # PyTorch (Cout, Cin, KH, KW) -> GEMM weight with K order (KH, KW, Cin),
    # matching im2col_nhwc.  Reordered once here, not per forward pass.
    w_gemm = jnp.transpose(w, (2, 3, 1, 0)).reshape(k * k * cin, cout)
    return w_gemm.astype(jnp.bfloat16), b.astype(jnp.float32)


def make_noisy_linear_params(key, in_dim, out_dim, std_init=0.5):
    """Effective (w, b) of a NoisyLinear forward:
       w = w_mu + w_sigma * (eps_out ⊗ eps_in),  b = b_mu + b_sigma * eps_b."""
    k_wmu, k_bmu, k_ein, k_eout, k_eb = jax.random.split(key, 5)
    mu_range = 1.0 / (in_dim ** 0.5)
    weight_mu = jax.random.uniform(k_wmu, (out_dim, in_dim), jnp.float32,
                                   -mu_range, mu_range)
    bias_mu = jax.random.uniform(k_bmu, (out_dim,), jnp.float32,
                                 -mu_range, mu_range)
    weight_sigma = jnp.full((out_dim, in_dim), std_init / (in_dim ** 0.5),
                            dtype=jnp.float32)
    bias_sigma = jnp.full((out_dim,), std_init / (out_dim ** 0.5),
                          dtype=jnp.float32)
    eps_in = _scale_noise(k_ein, in_dim)
    eps_out = _scale_noise(k_eout, out_dim)
    weight_eps = jnp.outer(eps_out, eps_in)
    bias_eps = _scale_noise(k_eb, out_dim)

    w_eff = weight_mu + weight_sigma * weight_eps      # (out, in)
    b_eff = bias_mu + bias_sigma * bias_eps            # (out,)
    return w_eff.T, b_eff.reshape(1, out_dim)          # (in, out), (1, out)


def make_params(key, input_dims, n_actions, atoms):
    c_in, h, w = input_dims
    k1, k2, k3, k4, k5 = jax.random.split(key, 5)
    conv1_w, conv1_b = make_conv_params(k1, 32, c_in, 8)
    conv2_w, conv2_b = make_conv_params(k2, 64, 32, 4)
    conv3_w, conv3_b = make_conv_params(k3, 64, 64, 3)

    # conv_out computed the same way get_conv_out does
    o1 = (h - 8) // 4 + 1
    o2 = (o1 - 4) // 2 + 1
    o3 = o2 - 3 + 1
    conv_out = 64 * o3 * o3

    hidden = 512
    k1p = _round_up(conv_out, 128)
    atoms_pad = _round_up(atoms, 128)

    # noisy1: pad K rows to a 128-multiple (zero rows), bf16 for the MXU.
    n1_w, n1_b = make_noisy_linear_params(k4, conv_out, hidden)
    noisy1_w = jnp.pad(n1_w, ((0, k1p - conv_out), (0, 0))).astype(jnp.bfloat16)
    noisy1_b = n1_b.astype(jnp.float32)                      # (1, 512)

    # noisy2: fold the action axis into the GEMM N dimension.  Layout
    # (hidden, n_actions*atoms_pad): each action's atom block is a lane-dense
    # 128-wide slab.  Padded atom lanes get ZERO weight columns and a bias of
    # -1e30, so the kernel needs no mask — they vanish from the softmax.
    n2_w, n2_b = make_noisy_linear_params(k5, hidden, n_actions * atoms)
    w2 = n2_w.reshape(hidden, n_actions, atoms)
    w2 = jnp.pad(w2, ((0, 0), (0, 0), (0, atoms_pad - atoms)))
    noisy2_w = w2.reshape(hidden, n_actions * atoms_pad).astype(jnp.bfloat16)

    b2 = n2_b.reshape(1, n_actions, atoms)
    b2 = jnp.pad(b2, ((0, 0), (0, 0), (0, atoms_pad - atoms)),
                 constant_values=-1e30)
    noisy2_b = b2.reshape(1, n_actions * atoms_pad).astype(jnp.float32)

    return dict(conv1_w=conv1_w, conv1_b=conv1_b,
                conv2_w=conv2_w, conv2_b=conv2_b,
                conv3_w=conv3_w, conv3_b=conv3_b,
                noisy1_w=noisy1_w, noisy1_b=noisy1_b,
                noisy2_w=noisy2_w, noisy2_b=noisy2_b,
                atoms_pad=atoms_pad)


# ------------------------------- forward pass -------------------------------

def categorical_dqn_forward(params, x_nchw, *, n_actions, atoms, atoms_pad):
    # NCHW (PyTorch) -> NHWC once; activations stay NHWC/bf16 through the convs.
    x = jnp.transpose(x_nchw, (0, 2, 3, 1)).astype(jnp.bfloat16)
    x = conv2d_relu_nhwc(x, params["conv1_w"], params["conv1_b"], 8, 8, 4)
    x = conv2d_relu_nhwc(x, params["conv2_w"], params["conv2_b"], 4, 4, 2)
    x = conv2d_relu_nhwc(x, params["conv3_w"], params["conv3_b"], 3, 3, 1)
    # Single NHWC->NCHW transpose so the flatten matches torch's .view(B, -1).
    b = x.shape[0]
    flat = jnp.transpose(x, (0, 3, 1, 2)).reshape(b, -1)
    # Fused noisy1 + ReLU + noisy2 + per-(batch, action) softmax over atoms.
    return pallas_noisy_head(flat, params["noisy1_w"], params["noisy1_b"],
                             params["noisy2_w"], params["noisy2_b"],
                             n_actions=n_actions, atoms=atoms,
                             atoms_pad=atoms_pad)


# ---------------------------------- main ------------------------------------

if __name__ == "__main__":
    # Small but conv-stack-consistent shapes: (C=4, H=W=36) -> conv_out = 64.
    input_dims = (4, 36, 36)
    n_actions, atoms = 6, 51
    vmin, vmax = -10.0, 10.0  # unused in forward (kept for parity with __init__)
    batch = 2

    key = jax.random.PRNGKey(0)
    k_params, k_x = jax.random.split(key)
    params = make_params(k_params, input_dims, n_actions, atoms)
    atoms_pad = int(params.pop("atoms_pad"))
    x = jax.random.normal(k_x, (batch,) + input_dims, dtype=jnp.float32)

    fwd = jax.jit(functools.partial(categorical_dqn_forward,
                                    n_actions=n_actions, atoms=atoms,
                                    atoms_pad=atoms_pad))
    out = fwd(params, x)
    out = jax.block_until_ready(out)

    assert out.shape == (batch, n_actions, atoms), out.shape
    # per-(batch, action) distributions sum to 1 (exact f32 divide in-kernel)
    sums = jnp.sum(out, axis=-1)
    assert bool(jnp.allclose(sums, 1.0, atol=1e-3)), sums
    assert bool(jnp.all(jnp.isfinite(out)))
    assert bool(jnp.all(out >= 0.0))
    print("KERNEL_OK")
</pallas_src>

<mosaic_0001>
module attributes {stable_mosaic.version = 11 : i64} {
  func.func @_gemm_bias_act_single_kernel(%arg0: i32, %arg1: memref<128x256xbf16, #tpu.memory_space<vmem>>, %arg2: memref<256x32xbf16, #tpu.memory_space<vmem>>, %arg3: memref<1x32xf32, #tpu.memory_space<vmem>>, %arg4: memref<128x32xbf16, #tpu.memory_space<vmem>>) attributes {dimension_semantics = [#tpu.dimension_semantics<parallel>], iteration_bounds = array<i64: 1>, scalar_prefetch = 0 : i64, scratch_operands = 0 : i64, tpu.core_type = #tpu.core_type<tc>, window_params = [{transform_indices = @transform_0, window_bounds = array<i64: 128, 256>}, {pipeline_mode = #tpu.pipeline_mode<synchronous>, transform_indices = @transform_1, window_bounds = array<i64: 256, 32>}, {pipeline_mode = #tpu.pipeline_mode<synchronous>, transform_indices = @transform_2, window_bounds = array<i64: 1, 32>}, {transform_indices = @transform_3, window_bounds = array<i64: 128, 32>}]} {
    %c0 = arith.constant 0 : index
    %c0_0 = arith.constant 0 : index
    %0 = vector.load %arg1[%c0, %c0_0] : memref<128x256xbf16, #tpu.memory_space<vmem>>, vector<128x256xbf16>
    %c0_1 = arith.constant 0 : index
    %c0_2 = arith.constant 0 : index
    %1 = vector.load %arg2[%c0_1, %c0_2] : memref<256x32xbf16, #tpu.memory_space<vmem>>, vector<256x32xbf16>
    %cst = arith.constant dense<0.000000e+00> : vector<128x32xf32>
    %2 = tpu.matmul %0, %1, %cst {dimension_numbers = #tpu.dot_dimension_numbers<[1], [0], [0], [1], [0, 0, 1, 1], [], []>} : vector<128x256xbf16>, vector<256x32xbf16>, vector<128x32xf32> -> vector<128x32xf32>
    %c0_3 = arith.constant 0 : index
    %c0_4 = arith.constant 0 : index
    %3 = vector.load %arg3[%c0_3, %c0_4] : memref<1x32xf32, #tpu.memory_space<vmem>>, vector<1x32xf32>
    %4 = vector.broadcast %3 : vector<1x32xf32> to vector<128x32xf32>
    %5 = arith.addf %2, %4 : vector<128x32xf32>
    %cst_5 = arith.constant 0.000000e+00 : f32
    %6 = vector.broadcast %cst_5 : f32 to vector<128x32xf32>
    %7 = arith.maximumf %5, %6 : vector<128x32xf32>
    %8 = arith.truncf %7 : vector<128x32xf32> to vector<128x32xbf16>
    %c0_6 = arith.constant 0 : index
    %c0_7 = arith.constant 0 : index
    %9 = vector.load %arg4[%c0_6, %c0_7] : memref<128x32xbf16, #tpu.memory_space<vmem>>, vector<128x32xbf16>
    tpu.vector_store %arg4[%c0_6, %c0_7], %8 {strides = array<i32>} : memref<128x32xbf16, #tpu.memory_space<vmem>>, vector<128x32xbf16>,
    return
  }
  func.func @transform_0(%arg0: i32) -> (i32, i32) {
    %c0_i32 = arith.constant 0 : i32
    %c0_i32_0 = arith.constant 0 : i32
    return %arg0, %c0_i32 : i32, i32
  }
  func.func @transform_1(%arg0: i32) -> (i32, i32) {
    %c0_i32 = arith.constant 0 : i32
    %c0_i32_0 = arith.constant 0 : i32
    %c0_i32_1 = arith.constant 0 : i32
    return %c0_i32, %c0_i32_0 : i32, i32
  }
  func.func @transform_2(%arg0: i32) -> (i32, i32) {
    %c0_i32 = arith.constant 0 : i32
    %c0_i32_0 = arith.constant 0 : i32
    %c0_i32_1 = arith.constant 0 : i32
    return %c0_i32, %c0_i32_0 : i32, i32
  }
  func.func @transform_3(%arg0: i32) -> (i32, i32) {
    %c0_i32 = arith.constant 0 : i32
    %c0_i32_0 = arith.constant 0 : i32
    return %arg0, %c0_i32 : i32, i32
  }
}

module attributes {stable_mosaic.version = 11 : i64} {
  func.func @_gemm_bias_act_single_kernel(%arg0: i32, %arg1: memref<32x512xbf16, #tpu.memory_space<vmem>>, %arg2: memref<512x64xbf16, #tpu.memory_space<vmem>>, %arg3: memref<1x64xf32, #tpu.memory_space<vmem>>, %arg4: memref<32x64xbf16, #tpu.memory_space<vmem>>) attributes {dimension_semantics = [#tpu.dimension_semantics<parallel>], iteration_bounds = array<i64: 1>, scalar_prefetch = 0 : i64, scratch_operands = 0 : i64, tpu.core_type = #tpu.core_type<tc>, window_params = [{transform_indices = @transform_0, window_bounds = array<i64: 32, 512>}, {pipeline_mode = #tpu.pipeline_mode<synchronous>, transform_indices = @transform_1, window_bounds = array<i64: 512, 64>}, {pipeline_mode = #tpu.pipeline_mode<synchronous>, transform_indices = @transform_2, window_bounds = array<i64: 1, 64>}, {transform_indices = @transform_3, window_bounds = array<i64: 32, 64>}]} {
    %c0 = arith.constant 0 : index
    %c0_0 = arith.constant 0 : index
    %0 = vector.load %arg1[%c0, %c0_0] : memref<32x512xbf16, #tpu.memory_space<vmem>>, vector<32x512xbf16>
    %c0_1 = arith.constant 0 : index
    %c0_2 = arith.constant 0 : index
    %1 = vector.load %arg2[%c0_1, %c0_2] : memref<512x64xbf16, #tpu.memory_space<vmem>>, vector<512x64xbf16>
    %cst = arith.constant dense<0.000000e+00> : vector<32x64xf32>
    %2 = tpu.matmul %0, %1, %cst {dimension_numbers = #tpu.dot_dimension_numbers<[1], [0], [0], [1], [0, 0, 1, 1], [], []>} : vector<32x512xbf16>, vector<512x64xbf16>, vector<32x64xf32> -> vector<32x64xf32>
    %c0_3 = arith.constant 0 : index
    %c0_4 = arith.constant 0 : index
    %3 = vector.load %arg3[%c0_3, %c0_4] : memref<1x64xf32, #tpu.memory_space<vmem>>, vector<1x64xf32>
    %4 = vector.broadcast %3 : vector<1x64xf32> to vector<32x64xf32>
    %5 = arith.addf %2, %4 : vector<32x64xf32>
    %cst_5 = arith.constant 0.000000e+00 : f32
    %6 = vector.broadcast %cst_5 : f32 to vector<32x64xf32>
    %7 = arith.maximumf %5, %6 : vector<32x64xf32>
    %8 = arith.truncf %7 : vector<32x64xf32> to vector<32x64xbf16>
    %c0_6 = arith.constant 0 : index
    %c0_7 = arith.constant 0 : index
    %9 = vector.load %arg4[%c0_6, %c0_7] : memref<32x64xbf16, #tpu.memory_space<vmem>>, vector<32x64xbf16>
    tpu.vector_store %arg4[%c0_6, %c0_7], %8 {strides = array<i32>} : memref<32x64xbf16, #tpu.memory_space<vmem>>, vector<32x64xbf16>,
    return
  }
  func.func @transform_0(%arg0: i32) -> (i32, i32) {
    %c0_i32 = arith.constant 0 : i32
    %c0_i32_0 = arith.constant 0 : i32
    return %arg0, %c0_i32 : i32, i32
  }
  func.func @transform_1(%arg0: i32) -> (i32, i32) {
    %c0_i32 = arith.constant 0 : i32
    %c0_i32_0 = arith.constant 0 : i32
    %c0_i32_1 = arith.constant 0 : i32
    return %c0_i32, %c0_i32_0 : i32, i32
  }
  func.func @transform_2(%arg0: i32) -> (i32, i32) {
    %c0_i32 = arith.constant 0 : i32
    %c0_i32_0 = arith.constant 0 : i32
    %c0_i32_1 = arith.constant 0 : i32
    return %c0_i32, %c0_i32_0 : i32, i32
  }
  func.func @transform_3(%arg0: i32) -> (i32, i32) {
    %c0_i32 = arith.constant 0 : i32
    %c0_i32_0 = arith.constant 0 : i32
    return %arg0, %c0_i32 : i32, i32
  }
}

module attributes {stable_mosaic.version = 11 : i64} {
  func.func @_noisy_head_kernel(%arg0: i32, %arg1: memref<16x128xbf16, #tpu.memory_space<vmem>>, %arg2: memref<128x512xbf16, #tpu.memory_space<vmem>>, %arg3: memref<1x512xf32, #tpu.memory_space<vmem>>, %arg4: memref<512x768xbf16, #tpu.memory_space<vmem>>, %arg5: memref<1x768xf32, #tpu.memory_space<vmem>>, %arg6: memref<16x768xf32, #tpu.memory_space<vmem>>) attributes {dimension_semantics = [#tpu.dimension_semantics<parallel>], iteration_bounds = array<i64: 1>, scalar_prefetch = 0 : i64, scratch_operands = 0 : i64, tpu.core_type = #tpu.core_type<tc>, window_params = [{transform_indices = @transform_0, window_bounds = array<i64: 16, 128>}, {pipeline_mode = #tpu.pipeline_mode<synchronous>, transform_indices = @transform_1, window_bounds = array<i64: 128, 512>}, {pipeline_mode = #tpu.pipeline_mode<synchronous>, transform_indices = @transform_2, window_bounds = array<i64: 1, 512>}, {pipeline_mode = #tpu.pipeline_mode<synchronous>, transform_indices = @transform_3, window_bounds = array<i64: 512, 768>}, {pipeline_mode = #tpu.pipeline_mode<synchronous>, transform_indices = @transform_4, window_bounds = array<i64: 1, 768>}, {transform_indices = @transform_5, window_bounds = array<i64: 16, 768>}]} {
    %c0 = arith.constant 0 : index
    %c0_0 = arith.constant 0 : index
    %0 = vector.load %arg1[%c0, %c0_0] : memref<16x128xbf16, #tpu.memory_space<vmem>>, vector<16x128xbf16>
    %c0_1 = arith.constant 0 : index
    %c0_2 = arith.constant 0 : index
    %1 = vector.load %arg2[%c0_1, %c0_2] : memref<128x512xbf16, #tpu.memory_space<vmem>>, vector<128x512xbf16>
    %cst = arith.constant dense<0.000000e+00> : vector<16x512xf32>
    %2 = tpu.matmul %0, %1, %cst {dimension_numbers = #tpu.dot_dimension_numbers<[1], [0], [0], [1], [0, 0, 1, 1], [], []>} : vector<16x128xbf16>, vector<128x512xbf16>, vector<16x512xf32> -> vector<16x512xf32>
    %c0_3 = arith.constant 0 : index
    %c0_4 = arith.constant 0 : index
    %3 = vector.load %arg3[%c0_3, %c0_4] : memref<1x512xf32, #tpu.memory_space<vmem>>, vector<1x512xf32>
    %4 = vector.broadcast %3 : vector<1x512xf32> to vector<16x512xf32>
    %5 = arith.addf %2, %4 : vector<16x512xf32>
    %cst_5 = arith.constant 0.000000e+00 : f32
    %6 = vector.broadcast %cst_5 : f32 to vector<16x512xf32>
    %7 = arith.maximumf %5, %6 : vector<16x512xf32>
    %8 = arith.truncf %7 : vector<16x512xf32> to vector<16x512xbf16>
    %c0_6 = arith.constant 0 : index
    %c0_7 = arith.constant 0 : index
    %9 = vector.load %arg4[%c0_6, %c0_7] : memref<512x768xbf16, #tpu.memory_space<vmem>>, vector<512x768xbf16>
    %cst_8 = arith.constant dense<0.000000e+00> : vector<16x768xf32>
    %10 = tpu.matmul %8, %9, %cst_8 {dimension_numbers = #tpu.dot_dimension_numbers<[1], [0], [0], [1], [0, 0, 1, 1], [], []>} : vector<16x512xbf16>, vector<512x768xbf16>, vector<16x768xf32> -> vector<16x768xf32>
    %c0_9 = arith.constant 0 : index
    %c0_10 = arith.constant 0 : index
    %11 = vector.load %arg5[%c0_9, %c0_10] : memref<1x768xf32, #tpu.memory_space<vmem>>, vector<1x768xf32>
    %12 = vector.broadcast %11 : vector<1x768xf32> to vector<16x768xf32>
    %13 = arith.addf %10, %12 : vector<16x768xf32>
    %14 = vector.extract_strided_slice %13 {offsets = [0, 0], sizes = [16, 128], strides = [1, 1]} : vector<16x768xf32> to vector<16x128xf32>
    %cst_11 = arith.constant dense<0xFF800000> : vector<16xf32>
    %15 = vector.multi_reduction <maximumf>, %14, %cst_11 [1] : vector<16x128xf32> to vector<16xf32>
    %16 = vector.shape_cast %15 : vector<16xf32> to vector<16x1xf32>
    %17 = vector.broadcast %16 : vector<16x1xf32> to vector<16x128xf32>
    %18 = arith.subf %14, %17 : vector<16x128xf32>
    %19 = math.exp %18 : vector<16x128xf32>
    %cst_12 = arith.constant dense<0.000000e+00> : vector<16xf32>
    %20 = vector.multi_reduction <add>, %19, %cst_12 [1] : vector<16x128xf32> to vector<16xf32>
    %21 = vector.shape_cast %20 : vector<16xf32> to vector<16x1xf32>
    %22 = vector.broadcast %21 : vector<16x1xf32> to vector<16x128xf32>
    %23 = arith.divf %19, %22 : vector<16x128xf32>
    %c0_13 = arith.constant 0 : index
    %c0_14 = arith.constant 0 : index
    %24 = vector.load %arg6[%c0_13, %c0_14] : memref<16x768xf32, #tpu.memory_space<vmem>>, vector<16x128xf32>
    tpu.vector_store %arg6[%c0_13, %c0_14], %23 {strides = array<i32>} : memref<16x768xf32, #tpu.memory_space<vmem>>, vector<16x128xf32>,
    %25 = vector.extract_strided_slice %13 {offsets = [0, 128], sizes = [16, 128], strides = [1, 1]} : vector<16x768xf32> to vector<16x128xf32>
    %cst_15 = arith.constant dense<0xFF800000> : vector<16xf32>
    %26 = vector.multi_reduction <maximumf>, %25, %cst_15 [1] : vector<16x128xf32> to vector<16xf32>
    %27 = vector.shape_cast %26 : vector<16xf32> to vector<16x1xf32>
    %28 = vector.broadcast %27 : vector<16x1xf32> to vector<16x128xf32>
    %29 = arith.subf %25, %28 : vector<16x128xf32>
    %30 = math.exp %29 : vector<16x128xf32>
    %cst_16 = arith.constant dense<0.000000e+00> : vector<16xf32>
    %31 = vector.multi_reduction <add>, %30, %cst_16 [1] : vector<16x128xf32> to vector<16xf32>
    %32 = vector.shape_cast %31 : vector<16xf32> to vector<16x1xf32>
    %33 = vector.broadcast %32 : vector<16x1xf32> to vector<16x128xf32>
    %34 = arith.divf %30, %33 : vector<16x128xf32>
    %c0_17 = arith.constant 0 : index
    %c128 = arith.constant 128 : index
    %35 = vector.load %arg6[%c0_17, %c128] : memref<16x768xf32, #tpu.memory_space<vmem>>, vector<16x128xf32>
    tpu.vector_store %arg6[%c0_17, %c128], %34 {strides = array<i32>} : memref<16x768xf32, #tpu.memory_space<vmem>>, vector<16x128xf32>,
    %36 = vector.extract_strided_slice %13 {offsets = [0, 256], sizes = [16, 128], strides = [1, 1]} : vector<16x768xf32> to vector<16x128xf32>
    %cst_18 = arith.constant dense<0xFF800000> : vector<16xf32>
    %37 = vector.multi_reduction <maximumf>, %36, %cst_18 [1] : vector<16x128xf32> to vector<16xf32>
    %38 = vector.shape_cast %37 : vector<16xf32> to vector<16x1xf32>
    %39 = vector.broadcast %38 : vector<16x1xf32> to vector<16x128xf32>
    %40 = arith.subf %36, %39 : vector<16x128xf32>
    %41 = math.exp %40 : vector<16x128xf32>
    %cst_19 = arith.constant dense<0.000000e+00> : vector<16xf32>
    %42 = vector.multi_reduction <add>, %41, %cst_19 [1] : vector<16x128xf32> to vector<16xf32>
    %43 = vector.shape_cast %42 : vector<16xf32> to vector<16x1xf32>
    %44 = vector.broadcast %43 : vector<16x1xf32> to vector<16x128xf32>
    %45 = arith.divf %41, %44 : vector<16x128xf32>
    %c0_20 = arith.constant 0 : index
    %c256 = arith.constant 256 : index
    %46 = vector.load %arg6[%c0_20, %c256] : memref<16x768xf32, #tpu.memory_space<vmem>>, vector<16x128xf32>
    tpu.vector_store %arg6[%c0_20, %c256], %45 {strides = array<i32>} : memref<16x768xf32, #tpu.memory_space<vmem>>, vector<16x128xf32>,
    %47 = vector.extract_strided_slice %13 {offsets = [0, 384], sizes = [16, 128], strides = [1, 1]} : vector<16x768xf32> to vector<16x128xf32>
    %cst_21 = arith.constant dense<0xFF800000> : vector<16xf32>
    %48 = vector.multi_reduction <maximumf>, %47, %cst_21 [1] : vector<16x128xf32> to vector<16xf32>
    %49 = vector.shape_cast %48 : vector<16xf32> to vector<16x1xf32>
    %50 = vector.broadcast %49 : vector<16x1xf32> to vector<16x128xf32>
    %51 = arith.subf %47, %50 : vector<16x128xf32>
    %52 = math.exp %51 : vector<16x128xf32>
    %cst_22 = arith.constant dense<0.000000e+00> : vector<16xf32>
    %53 = vector.multi_reduction <add>, %52, %cst_22 [1] : vector<16x128xf32> to vector<16xf32>
    %54 = vector.shape_cast %53 : vector<16xf32> to vector<16x1xf32>
    %55 = vector.broadcast %54 : vector<16x1xf32> to vector<16x128xf32>
    %56 = arith.divf %52, %55 : vector<16x128xf32>
    %c0_23 = arith.constant 0 : index
    %c384 = arith.constant 384 : index
    %57 = vector.load %arg6[%c0_23, %c384] : memref<16x768xf32, #tpu.memory_space<vmem>>, vector<16x128xf32>
    tpu.vector_store %arg6[%c0_23, %c384], %56 {strides = array<i32>} : memref<16x768xf32, #tpu.memory_space<vmem>>, vector<16x128xf32>,
    %58 = vector.extract_strided_slice %13 {offsets = [0, 512], sizes = [16, 128], strides = [1, 1]} : vector<16x768xf32> to vector<16x128xf32>
    %cst_24 = arith.constant dense<0xFF800000> : vector<16xf32>
    %59 = vector.multi_reduction <maximumf>, %58, %cst_24 [1] : vector<16x128xf32> to vector<16xf32>
    %60 = vector.shape_cast %59 : vector<16xf32> to vector<16x1xf32>
    %61 = vector.broadcast %60 : vector<16x1xf32> to vector<16x128xf32>
    %62 = arith.subf %58, %61 : vector<16x128xf32>
    %63 = math.exp %62 : vector<16x128xf32>
    %cst_25 = arith.constant dense<0.000000e+00> : vector<16xf32>
    %64 = vector.multi_reduction <add>, %63, %cst_25 [1] : vector<16x128xf32> to vector<16xf32>
    %65 = vector.shape_cast %64 : vector<16xf32> to vector<16x1xf32>
    %66 = vector.broadcast %65 : vector<16x1xf32> to vector<16x128xf32>
    %67 = arith.divf %63, %66 : vector<16x128xf32>
    %c0_26 = arith.constant 0 : index
    %c512 = arith.constant 512 : index
    %68 = vector.load %arg6[%c0_26, %c512] : memref<16x768xf32, #tpu.memory_space<vmem>>, vector<16x128xf32>
    tpu.vector_store %arg6[%c0_26, %c512], %67 {strides = array<i32>} : memref<16x768xf32, #tpu.memory_space<vmem>>, vector<16x128xf32>,
    %69 = vector.extract_strided_slice %13 {offsets = [0, 640], sizes = [16, 128], strides = [1, 1]} : vector<16x768xf32> to vector<16x128xf32>
    %cst_27 = arith.constant dense<0xFF800000> : vector<16xf32>
    %70 = vector.multi_reduction <maximumf>, %69, %cst_27 [1] : vector<16x128xf32> to vector<16xf32>
    %71 = vector.shape_cast %70 : vector<16xf32> to vector<16x1xf32>
    %72 = vector.broadcast %71 : vector<16x1xf32> to vector<16x128xf32>
    %73 = arith.subf %69, %72 : vector<16x128xf32>
    %74 = math.exp %73 : vector<16x128xf32>
    %cst_28 = arith.constant dense<0.000000e+00> : vector<16xf32>
    %75 = vector.multi_reduction <add>, %74, %cst_28 [1] : vector<16x128xf32> to vector<16xf32>
    %76 = vector.shape_cast %75 : vector<16xf32> to vector<16x1xf32>
    %77 = vector.broadcast %76 : vector<16x1xf32> to vector<16x128xf32>
    %78 = arith.divf %74, %77 : vector<16x128xf32>
    %c0_29 = arith.constant 0 : index
    %c640 = arith.constant 640 : index
    %79 = vector.load %arg6[%c0_29, %c640] : memref<16x768xf32, #tpu.memory_space<vmem>>, vector<16x128xf32>
    tpu.vector_store %arg6[%c0_29, %c640], %78 {strides = array<i32>} : memref<16x768xf32, #tpu.memory_space<vmem>>, vector<16x128xf32>,
    return
  }
  func.func @transform_0(%arg0: i32) -> (i32, i32) {
    %c0_i32 = arith.constant 0 : i32
    %c0_i32_0 = arith.constant 0 : i32
    return %arg0, %c0_i32 : i32, i32
  }
  func.func @transform_1(%arg0: i32) -> (i32, i32) {
    %c0_i32 = arith.constant 0 : i32
    %c0_i32_0 = arith.constant 0 : i32
    %c0_i32_1 = arith.constant 0 : i32
    return %c0_i32, %c0_i32_0 : i32, i32
  }
  func.func @transform_2(%arg0: i32) -> (i32, i32) {
    %c0_i32 = arith.constant 0 : i32
    %c0_i32_0 = arith.constant 0 : i32
    %c0_i32_1 = arith.constant 0 : i32
    return %c0_i32, %c0_i32_0 : i32, i32
  }
  func.func @transform_3(%arg0: i32) -> (i32, i32) {
    %c0_i32 = arith.constant 0 : i32
    %c0_i32_0 = arith.constant 0 : i32
    %c0_i32_1 = arith.constant 0 : i32
    return %c0_i32, %c0_i32_0 : i32, i32
  }
  func.func @transform_4(%arg0: i32) -> (i32, i32) {
    %c0_i32 = arith.constant 0 : i32
    %c0_i32_0 = arith.constant 0 : i32
    %c0_i32_1 = arith.constant 0 : i32
    return %c0_i32, %c0_i32_0 : i32, i32
  }
  func.func @transform_5(%arg0: i32) -> (i32, i32) {
    %c0_i32 = arith.constant 0 : i32
    %c0_i32_0 = arith.constant 0 : i32
    return %arg0, %c0_i32 : i32, i32
  }
}

module attributes {stable_mosaic.version = 11 : i64} {
  func.func @_gemm_bias_act_single_kernel(%arg0: i32, %arg1: memref<16x640xbf16, #tpu.memory_space<vmem>>, %arg2: memref<640x64xbf16, #tpu.memory_space<vmem>>, %arg3: memref<1x64xf32, #tpu.memory_space<vmem>>, %arg4: memref<16x64xbf16, #tpu.memory_space<vmem>>) attributes {dimension_semantics = [#tpu.dimension_semantics<parallel>], iteration_bounds = array<i64: 1>, scalar_prefetch = 0 : i64, scratch_operands = 0 : i64, tpu.core_type = #tpu.core_type<tc>, window_params = [{transform_indices = @transform_0, window_bounds = array<i64: 16, 640>}, {pipeline_mode = #tpu.pipeline_mode<synchronous>, transform_indices = @transform_1, window_bounds = array<i64: 640, 64>}, {pipeline_mode = #tpu.pipeline_mode<synchronous>, transform_indices = @transform_2, window_bounds = array<i64: 1, 64>}, {transform_indices = @transform_3, window_bounds = array<i64: 16, 64>}]} {
    %c0 = arith.constant 0 : index
    %c0_0 = arith.constant 0 : index
    %0 = vector.load %arg1[%c0, %c0_0] : memref<16x640xbf16, #tpu.memory_space<vmem>>, vector<16x640xbf16>
    %c0_1 = arith.constant 0 : index
    %c0_2 = arith.constant 0 : index
    %1 = vector.load %arg2[%c0_1, %c0_2] : memref<640x64xbf16, #tpu.memory_space<vmem>>, vector<640x64xbf16>
    %cst = arith.constant dense<0.000000e+00> : vector<16x64xf32>
    %2 = tpu.matmul %0, %1, %cst {dimension_numbers = #tpu.dot_dimension_numbers<[1], [0], [0], [1], [0, 0, 1, 1], [], []>} : vector<16x640xbf16>, vector<640x64xbf16>, vector<16x64xf32> -> vector<16x64xf32>
    %c0_3 = arith.constant 0 : index
    %c0_4 = arith.constant 0 : index
    %3 = vector.load %arg3[%c0_3, %c0_4] : memref<1x64xf32, #tpu.memory_space<vmem>>, vector<1x64xf32>
    %4 = vector.broadcast %3 : vector<1x64xf32> to vector<16x64xf32>
    %5 = arith.addf %2, %4 : vector<16x64xf32>
    %cst_5 = arith.constant 0.000000e+00 : f32
    %6 = vector.broadcast %cst_5 : f32 to vector<16x64xf32>
    %7 = arith.maximumf %5, %6 : vector<16x64xf32>
    %8 = arith.truncf %7 : vector<16x64xf32> to vector<16x64xbf16>
    %c0_6 = arith.constant 0 : index
    %c0_7 = arith.constant 0 : index
    %9 = vector.load %arg4[%c0_6, %c0_7] : memref<16x64xbf16, #tpu.memory_space<vmem>>, vector<16x64xbf16>
    tpu.vector_store %arg4[%c0_6, %c0_7], %8 {strides = array<i32>} : memref<16x64xbf16, #tpu.memory_space<vmem>>, vector<16x64xbf16>,
    return
  }
  func.func @transform_0(%arg0: i32) -> (i32, i32) {
    %c0_i32 = arith.constant 0 : i32
    %c0_i32_0 = arith.constant 0 : i32
    return %arg0, %c0_i32 : i32, i32
  }
  func.func @transform_1(%arg0: i32) -> (i32, i32) {
    %c0_i32 = arith.constant 0 : i32
    %c0_i32_0 = arith.constant 0 : i32
    %c0_i32_1 = arith.constant 0 : i32
    return %c0_i32, %c0_i32_0 : i32, i32
  }
  func.func @transform_2(%arg0: i32) -> (i32, i32) {
    %c0_i32 = arith.constant 0 : i32
    %c0_i32_0 = arith.constant 0 : i32
    %c0_i32_1 = arith.constant 0 : i32
    return %c0_i32, %c0_i32_0 : i32, i32
  }
  func.func @transform_3(%arg0: i32) -> (i32, i32) {
    %c0_i32 = arith.constant 0 : i32
    %c0_i32_0 = arith.constant 0 : i32
    return %arg0, %c0_i32 : i32, i32
  }
}

</mosaic_0001>

<llo_original>
// kernel: categorical_dqn_forward.4
$region0: #{categorical_dqn_forward.4}
  #allocation0 [shape = 'u32[]', space=smem, size = 0x4, offset = 0x4, fixed_abs, tag = 'smem constant byte address 0x4 - core index']
  #allocation1 [shape = 'u32[144,128]{1,0:T(1,128)}', space=vmem, size = 0x12000, scoped, tag = 'internal scratch']
  %s0 = inlined_call_operand.vmem [shape: bf16[128,256], index: 0, kind: input, shape index: {}]
  %s1 = inlined_call_operand.vmem [shape: bf16[256,32], index: 1, kind: input, shape index: {}]
  %s2 = inlined_call_operand.vmem [shape: f32[1,32], index: 2, kind: input, shape index: {}]
  %s3 = inlined_call_operand.vmem [shape: bf16[128,32], index: 3, kind: output, shape index: {}]
  %s4 = sld [smem:[#allocation0]]
  $region22: #{categorical_dqn_forward.4} parent=0
    _
  %s6 = ssub.s32 1, %s4
  %s7 = scalar_select 0, %s6, %s4
  // Predicated region
  $region2: #{categorical_dqn_forward.4} parent=0 // pred_check
    _
  $region3: #{categorical_dqn_forward.4} parent=0 // pred_check_branch
    %9 = sbr.rel (0) target = $region5
  $region4: #{categorical_dqn_forward.4} parent=0 // pred_region
    _
  $region5: #{categorical_dqn_forward.4} parent=0 // pred_fallthru
    _
  // Predicated region
  $region6: #{categorical_dqn_forward.4} parent=0 // pred_check
    _
  $region7: #{categorical_dqn_forward.4} parent=0 // pred_check_branch
    %11 = sbr.rel (0) target = $region9
  $region8: #{categorical_dqn_forward.4} parent=0 // pred_region
    _
  $region9: #{categorical_dqn_forward.4} parent=0 // pred_fallthru
    _
  // Predicated region
  $region10: #{categorical_dqn_forward.4} parent=0 // pred_check
    _
  $region11: #{categorical_dqn_forward.4} parent=0 // pred_check_branch
    %13 = sbr.rel (0) target = $region13
  $region12: #{categorical_dqn_forward.4} parent=0 // pred_region
    _
  $region13: #{categorical_dqn_forward.4} parent=0 // pred_fallthru
    _
  %v15 = vld [vmem:[%s0] sm:$0xff]
  %v16 = vld [vmem:[%s0 + $0x8] sm:$0xff]
  %v17 = vld [vmem:[%s0 + $0x10] sm:$0xff]
  %v18 = vld [vmem:[%s0 + $0x18] sm:$0xff]
  %v19 = vld [vmem:[%s0 + $0x20] sm:$0xff]
  %v20 = vld [vmem:[%s0 + $0x28] sm:$0xff]
  %v21 = vld [vmem:[%s0 + $0x30] sm:$0xff]
  %v22 = vld [vmem:[%s0 + $0x38] sm:$0xff]
  %v23 = vld [vmem:[%s0 + $0x40] sm:$0xff]
  %v24 = vld [vmem:[%s0 + $0x48] sm:$0xff]
  %v25 = vld [vmem:[%s0 + $0x50] sm:$0xff]
  %v26 = vld [vmem:[%s0 + $0x58] sm:$0xff]
  %v27 = vld [vmem:[%s0 + $0x60] sm:$0xff]
  %v28 = vld [vmem:[%s0 + $0x68] sm:$0xff]
  %v29 = vld [vmem:[%s0 + $0x70] sm:$0xff]
  %v30 = vld [vmem:[%s0 + $0x78] sm:$0xff]
  %v31 = vld [vmem:[%s1] sm:$0xf]
  %v32 = vld [vmem:[%s1 + $0x4] sm:$0xf]
  %v33 = vld [vmem:[%s1 + $0x8] sm:$0xf]
  %v34 = vld [vmem:[%s1 + $0xc] sm:$0xf]
  %v35 = vld [vmem:[%s1 + $0x10] sm:$0xf]
  %v36 = vld [vmem:[%s1 + $0x14] sm:$0xf]
  %v37 = vld [vmem:[%s1 + $0x18] sm:$0xf]
  %v38 = vld [vmem:[%s1 + $0x1c] sm:$0xf]
  %v39 = vld [vmem:[%s1 + $0x20] sm:$0xf]
  %v40 = vld [vmem:[%s1 + $0x24] sm:$0xf]
  %v41 = vld [vmem:[%s1 + $0x28] sm:$0xf]
  %v42 = vld [vmem:[%s1 + $0x2c] sm:$0xf]
  %v43 = vld [vmem:[%s1 + $0x30] sm:$0xf]
  %v44 = vld [vmem:[%s1 + $0x34] sm:$0xf]
  %v45 = vld [vmem:[%s1 + $0x38] sm:$0xf]
  %v46 = vld [vmem:[%s1 + $0x3c] sm:$0xf]
  %v47 = vld [vmem:[%s1 + $0x40] sm:$0xf]
  %v48 = vld [vmem:[%s1 + $0x44] sm:$0xf]
  %v49 = vld [vmem:[%s1 + $0x48] sm:$0xf]
  %v50 = vld [vmem:[%s1 + $0x4c] sm:$0xf]
  %v51 = vld [vmem:[%s1 + $0x50] sm:$0xf]
  %v52 = vld [vmem:[%s1 + $0x54] sm:$0xf]
  %v53 = vld [vmem:[%s1 + $0x58] sm:$0xf]
  %v54 = vld [vmem:[%s1 + $0x5c] sm:$0xf]
  %v55 = vld [vmem:[%s1 + $0x60] sm:$0xf]
  %v56 = vld [vmem:[%s1 + $0x64] sm:$0xf]
  %v57 = vld [vmem:[%s1 + $0x68] sm:$0xf]
  %v58 = vld [vmem:[%s1 + $0x6c] sm:$0xf]
  %v59 = vld [vmem:[%s1 + $0x70] sm:$0xf]
  %v60 = vld [vmem:[%s1 + $0x74] sm:$0xf]
  %v61 = vld [vmem:[%s1 + $0x78] sm:$0xf]
  %v62 = vld [vmem:[%s1 + $0x7c] sm:$0xf]
  %v63 = vld [vmem:[%s2] sm:$0x1]
  %v65 = vlaneseq
  %v66 = vshrl.u32 %v65, 7
  %v67 = vsub.s32 0, %v66
  %v68 = vrot.slane %v63, %v67
  %v86 = vunpack.c.l.b16 %v15
  %v87 = vunpack.c.h.b16 %v15
  %v88 = vunpack.c.l.b16 %v16
  %v89 = vunpack.c.h.b16 %v16
  %v90 = vunpack.c.l.b16 %v17
  %v91 = vunpack.c.h.b16 %v17
  %v92 = vunpack.c.l.b16 %v18
  %v93 = vunpack.c.h.b16 %v18
  %v94 = vunpack.c.l.b16 %v19
  %v95 = vunpack.c.h.b16 %v19
  %v96 = vunpack.c.l.b16 %v20
  %v97 = vunpack.c.h.b16 %v20
  %v98 = vunpack.c.l.b16 %v21
  %v99 = vunpack.c.h.b16 %v21
  %v100 = vunpack.c.l.b16 %v22
  %v101 = vunpack.c.h.b16 %v22
  %v102 = vunpack.c.l.b16 %v23
  %v103 = vunpack.c.h.b16 %v23
  %v104 = vunpack.c.l.b16 %v24
  %v105 = vunpack.c.h.b16 %v24
  %v106 = vunpack.c.l.b16 %v25
  %v107 = vunpack.c.h.b16 %v25
  %v108 = vunpack.c.l.b16 %v26
  %v109 = vunpack.c.h.b16 %v26
  %v110 = vunpack.c.l.b16 %v27
  %v111 = vunpack.c.h.b16 %v27
  %v112 = vunpack.c.l.b16 %v28
  %v113 = vunpack.c.h.b16 %v28
  %v114 = vunpack.c.l.b16 %v29
  %v115 = vunpack.c.h.b16 %v29
  %v116 = vunpack.c.l.b16 %v30
  %v117 = vunpack.c.h.b16 %v30
  %v118 = vpack.c.b16 %v88, %v86
  %v119 = vpack.c.b16 %v89, %v87
  %v120 = vpack.c.b16 %v92, %v90
  %v121 = vpack.c.b16 %v93, %v91
  %v122 = vpack.c.b16 %v96, %v94
  %v123 = vpack.c.b16 %v97, %v95
  %v124 = vpack.c.b16 %v100, %v98
  %v125 = vpack.c.b16 %v101, %v99
  %v126 = vpack.c.b16 %v104, %v102
  %v127 = vpack.c.b16 %v105, %v103
  %v128 = vpack.c.b16 %v108, %v106
  %v129 = vpack.c.b16 %v109, %v107
  %v130 = vpack.c.b16 %v112, %v110
  %v131 = vpack.c.b16 %v113, %v111
  %v132 = vpack.c.b16 %v116, %v114
  %v133 = vpack.c.b16 %v117, %v115
  %v182 = vunpack.c.l.b16 %v31
  %v183 = vunpack.c.l.b16 %v32
  %v184 = vunpack.c.l.b16 %v33
  %v185 = vunpack.c.l.b16 %v34
  %v186 = vunpack.c.l.b16 %v35
  %v187 = vunpack.c.l.b16 %v36
  %v188 = vunpack.c.l.b16 %v37
  %v189 = vunpack.c.l.b16 %v38
  %v190 = vunpack.c.l.b16 %v39
  %v191 = vunpack.c.l.b16 %v40
  %v192 = vunpack.c.l.b16 %v41
  %v193 = vunpack.c.l.b16 %v42
  %v194 = vunpack.c.l.b16 %v43
  %v195 = vunpack.c.l.b16 %v44
  %v196 = vunpack.c.l.b16 %v45
  %v197 = vunpack.c.l.b16 %v46
  %v198 = vunpack.c.l.b16 %v47
  %v199 = vunpack.c.l.b16 %v48
  %v200 = vunpack.c.l.b16 %v49
  %v201 = vunpack.c.l.b16 %v50
  %v202 = vunpack.c.l.b16 %v51
  %v203 = vunpack.c.l.b16 %v52
  %v204 = vunpack.c.l.b16 %v53
  %v205 = vunpack.c.l.b16 %v54
  %v206 = vunpack.c.l.b16 %v55
  %v207 = vunpack.c.l.b16 %v56
  %v208 = vunpack.c.l.b16 %v57
  %v209 = vunpack.c.l.b16 %v58
  %v210 = vunpack.c.l.b16 %v59
  %v211 = vunpack.c.l.b16 %v60
  %v212 = vunpack.c.l.b16 %v61
  %v213 = vunpack.c.l.b16 %v62
  %v214 = vpack.c.b16 %v183, %v182
  %v215 = vpack.c.b16 %v185, %v184
  %v216 = vpack.c.b16 %v187, %v186
  %v217 = vpack.c.b16 %v189, %v188
  %v218 = vpack.c.b16 %v191, %v190
  %v219 = vpack.c.b16 %v193, %v192
  %v220 = vpack.c.b16 %v195, %v194
  %v221 = vpack.c.b16 %v197, %v196
  %v222 = vpack.c.b16 %v199, %v198
  %v223 = vpack.c.b16 %v201, %v200
  %v224 = vpack.c.b16 %v203, %v202
  %v225 = vpack.c.b16 %v205, %v204
  %v226 = vpack.c.b16 %v207, %v206
  %v227 = vpack.c.b16 %v209, %v208
  %v228 = vpack.c.b16 %v211, %v210
  %v229 = vpack.c.b16 %v213, %v212
  %246 = vmatprep.subr.bf16.mxu0 0
  %247 = vmatpush1.bf16.msra.mxu0 %v214
  %248 = vmatprep.subr.bf16.mxu0 0
  %249 = vmatpush1.bf16.msra.mxu0 %v215
  %250 = vmatprep.subr.bf16.mxu0 0
  %251 = vmatpush1.bf16.msra.mxu0 %v216
  %252 = vmatprep.subr.bf16.mxu0 0
  %253 = vmatpush1.bf16.msra.mxu0 %v217
  %254 = vmatprep.subr.bf16.mxu0 0
  %255 = vmatpush1.bf16.msra.mxu0 %v218
  %256 = vmatprep.subr.bf16.mxu0 0
  %257 = vmatpush1.bf16.msra.mxu0 %v219
  %258 = vmatprep.subr.bf16.mxu0 0
  %259 = vmatpush1.bf16.msra.mxu0 %v220
  %260 = vmatprep.subr.bf16.mxu0 0
  %261 = vmatpush1.bf16.msra.mxu0 %v221
  %262 = vmatprep.subr.bf16.mxu0 0
  %263 = vmatpush1.bf16.msra.mxu0 %v222
  %264 = vmatprep.subr.bf16.mxu0 0
  %265 = vmatpush1.bf16.msra.mxu0 %v223
  %266 = vmatprep.subr.bf16.mxu0 0
  %267 = vmatpush1.bf16.msra.mxu0 %v224
  %268 = vmatprep.subr.bf16.mxu0 0
  %269 = vmatpush1.bf16.msra.mxu0 %v225
  %270 = vmatprep.subr.bf16.mxu0 0
  %271 = vmatpush1.bf16.msra.mxu0 %v226
  %272 = vmatprep.subr.bf16.mxu0 0
  %273 = vmatpush1.bf16.msra.mxu0 %v227
  %274 = vmatprep.subr.bf16.mxu0 0
  %275 = vmatpush1.bf16.msra.mxu0 %v228
  %276 = vmatprep.subr.bf16.mxu0 0
  %277 = vmatpush1.bf16.msra.mxu0 %v229
  %278 = vmatprep.mubr.bf16.mxu0 %v119
  %279 = vmatmul.mubr.bf16.gmra.mrb[0].mxu0 %v118
  %v280 = vpop.f32.mrb[0].mxu0
  %v281 = vadd.f32 %v68, %v280
  %v282 = vpop.f32.mrb[0].mxu0
  %v283 = vpop.f32.mrb[0].mxu0
  %v284 = vadd.f32 %v68, %v283
  %v285 = vpop.f32.mrb[0].mxu0
  %286 = vmatprep.mubr.bf16.mxu0 %v121
  %287 = vmatmul.mubr.bf16.gmra.mrb[0].mxu0 %v120
  %v288 = vpop.f32.mrb[0].mxu0
  %v289 = vadd.f32 %v68, %v288
  %v290 = vpop.f32.mrb[0].mxu0
  %v291 = vpop.f32.mrb[0].mxu0
  %v292 = vadd.f32 %v68, %v291
  %v293 = vpop.f32.mrb[0].mxu0
  %294 = vmatprep.mubr.bf16.mxu0 %v123
  %295 = vmatmul.mubr.bf16.gmra.mrb[0].mxu0 %v122
  %v296 = vpop.f32.mrb[0].mxu0
  %v297 = vadd.f32 %v68, %v296
  %v298 = vpop.f32.mrb[0].mxu0
  %v299 = vpop.f32.mrb[0].mxu0
  %v300 = vadd.f32 %v68, %v299
  %v301 = vpop.f32.mrb[0].mxu0
  %302 = vmatprep.mubr.bf16.mxu0 %v125
  %303 = vmatmul.mubr.bf16.gmra.mrb[0].mxu0 %v124
  %v304 = vpop.f32.mrb[0].mxu0
  %v305 = vadd.f32 %v68, %v304
  %v306 = vpop.f32.mrb[0].mxu0
  %v307 = vpop.f32.mrb[0].mxu0
  %v308 = vadd.f32 %v68, %v307
  %v309 = vpop.f32.mrb[0].mxu0
  %310 = vmatprep.mubr.bf16.mxu0 %v127
  %311 = vmatmul.mubr.bf16.gmra.mrb[0].mxu0 %v126
  %v312 = vpop.f32.mrb[0].mxu0
  %v313 = vadd.f32 %v68, %v312
  %v314 = vpop.f32.mrb[0].mxu0
  %v315 = vpop.f32.mrb[0].mxu0
  %v316 = vadd.f32 %v68, %v315
  %v317 = vpop.f32.mrb[0].mxu0
  %318 = vmatprep.mubr.bf16.mxu0 %v129
  %319 = vmatmul.mubr.bf16.gmra.mrb[0].mxu0 %v128
  %v320 = vpop.f32.mrb[0].mxu0
  %v321 = vadd.f32 %v68, %v320
  %v322 = vpop.f32.mrb[0].mxu0
  %v323 = vpop.f32.mrb[0].mxu0
  %v324 = vadd.f32 %v68, %v323
  %v325 = vpop.f32.mrb[0].mxu0
  %326 = vmatprep.mubr.bf16.mxu0 %v131
  %327 = vmatmul.mubr.bf16.gmra.mrb[0].mxu0 %v130
  %v328 = vpop.f32.mrb[0].mxu0
  %v329 = vadd.f32 %v68, %v328
  %v330 = vpop.f32.mrb[0].mxu0
  %v331 = vpop.f32.mrb[0].mxu0
  %v332 = vadd.f32 %v68, %v331
  %v333 = vpop.f32.mrb[0].mxu0
  %334 = vmatprep.mubr.bf16.mxu0 %v133
  %335 = vmatmul.mubr.bf16.gmra.mrb[0].mxu0 %v132
  %v336 = vpop.f32.mrb[0].mxu0
  %v337 = vadd.f32 %v68, %v336
  %v338 = vpop.f32.mrb[0].mxu0
  %v339 = vpop.f32.mrb[0].mxu0
  %v340 = vadd.f32 %v68, %v339
  %v341 = vpop.f32.mrb[0].mxu0
  %342 = vdwg.mxu0
  %v343 = vmax.f32 %v281, 0.0
  %v344 = vmax.f32 %v284, 0.0
  %v345 = vmax.f32 %v289, 0.0
  %v346 = vmax.f32 %v292, 0.0
  %v347 = vmax.f32 %v297, 0.0
  %v348 = vmax.f32 %v300, 0.0
  %v349 = vmax.f32 %v305, 0.0
  %v350 = vmax.f32 %v308, 0.0
  %v351 = vmax.f32 %v313, 0.0
  %v352 = vmax.f32 %v316, 0.0
  %v353 = vmax.f32 %v321, 0.0
  %v354 = vmax.f32 %v324, 0.0
  %v355 = vmax.f32 %v329, 0.0
  %v356 = vmax.f32 %v332, 0.0
  %v357 = vmax.f32 %v337, 0.0
  %v358 = vmax.f32 %v340, 0.0
  %v359 = vpack.c.bf16 %v344, %v343
  %v360 = vpack.c.bf16 %v346, %v345
  %v361 = vpack.c.bf16 %v348, %v347
  %v362 = vpack.c.bf16 %v350, %v349
  %v363 = vpack.c.bf16 %v352, %v351
  %v364 = vpack.c.bf16 %v354, %v353
  %v365 = vpack.c.bf16 %v356, %v355
  %v366 = vpack.c.bf16 %v358, %v357
  %v375 = vunpack.c.l.b16 %v359
  %v376 = vunpack.c.h.b16 %v359
  %v377 = vunpack.c.l.b16 %v360
  %v378 = vunpack.c.h.b16 %v360
  %v379 = vunpack.c.l.b16 %v361
  %v380 = vunpack.c.h.b16 %v361
  %v381 = vunpack.c.l.b16 %v362
  %v382 = vunpack.c.h.b16 %v362
  %v383 = vunpack.c.l.b16 %v363
  %v384 = vunpack.c.h.b16 %v363
  %v385 = vunpack.c.l.b16 %v364
  %v386 = vunpack.c.h.b16 %v364
  %v387 = vunpack.c.l.b16 %v365
  %v388 = vunpack.c.h.b16 %v365
  %v389 = vunpack.c.l.b16 %v366
  %v390 = vunpack.c.h.b16 %v366
  %v391 = vpack.c.b16 %v375, %v375
  %v392 = vpack.c.b16 %v376, %v376
  %v393 = vpack.c.b16 %v377, %v377
  %v394 = vpack.c.b16 %v378, %v378
  %v395 = vpack.c.b16 %v379, %v379
  %v396 = vpack.c.b16 %v380, %v380
  %v397 = vpack.c.b16 %v381, %v381
  %v398 = vpack.c.b16 %v382, %v382
  %v399 = vpack.c.b16 %v383, %v383
  %v400 = vpack.c.b16 %v384, %v384
  %v401 = vpack.c.b16 %v385, %v385
  %v402 = vpack.c.b16 %v386, %v386
  %v403 = vpack.c.b16 %v387, %v387
  %v404 = vpack.c.b16 %v388, %v388
  %v405 = vpack.c.b16 %v389, %v389
  %v406 = vpack.c.b16 %v390, %v390
  %vm423 = vcmask 257024
  %424 = vst.msk [vmem:[%s3] sm:$0xf] %vm423, %v391
  %425 = vst.msk [vmem:[%s3 + $0x4] sm:$0xf] %vm423, %v392
  %426 = vst.msk [vmem:[%s3 + $0x8] sm:$0xf] %vm423, %v393
  %427 = vst.msk [vmem:[%s3 + $0xc] sm:$0xf] %vm423, %v394
  %428 = vst.msk [vmem:[%s3 + $0x10] sm:$0xf] %vm423, %v395
  %429 = vst.msk [vmem:[%s3 + $0x14] sm:$0xf] %vm423, %v396
  %430 = vst.msk [vmem:[%s3 + $0x18] sm:$0xf] %vm423, %v397
  %431 = vst.msk [vmem:[%s3 + $0x1c] sm:$0xf] %vm423, %v398
  %432 = vst.msk [vmem:[%s3 + $0x20] sm:$0xf] %vm423, %v399
  %433 = vst.msk [vmem:[%s3 + $0x24] sm:$0xf] %vm423, %v400
  %434 = vst.msk [vmem:[%s3 + $0x28] sm:$0xf] %vm423, %v401
  %435 = vst.msk [vmem:[%s3 + $0x2c] sm:$0xf] %vm423, %v402
  %436 = vst.msk [vmem:[%s3 + $0x30] sm:$0xf] %vm423, %v403
  %437 = vst.msk [vmem:[%s3 + $0x34] sm:$0xf] %vm423, %v404
  %438 = vst.msk [vmem:[%s3 + $0x38] sm:$0xf] %vm423, %v405
  %439 = vst.msk [vmem:[%s3 + $0x3c] sm:$0xf] %vm423, %v406
  // Predicated region
  $region14: #{categorical_dqn_forward.4} parent=0 // pred_check
    _
  $region15: #{categorical_dqn_forward.4} parent=0 // pred_check_branch
    %441 = sbr.rel (0) target = $region17
  $region16: #{categorical_dqn_forward.4} parent=0 // pred_region
    _
  $region17: #{categorical_dqn_forward.4} parent=0 // pred_fallthru
    _
  // Predicated region
  $region18: #{categorical_dqn_forward.4} parent=0 // pred_check
    _
  $region19: #{categorical_dqn_forward.4} parent=0 // pred_check_branch
    %443 = sbr.rel (0) target = $region21
  $region20: #{categorical_dqn_forward.4} parent=0 // pred_region
    _
  $region21: #{categorical_dqn_forward.4} parent=0 // pred_fallthru
    _

// kernel: categorical_dqn_forward.5
$region0: #{categorical_dqn_forward.5}
  #allocation0 [shape = 'u32[]', space=smem, size = 0x4, offset = 0x4, fixed_abs, tag = 'smem constant byte address 0x4 - core index']
  #allocation1 [shape = 'u32[144,128]{1,0:T(1,128)}', space=vmem, size = 0x12000, scoped, tag = 'internal scratch']
  %s0 = inlined_call_operand.vmem [shape: bf16[32,512], index: 0, kind: input, shape index: {}]
  %s1 = inlined_call_operand.vmem [shape: bf16[512,64], index: 1, kind: input, shape index: {}]
  %s2 = inlined_call_operand.vmem [shape: f32[1,64], index: 2, kind: input, shape index: {}]
  %s3 = inlined_call_operand.vmem [shape: bf16[32,64], index: 3, kind: output, shape index: {}]
  %s4 = sld [smem:[#allocation0]]
  $region22: #{categorical_dqn_forward.5} parent=0
    _
  %s6 = ssub.s32 1, %s4
  %s7 = scalar_select 0, %s6, %s4
  // Predicated region
  $region2: #{categorical_dqn_forward.5} parent=0 // pred_check
    _
  $region3: #{categorical_dqn_forward.5} parent=0 // pred_check_branch
    %9 = sbr.rel (0) target = $region5
  $region4: #{categorical_dqn_forward.5} parent=0 // pred_region
    _
  $region5: #{categorical_dqn_forward.5} parent=0 // pred_fallthru
    _
  // Predicated region
  $region6: #{categorical_dqn_forward.5} parent=0 // pred_check
    _
  $region7: #{categorical_dqn_forward.5} parent=0 // pred_check_branch
    %11 = sbr.rel (0) target = $region9
  $region8: #{categorical_dqn_forward.5} parent=0 // pred_region
    _
  $region9: #{categorical_dqn_forward.5} parent=0 // pred_fallthru
    _
  // Predicated region
  $region10: #{categorical_dqn_forward.5} parent=0 // pred_check
    _
  $region11: #{categorical_dqn_forward.5} parent=0 // pred_check_branch
    %13 = sbr.rel (0) target = $region13
  $region12: #{categorical_dqn_forward.5} parent=0 // pred_region
    _
  $region13: #{categorical_dqn_forward.5} parent=0 // pred_fallthru
    _
  %v15 = vld [vmem:[%s0] sm:$0xff]
  %v16 = vld [vmem:[%s0 + $0x8] sm:$0xff]
  %v17 = vld [vmem:[%s0 + $0x10] sm:$0xff]
  %v18 = vld [vmem:[%s0 + $0x18] sm:$0xff]
  %v19 = vld [vmem:[%s0 + $0x20] sm:$0xff]
  %v20 = vld [vmem:[%s0 + $0x28] sm:$0xff]
  %v21 = vld [vmem:[%s0 + $0x30] sm:$0xff]
  %v22 = vld [vmem:[%s0 + $0x38] sm:$0xff]
  %v23 = vld [vmem:[%s1] sm:$0xf]
  %v24 = vld [vmem:[%s1 + $0x4] sm:$0xf]
  %v25 = vld [vmem:[%s1 + $0x8] sm:$0xf]
  %v26 = vld [vmem:[%s1 + $0xc] sm:$0xf]
  %v27 = vld [vmem:[%s1 + $0x10] sm:$0xf]
  %v28 = vld [vmem:[%s1 + $0x14] sm:$0xf]
  %v29 = vld [vmem:[%s1 + $0x18] sm:$0xf]
  %v30 = vld [vmem:[%s1 + $0x1c] sm:$0xf]
  %v31 = vld [vmem:[%s1 + $0x20] sm:$0xf]
  %v32 = vld [vmem:[%s1 + $0x24] sm:$0xf]
  %v33 = vld [vmem:[%s1 + $0x28] sm:$0xf]
  %v34 = vld [vmem:[%s1 + $0x2c] sm:$0xf]
  %v35 = vld [vmem:[%s1 + $0x30] sm:$0xf]
  %v36 = vld [vmem:[%s1 + $0x34] sm:$0xf]
  %v37 = vld [vmem:[%s1 + $0x38] sm:$0xf]
  %v38 = vld [vmem:[%s1 + $0x3c] sm:$0xf]
  %v39 = vld [vmem:[%s1 + $0x40] sm:$0xf]
  %v40 = vld [vmem:[%s1 + $0x44] sm:$0xf]
  %v41 = vld [vmem:[%s1 + $0x48] sm:$0xf]
  %v42 = vld [vmem:[%s1 + $0x4c] sm:$0xf]
  %v43 = vld [vmem:[%s1 + $0x50] sm:$0xf]
  %v44 = vld [vmem:[%s1 + $0x54] sm:$0xf]
  %v45 = vld [vmem:[%s1 + $0x58] sm:$0xf]
  %v46 = vld [vmem:[%s1 + $0x5c] sm:$0xf]
  %v47 = vld [vmem:[%s1 + $0x60] sm:$0xf]
  %v48 = vld [vmem:[%s1 + $0x64] sm:$0xf]
  %v49 = vld [vmem:[%s1 + $0x68] sm:$0xf]
  %v50 = vld [vmem:[%s1 + $0x6c] sm:$0xf]
  %v51 = vld [vmem:[%s1 + $0x70] sm:$0xf]
  %v52 = vld [vmem:[%s1 + $0x74] sm:$0xf]
  %v53 = vld [vmem:[%s1 + $0x78] sm:$0xf]
  %v54 = vld [vmem:[%s1 + $0x7c] sm:$0xf]
  %v55 = vld [vmem:[%s1 + $0x80] sm:$0xf]
  %v56 = vld [vmem:[%s1 + $0x84] sm:$0xf]
  %v57 = vld [vmem:[%s1 + $0x88] sm:$0xf]
  %v58 = vld [vmem:[%s1 + $0x8c] sm:$0xf]
  %v59 = vld [vmem:[%s1 + $0x90] sm:$0xf]
  %v60 = vld [vmem:[%s1 + $0x94] sm:$0xf]
  %v61 = vld [vmem:[%s1 + $0x98] sm:$0xf]
  %v62 = vld [vmem:[%s1 + $0x9c] sm:$0xf]
  %v63 = vld [vmem:[%s1 + $0xa0] sm:$0xf]
  %v64 = vld [vmem:[%s1 + $0xa4] sm:$0xf]
  %v65 = vld [vmem:[%s1 + $0xa8] sm:$0xf]
  %v66 = vld [vmem:[%s1 + $0xac] sm:$0xf]
  %v67 = vld [vmem:[%s1 + $0xb0] sm:$0xf]
  %v68 = vld [vmem:[%s1 + $0xb4] sm:$0xf]
  %v69 = vld [vmem:[%s1 + $0xb8] sm:$0xf]
  %v70 = vld [vmem:[%s1 + $0xbc] sm:$0xf]
  %v71 = vld [vmem:[%s1 + $0xc0] sm:$0xf]
  %v72 = vld [vmem:[%s1 + $0xc4] sm:$0xf]
  %v73 = vld [vmem:[%s1 + $0xc8] sm:$0xf]
  %v74 = vld [vmem:[%s1 + $0xcc] sm:$0xf]
  %v75 = vld [vmem:[%s1 + $0xd0] sm:$0xf]
  %v76 = vld [vmem:[%s1 + $0xd4] sm:$0xf]
  %v77 = vld [vmem:[%s1 + $0xd8] sm:$0xf]
  %v78 = vld [vmem:[%s1 + $0xdc] sm:$0xf]
  %v79 = vld [vmem:[%s1 + $0xe0] sm:$0xf]
  %v80 = vld [vmem:[%s1 + $0xe4] sm:$0xf]
  %v81 = vld [vmem:[%s1 + $0xe8] sm:$0xf]
  %v82 = vld [vmem:[%s1 + $0xec] sm:$0xf]
  %v83 = vld [vmem:[%s1 + $0xf0] sm:$0xf]
  %v84 = vld [vmem:[%s1 + $0xf4] sm:$0xf]
  %v85 = vld [vmem:[%s1 + $0xf8] sm:$0xf]
  %v86 = vld [vmem:[%s1 + $0xfc] sm:$0xf]
  %v87 = vld [vmem:[%s2] sm:$0x1]
  %v89 = vlaneseq
  %v90 = vshrl.u32 %v89, 7
  %v91 = vsub.s32 0, %v90
  %v92 = vrot.slane %v87, %v91
  %v102 = vunpack.c.l.b16 %v15
  %v103 = vunpack.c.h.b16 %v15
  %v104 = vunpack.c.l.b16 %v16
  %v105 = vunpack.c.h.b16 %v16
  %v106 = vunpack.c.l.b16 %v17
  %v107 = vunpack.c.h.b16 %v17
  %v108 = vunpack.c.l.b16 %v18
  %v109 = vunpack.c.h.b16 %v18
  %v110 = vunpack.c.l.b16 %v19
  %v111 = vunpack.c.h.b16 %v19
  %v112 = vunpack.c.l.b16 %v20
  %v113 = vunpack.c.h.b16 %v20
  %v114 = vunpack.c.l.b16 %v21
  %v115 = vunpack.c.h.b16 %v21
  %v116 = vunpack.c.l.b16 %v22
  %v117 = vunpack.c.h.b16 %v22
  %v118 = vpack.c.b16 %v106, %v102
  %v119 = vpack.c.b16 %v107, %v103
  %v120 = vpack.c.b16 %v108, %v104
  %v121 = vpack.c.b16 %v109, %v105
  %v122 = vpack.c.b16 %v114, %v110
  %v123 = vpack.c.b16 %v115, %v111
  %v124 = vpack.c.b16 %v116, %v112
  %v125 = vpack.c.b16 %v117, %v113
  %v198 = vunpack.c.l.b16 %v23
  %v199 = vunpack.c.l.b16 %v24
  %v200 = vunpack.c.l.b16 %v25
  %v201 = vunpack.c.l.b16 %v26
  %v202 = vunpack.c.l.b16 %v27
  %v203 = vunpack.c.l.b16 %v28
  %v204 = vunpack.c.l.b16 %v29
  %v205 = vunpack.c.l.b16 %v30
  %v206 = vunpack.c.l.b16 %v31
  %v207 = vunpack.c.l.b16 %v32
  %v208 = vunpack.c.l.b16 %v33
  %v209 = vunpack.c.l.b16 %v34
  %v210 = vunpack.c.l.b16 %v35
  %v211 = vunpack.c.l.b16 %v36
  %v212 = vunpack.c.l.b16 %v37
  %v213 = vunpack.c.l.b16 %v38
  %v214 = vunpack.c.l.b16 %v39
  %v215 = vunpack.c.l.b16 %v40
  %v216 = vunpack.c.l.b16 %v41
  %v217 = vunpack.c.l.b16 %v42
  %v218 = vunpack.c.l.b16 %v43
  %v219 = vunpack.c.l.b16 %v44
  %v220 = vunpack.c.l.b16 %v45
  %v221 = vunpack.c.l.b16 %v46
  %v222 = vunpack.c.l.b16 %v47
  %v223 = vunpack.c.l.b16 %v48
  %v224 = vunpack.c.l.b16 %v49
  %v225 = vunpack.c.l.b16 %v50
  %v226 = vunpack.c.l.b16 %v51
  %v227 = vunpack.c.l.b16 %v52
  %v228 = vunpack.c.l.b16 %v53
  %v229 = vunpack.c.l.b16 %v54
  %v230 = vunpack.c.l.b16 %v55
  %v231 = vunpack.c.l.b16 %v56
  %v232 = vunpack.c.l.b16 %v57
  %v233 = vunpack.c.l.b16 %v58
  %v234 = vunpack.c.l.b16 %v59
  %v235 = vunpack.c.l.b16 %v60
  %v236 = vunpack.c.l.b16 %v61
  %v237 = vunpack.c.l.b16 %v62
  %v238 = vunpack.c.l.b16 %v63
  %v239 = vunpack.c.l.b16 %v64
  %v240 = vunpack.c.l.b16 %v65
  %v241 = vunpack.c.l.b16 %v66
  %v242 = vunpack.c.l.b16 %v67
  %v243 = vunpack.c.l.b16 %v68
  %v244 = vunpack.c.l.b16 %v69
  %v245 = vunpack.c.l.b16 %v70
  %v246 = vunpack.c.l.b16 %v71
  %v247 = vunpack.c.l.b16 %v72
  %v248 = vunpack.c.l.b16 %v73
  %v249 = vunpack.c.l.b16 %v74
  %v250 = vunpack.c.l.b16 %v75
  %v251 = vunpack.c.l.b16 %v76
  %v252 = vunpack.c.l.b16 %v77
  %v253 = vunpack.c.l.b16 %v78
  %v254 = vunpack.c.l.b16 %v79
  %v255 = vunpack.c.l.b16 %v80
  %v256 = vunpack.c.l.b16 %v81
  %v257 = vunpack.c.l.b16 %v82
  %v258 = vunpack.c.l.b16 %v83
  %v259 = vunpack.c.l.b16 %v84
  %v260 = vunpack.c.l.b16 %v85
  %v261 = vunpack.c.l.b16 %v86
  %v262 = vpack.c.b16 %v199, %v198
  %v263 = vpack.c.b16 %v201, %v200
  %v264 = vpack.c.b16 %v203, %v202
  %v265 = vpack.c.b16 %v205, %v204
  %v266 = vpack.c.b16 %v207, %v206
  %v267 = vpack.c.b16 %v209, %v208
  %v268 = vpack.c.b16 %v211, %v210
  %v269 = vpack.c.b16 %v213, %v212
  %v270 = vpack.c.b16 %v215, %v214
  %v271 = vpack.c.b16 %v217, %v216
  %v272 = vpack.c.b16 %v219, %v218
  %v273 = vpack.c.b16 %v221, %v220
  %v274 = vpack.c.b16 %v223, %v222
  %v275 = vpack.c.b16 %v225, %v224
  %v276 = vpack.c.b16 %v227, %v226
  %v277 = vpack.c.b16 %v229, %v228
  %v278 = vpack.c.b16 %v231, %v230
  %v279 = vpack.c.b16 %v233, %v232
  %v280 = vpack.c.b16 %v235, %v234
  %v281 = vpack.c.b16 %v237, %v236
  %v282 = vpack.c.b16 %v239, %v238
  %v283 = vpack.c.b16 %v241, %v240
  %v284 = vpack.c.b16 %v243, %v242
  %v285 = vpack.c.b16 %v245, %v244
  %v286 = vpack.c.b16 %v247, %v246
  %v287 = vpack.c.b16 %v249, %v248
  %v288 = vpack.c.b16 %v251, %v250
  %v289 = vpack.c.b16 %v253, %v252
  %v290 = vpack.c.b16 %v255, %v254
  %v291 = vpack.c.b16 %v257, %v256
  %v292 = vpack.c.b16 %v259, %v258
  %v293 = vpack.c.b16 %v261, %v260
  %326 = vmatprep.subr.bf16.mxu0 0
  %327 = vmatpush1.bf16.msra.mxu0 %v262
  %328 = vmatprep.subr.bf16.mxu0 0
  %329 = vmatpush1.bf16.msra.mxu0 %v263
  %330 = vmatprep.subr.bf16.mxu0 0
  %331 = vmatpush1.bf16.msra.mxu0 %v264
  %332 = vmatprep.subr.bf16.mxu0 0
  %333 = vmatpush1.bf16.msra.mxu0 %v265
  %334 = vmatprep.subr.bf16.mxu0 0
  %335 = vmatpush1.bf16.msra.mxu0 %v266
  %336 = vmatprep.subr.bf16.mxu0 0
  %337 = vmatpush1.bf16.msra.mxu0 %v267
  %338 = vmatprep.subr.bf16.mxu0 0
  %339 = vmatpush1.bf16.msra.mxu0 %v268
  %340 = vmatprep.subr.bf16.mxu0 0
  %341 = vmatpush1.bf16.msra.mxu0 %v269
  %342 = vmatprep.subr.bf16.mxu0 0
  %343 = vmatpush1.bf16.msra.mxu0 %v270
  %344 = vmatprep.subr.bf16.mxu0 0
  %345 = vmatpush1.bf16.msra.mxu0 %v271
  %346 = vmatprep.subr.bf16.mxu0 0
  %347 = vmatpush1.bf16.msra.mxu0 %v272
  %348 = vmatprep.subr.bf16.mxu0 0
  %349 = vmatpush1.bf16.msra.mxu0 %v273
  %350 = vmatprep.subr.bf16.mxu0 0
  %351 = vmatpush1.bf16.msra.mxu0 %v274
  %352 = vmatprep.subr.bf16.mxu0 0
  %353 = vmatpush1.bf16.msra.mxu0 %v275
  %354 = vmatprep.subr.bf16.mxu0 0
  %355 = vmatpush1.bf16.msra.mxu0 %v276
  %356 = vmatprep.subr.bf16.mxu0 0
  %357 = vmatpush1.bf16.msra.mxu0 %v277
  %358 = vmatprep.mubr.bf16.mxu0 %v119
  %359 = vmatmul.mubr.bf16.gmra.mrb[0].mxu0 %v118
  %v360 = vpop.f32.mrb[0].mxu0
  %v361 = vadd.f32 %v92, %v360
  %v362 = vpop.f32.mrb[0].mxu0
  %v363 = vpop.f32.mrb[0].mxu0
  %v364 = vadd.f32 %v92, %v363
  %v365 = vpop.f32.mrb[0].mxu0
  %366 = vmatprep.mubr.bf16.mxu0 %v123
  %367 = vmatmul.mubr.bf16.gmra.mrb[0].mxu0 %v122
  %v368 = vpop.f32.mrb[0].mxu0
  %v369 = vadd.f32 %v92, %v368
  %v370 = vpop.f32.mrb[0].mxu0
  %v371 = vpop.f32.mrb[0].mxu0
  %v372 = vadd.f32 %v92, %v371
  %v373 = vpop.f32.mrb[0].mxu0
  %374 = vdwg.mxu0
  %375 = vmatprep.subr.bf16.mxu0 0
  %376 = vmatpush1.bf16.msra.mxu0 %v278
  %377 = vmatprep.subr.bf16.mxu0 0
  %378 = vmatpush1.bf16.msra.mxu0 %v279
  %379 = vmatprep.subr.bf16.mxu0 0
  %380 = vmatpush1.bf16.msra.mxu0 %v280
  %381 = vmatprep.subr.bf16.mxu0 0
  %382 = vmatpush1.bf16.msra.mxu0 %v281
  %383 = vmatprep.subr.bf16.mxu0 0
  %384 = vmatpush1.bf16.msra.mxu0 %v282
  %385 = vmatprep.subr.bf16.mxu0 0
  %386 = vmatpush1.bf16.msra.mxu0 %v283
  %387 = vmatprep.subr.bf16.mxu0 0
  %388 = vmatpush1.bf16.msra.mxu0 %v284
  %389 = vmatprep.subr.bf16.mxu0 0
  %390 = vmatpush1.bf16.msra.mxu0 %v285
  %391 = vmatprep.subr.bf16.mxu0 0
  %392 = vmatpush1.bf16.msra.mxu0 %v286
  %393 = vmatprep.subr.bf16.mxu0 0
  %394 = vmatpush1.bf16.msra.mxu0 %v287
  %395 = vmatprep.subr.bf16.mxu0 0
  %396 = vmatpush1.bf16.msra.mxu0 %v288
  %397 = vmatprep.subr.bf16.mxu0 0
  %398 = vmatpush1.bf16.msra.mxu0 %v289
  %399 = vmatprep.subr.bf16.mxu0 0
  %400 = vmatpush1.bf16.msra.mxu0 %v290
  %401 = vmatprep.subr.bf16.mxu0 0
  %402 = vmatpush1.bf16.msra.mxu0 %v291
  %403 = vmatprep.subr.bf16.mxu0 0
  %404 = vmatpush1.bf16.msra.mxu0 %v292
  %405 = vmatprep.subr.bf16.mxu0 0
  %406 = vmatpush1.bf16.msra.mxu0 %v293
  %407 = vmatprep.mubr.bf16.mxu0 %v121
  %408 = vmatmul.mubr.bf16.gmra.mrb[0].mxu0 %v120
  %v409 = vpop.f32.mrb[0].mxu0
  %v410 = vadd.f32 %v361, %v409
  %v411 = vpop.f32.mrb[0].mxu0
  %v412 = vpop.f32.mrb[0].mxu0
  %v413 = vadd.f32 %v364, %v412
  %v414 = vpop.f32.mrb[0].mxu0
  %415 = vmatprep.mubr.bf16.mxu0 %v125
  %416 = vmatmul.mubr.bf16.gmra.mrb[0].mxu0 %v124
  %v417 = vpop.f32.mrb[0].mxu0
  %v418 = vadd.f32 %v369, %v417
  %v419 = vpop.f32.mrb[0].mxu0
  %v420 = vpop.f32.mrb[0].mxu0
  %v421 = vadd.f32 %v372, %v420
  %v422 = vpop.f32.mrb[0].mxu0
  %423 = vdwg.mxu0
  %v424 = vmax.f32 %v410, 0.0
  %v425 = vmax.f32 %v413, 0.0
  %v426 = vmax.f32 %v418, 0.0
  %v427 = vmax.f32 %v421, 0.0
  %v428 = vpack.c.bf16 %v425, %v424
  %v429 = vpack.c.bf16 %v427, %v426
  %v432 = vunpack.c.l.b16 %v428
  %v433 = vunpack.c.h.b16 %v428
  %v434 = vunpack.c.l.b16 %v429
  %v435 = vunpack.c.h.b16 %v429
  %v436 = vpack.c.b16 %v432, %v432
  %v437 = vpack.c.b16 %v433, %v433
  %v438 = vpack.c.b16 %v434, %v434
  %v439 = vpack.c.b16 %v435, %v435
  %vm444 = vcmask 519168
  %445 = vst.msk [vmem:[%s3] sm:$0xf] %vm444, %v436
  %446 = vst.msk [vmem:[%s3 + $0x4] sm:$0xf] %vm444, %v437
  %447 = vst.msk [vmem:[%s3 + $0x8] sm:$0xf] %vm444, %v438
  %448 = vst.msk [vmem:[%s3 + $0xc] sm:$0xf] %vm444, %v439
  // Predicated region
  $region14: #{categorical_dqn_forward.5} parent=0 // pred_check
    _
  $region15: #{categorical_dqn_forward.5} parent=0 // pred_check_branch
    %450 = sbr.rel (0) target = $region17
  $region16: #{categorical_dqn_forward.5} parent=0 // pred_region
    _
  $region17: #{categorical_dqn_forward.5} parent=0 // pred_fallthru
    _
  // Predicated region
  $region18: #{categorical_dqn_forward.5} parent=0 // pred_check
    _
  $region19: #{categorical_dqn_forward.5} parent=0 // pred_check_branch
    %452 = sbr.rel (0) target = $region21
  $region20: #{categorical_dqn_forward.5} parent=0 // pred_region
    _
  $region21: #{categorical_dqn_forward.5} parent=0 // pred_fallthru
    _

// kernel: categorical_dqn_forward.6
$region0: #{categorical_dqn_forward.6}
  #allocation0 [shape = 'u32[]', space=smem, size = 0x4, offset = 0x4, fixed_abs, tag = 'smem constant byte address 0x4 - core index']
  #allocation1 [shape = 'u32[144,128]{1,0:T(1,128)}', space=vmem, size = 0x12000, scoped, tag = 'internal scratch']
  %s0 = inlined_call_operand.vmem [shape: bf16[16,640], index: 0, kind: input, shape index: {}]
  %s1 = inlined_call_operand.vmem [shape: bf16[640,64], index: 1, kind: input, shape index: {}]
  %s2 = inlined_call_operand.vmem [shape: f32[1,64], index: 2, kind: input, shape index: {}]
  %s3 = inlined_call_operand.vmem [shape: bf16[16,64], index: 3, kind: output, shape index: {}]
  %s4 = sld [smem:[#allocation0]]
  $region22: #{categorical_dqn_forward.6} parent=0
    _
  %s6 = ssub.s32 1, %s4
  %s7 = scalar_select 0, %s6, %s4
  // Predicated region
  $region2: #{categorical_dqn_forward.6} parent=0 // pred_check
    _
  $region3: #{categorical_dqn_forward.6} parent=0 // pred_check_branch
    %9 = sbr.rel (0) target = $region5
  $region4: #{categorical_dqn_forward.6} parent=0 // pred_region
    _
  $region5: #{categorical_dqn_forward.6} parent=0 // pred_fallthru
    _
  // Predicated region
  $region6: #{categorical_dqn_forward.6} parent=0 // pred_check
    _
  $region7: #{categorical_dqn_forward.6} parent=0 // pred_check_branch
    %11 = sbr.rel (0) target = $region9
  $region8: #{categorical_dqn_forward.6} parent=0 // pred_region
    _
  $region9: #{categorical_dqn_forward.6} parent=0 // pred_fallthru
    _
  // Predicated region
  $region10: #{categorical_dqn_forward.6} parent=0 // pred_check
    _
  $region11: #{categorical_dqn_forward.6} parent=0 // pred_check_branch
    %13 = sbr.rel (0) target = $region13
  $region12: #{categorical_dqn_forward.6} parent=0 // pred_region
    _
  $region13: #{categorical_dqn_forward.6} parent=0 // pred_fallthru
    _
  %v15 = vld [vmem:[%s0] sm:$0xff]
  %v16 = vld [vmem:[%s0 + $0x8] sm:$0xff]
  %v17 = vld [vmem:[%s0 + $0x10] sm:$0xf]
  %v18 = vld [vmem:[%s0 + $0x14] sm:$0xff]
  %v19 = vld [vmem:[%s0 + $0x1c] sm:$0xff]
  %v20 = vld [vmem:[%s0 + $0x24] sm:$0xf]
  %v21 = vld [vmem:[%s1] sm:$0xf]
  %v22 = vld [vmem:[%s1 + $0x4] sm:$0xf]
  %v23 = vld [vmem:[%s1 + $0x8] sm:$0xf]
  %v24 = vld [vmem:[%s1 + $0xc] sm:$0xf]
  %v25 = vld [vmem:[%s1 + $0x10] sm:$0xf]
  %v26 = vld [vmem:[%s1 + $0x14] sm:$0xf]
  %v27 = vld [vmem:[%s1 + $0x18] sm:$0xf]
  %v28 = vld [vmem:[%s1 + $0x1c] sm:$0xf]
  %v29 = vld [vmem:[%s1 + $0x20] sm:$0xf]
  %v30 = vld [vmem:[%s1 + $0x24] sm:$0xf]
  %v31 = vld [vmem:[%s1 + $0x28] sm:$0xf]
  %v32 = vld [vmem:[%s1 + $0x2c] sm:$0xf]
  %v33 = vld [vmem:[%s1 + $0x30] sm:$0xf]
  %v34 = vld [vmem:[%s1 + $0x34] sm:$0xf]
  %v35 = vld [vmem:[%s1 + $0x38] sm:$0xf]
  %v36 = vld [vmem:[%s1 + $0x3c] sm:$0xf]
  %v37 = vld [vmem:[%s1 + $0x40] sm:$0xf]
  %v38 = vld [vmem:[%s1 + $0x44] sm:$0xf]
  %v39 = vld [vmem:[%s1 + $0x48] sm:$0xf]
  %v40 = vld [vmem:[%s1 + $0x4c] sm:$0xf]
  %v41 = vld [vmem:[%s1 + $0x50] sm:$0xf]
  %v42 = vld [vmem:[%s1 + $0x54] sm:$0xf]
  %v43 = vld [vmem:[%s1 + $0x58] sm:$0xf]
  %v44 = vld [vmem:[%s1 + $0x5c] sm:$0xf]
  %v45 = vld [vmem:[%s1 + $0x60] sm:$0xf]
  %v46 = vld [vmem:[%s1 + $0x64] sm:$0xf]
  %v47 = vld [vmem:[%s1 + $0x68] sm:$0xf]
  %v48 = vld [vmem:[%s1 + $0x6c] sm:$0xf]
  %v49 = vld [vmem:[%s1 + $0x70] sm:$0xf]
  %v50 = vld [vmem:[%s1 + $0x74] sm:$0xf]
  %v51 = vld [vmem:[%s1 + $0x78] sm:$0xf]
  %v52 = vld [vmem:[%s1 + $0x7c] sm:$0xf]
  %v53 = vld [vmem:[%s1 + $0x80] sm:$0xf]
  %v54 = vld [vmem:[%s1 + $0x84] sm:$0xf]
  %v55 = vld [vmem:[%s1 + $0x88] sm:$0xf]
  %v56 = vld [vmem:[%s1 + $0x8c] sm:$0xf]
  %v57 = vld [vmem:[%s1 + $0x90] sm:$0xf]
  %v58 = vld [vmem:[%s1 + $0x94] sm:$0xf]
  %v59 = vld [vmem:[%s1 + $0x98] sm:$0xf]
  %v60 = vld [vmem:[%s1 + $0x9c] sm:$0xf]
  %v61 = vld [vmem:[%s1 + $0xa0] sm:$0xf]
  %v62 = vld [vmem:[%s1 + $0xa4] sm:$0xf]
  %v63 = vld [vmem:[%s1 + $0xa8] sm:$0xf]
  %v64 = vld [vmem:[%s1 + $0xac] sm:$0xf]
  %v65 = vld [vmem:[%s1 + $0xb0] sm:$0xf]
  %v66 = vld [vmem:[%s1 + $0xb4] sm:$0xf]
  %v67 = vld [vmem:[%s1 + $0xb8] sm:$0xf]
  %v68 = vld [vmem:[%s1 + $0xbc] sm:$0xf]
  %v69 = vld [vmem:[%s1 + $0xc0] sm:$0xf]
  %v70 = vld [vmem:[%s1 + $0xc4] sm:$0xf]
  %v71 = vld [vmem:[%s1 + $0xc8] sm:$0xf]
  %v72 = vld [vmem:[%s1 + $0xcc] sm:$0xf]
  %v73 = vld [vmem:[%s1 + $0xd0] sm:$0xf]
  %v74 = vld [vmem:[%s1 + $0xd4] sm:$0xf]
  %v75 = vld [vmem:[%s1 + $0xd8] sm:$0xf]
  %v76 = vld [vmem:[%s1 + $0xdc] sm:$0xf]
  %v77 = vld [vmem:[%s1 + $0xe0] sm:$0xf]
  %v78 = vld [vmem:[%s1 + $0xe4] sm:$0xf]
  %v79 = vld [vmem:[%s1 + $0xe8] sm:$0xf]
  %v80 = vld [vmem:[%s1 + $0xec] sm:$0xf]
  %v81 = vld [vmem:[%s1 + $0xf0] sm:$0xf]
  %v82 = vld [vmem:[%s1 + $0xf4] sm:$0xf]
  %v83 = vld [vmem:[%s1 + $0xf8] sm:$0xf]
  %v84 = vld [vmem:[%s1 + $0xfc] sm:$0xf]
  %v85 = vld [vmem:[%s1 + $0x100] sm:$0xf]
  %v86 = vld [vmem:[%s1 + $0x104] sm:$0xf]
  %v87 = vld [vmem:[%s1 + $0x108] sm:$0xf]
  %v88 = vld [vmem:[%s1 + $0x10c] sm:$0xf]
  %v89 = vld [vmem:[%s1 + $0x110] sm:$0xf]
  %v90 = vld [vmem:[%s1 + $0x114] sm:$0xf]
  %v91 = vld [vmem:[%s1 + $0x118] sm:$0xf]
  %v92 = vld [vmem:[%s1 + $0x11c] sm:$0xf]
  %v93 = vld [vmem:[%s1 + $0x120] sm:$0xf]
  %v94 = vld [vmem:[%s1 + $0x124] sm:$0xf]
  %v95 = vld [vmem:[%s1 + $0x128] sm:$0xf]
  %v96 = vld [vmem:[%s1 + $0x12c] sm:$0xf]
  %v97 = vld [vmem:[%s1 + $0x130] sm:$0xf]
  %v98 = vld [vmem:[%s1 + $0x134] sm:$0xf]
  %v99 = vld [vmem:[%s1 + $0x138] sm:$0xf]
  %v100 = vld [vmem:[%s1 + $0x13c] sm:$0xf]
  %v101 = vld [vmem:[%s2] sm:$0x1]
  %v103 = vlaneseq
  %v104 = vshrl.u32 %v103, 7
  %v105 = vsub.s32 0, %v104
  %v106 = vrot.slane %v101, %v105
  %v114 = vunpack.c.l.b16 %v15
  %v115 = vunpack.c.h.b16 %v15
  %v116 = vunpack.c.l.b16 %v16
  %v117 = vunpack.c.h.b16 %v16
  %v118 = vunpack.c.l.b16 %v17
  %v119 = vunpack.c.l.b16 %v18
  %v120 = vunpack.c.h.b16 %v18
  %v121 = vunpack.c.l.b16 %v19
  %v122 = vunpack.c.h.b16 %v19
  %v123 = vunpack.c.l.b16 %v20
  %v124 = vpack.c.b16 %v119, %v114
  %v125 = vpack.c.b16 %v120, %v115
  %v126 = vpack.c.b16 %v121, %v116
  %v127 = vpack.c.b16 %v122, %v117
  %v128 = vpack.c.b16 %v123, %v118
  %v214 = vunpack.c.l.b16 %v21
  %v215 = vunpack.c.l.b16 %v22
  %v216 = vunpack.c.l.b16 %v23
  %v217 = vunpack.c.l.b16 %v24
  %v218 = vunpack.c.l.b16 %v25
  %v219 = vunpack.c.l.b16 %v26
  %v220 = vunpack.c.l.b16 %v27
  %v221 = vunpack.c.l.b16 %v28
  %v222 = vunpack.c.l.b16 %v29
  %v223 = vunpack.c.l.b16 %v30
  %v224 = vunpack.c.l.b16 %v31
  %v225 = vunpack.c.l.b16 %v32
  %v226 = vunpack.c.l.b16 %v33
  %v227 = vunpack.c.l.b16 %v34
  %v228 = vunpack.c.l.b16 %v35
  %v229 = vunpack.c.l.b16 %v36
  %v230 = vunpack.c.l.b16 %v37
  %v231 = vunpack.c.l.b16 %v38
  %v232 = vunpack.c.l.b16 %v39
  %v233 = vunpack.c.l.b16 %v40
  %v234 = vunpack.c.l.b16 %v41
  %v235 = vunpack.c.l.b16 %v42
  %v236 = vunpack.c.l.b16 %v43
  %v237 = vunpack.c.l.b16 %v44
  %v238 = vunpack.c.l.b16 %v45
  %v239 = vunpack.c.l.b16 %v46
  %v240 = vunpack.c.l.b16 %v47
  %v241 = vunpack.c.l.b16 %v48
  %v242 = vunpack.c.l.b16 %v49
  %v243 = vunpack.c.l.b16 %v50
  %v244 = vunpack.c.l.b16 %v51
  %v245 = vunpack.c.l.b16 %v52
  %v246 = vunpack.c.l.b16 %v53
  %v247 = vunpack.c.l.b16 %v54
  %v248 = vunpack.c.l.b16 %v55
  %v249 = vunpack.c.l.b16 %v56
  %v250 = vunpack.c.l.b16 %v57
  %v251 = vunpack.c.l.b16 %v58
  %v252 = vunpack.c.l.b16 %v59
  %v253 = vunpack.c.l.b16 %v60
  %v254 = vunpack.c.l.b16 %v61
  %v255 = vunpack.c.l.b16 %v62
  %v256 = vunpack.c.l.b16 %v63
  %v257 = vunpack.c.l.b16 %v64
  %v258 = vunpack.c.l.b16 %v65
  %v259 = vunpack.c.l.b16 %v66
  %v260 = vunpack.c.l.b16 %v67
  %v261 = vunpack.c.l.b16 %v68
  %v262 = vunpack.c.l.b16 %v69
  %v263 = vunpack.c.l.b16 %v70
  %v264 = vunpack.c.l.b16 %v71
  %v265 = vunpack.c.l.b16 %v72
  %v266 = vunpack.c.l.b16 %v73
  %v267 = vunpack.c.l.b16 %v74
  %v268 = vunpack.c.l.b16 %v75
  %v269 = vunpack.c.l.b16 %v76
  %v270 = vunpack.c.l.b16 %v77
  %v271 = vunpack.c.l.b16 %v78
  %v272 = vunpack.c.l.b16 %v79
  %v273 = vunpack.c.l.b16 %v80
  %v274 = vunpack.c.l.b16 %v81
  %v275 = vunpack.c.l.b16 %v82
  %v276 = vunpack.c.l.b16 %v83
  %v277 = vunpack.c.l.b16 %v84
  %v278 = vunpack.c.l.b16 %v85
  %v279 = vunpack.c.l.b16 %v86
  %v280 = vunpack.c.l.b16 %v87
  %v281 = vunpack.c.l.b16 %v88
  %v282 = vunpack.c.l.b16 %v89
  %v283 = vunpack.c.l.b16 %v90
  %v284 = vunpack.c.l.b16 %v91
  %v285 = vunpack.c.l.b16 %v92
  %v286 = vunpack.c.l.b16 %v93
  %v287 = vunpack.c.l.b16 %v94
  %v288 = vunpack.c.l.b16 %v95
  %v289 = vunpack.c.l.b16 %v96
  %v290 = vunpack.c.l.b16 %v97
  %v291 = vunpack.c.l.b16 %v98
  %v292 = vunpack.c.l.b16 %v99
  %v293 = vunpack.c.l.b16 %v100
  %v294 = vpack.c.b16 %v215, %v214
  %v295 = vpack.c.b16 %v217, %v216
  %v296 = vpack.c.b16 %v219, %v218
  %v297 = vpack.c.b16 %v221, %v220
  %v298 = vpack.c.b16 %v223, %v222
  %v299 = vpack.c.b16 %v225, %v224
  %v300 = vpack.c.b16 %v227, %v226
  %v301 = vpack.c.b16 %v229, %v228
  %v302 = vpack.c.b16 %v231, %v230
  %v303 = vpack.c.b16 %v233, %v232
  %v304 = vpack.c.b16 %v235, %v234
  %v305 = vpack.c.b16 %v237, %v236
  %v306 = vpack.c.b16 %v239, %v238
  %v307 = vpack.c.b16 %v241, %v240
  %v308 = vpack.c.b16 %v243, %v242
  %v309 = vpack.c.b16 %v245, %v244
  %v310 = vpack.c.b16 %v247, %v246
  %v311 = vpack.c.b16 %v249, %v248
  %v312 = vpack.c.b16 %v251, %v250
  %v313 = vpack.c.b16 %v253, %v252
  %v314 = vpack.c.b16 %v255, %v254
  %v315 = vpack.c.b16 %v257, %v256
  %v316 = vpack.c.b16 %v259, %v258
  %v317 = vpack.c.b16 %v261, %v260
  %v318 = vpack.c.b16 %v263, %v262
  %v319 = vpack.c.b16 %v265, %v264
  %v320 = vpack.c.b16 %v267, %v266
  %v321 = vpack.c.b16 %v269, %v268
  %v322 = vpack.c.b16 %v271, %v270
  %v323 = vpack.c.b16 %v273, %v272
  %v324 = vpack.c.b16 %v275, %v274
  %v325 = vpack.c.b16 %v277, %v276
  %v326 = vpack.c.b16 %v279, %v278
  %v327 = vpack.c.b16 %v281, %v280
  %v328 = vpack.c.b16 %v283, %v282
  %v329 = vpack.c.b16 %v285, %v284
  %v330 = vpack.c.b16 %v287, %v286
  %v331 = vpack.c.b16 %v289, %v288
  %v332 = vpack.c.b16 %v291, %v290
  %v333 = vpack.c.b16 %v293, %v292
  %374 = vmatprep.subr.bf16.mxu0 0
  %375 = vmatpush1.bf16.msra.mxu0 %v294
  %376 = vmatprep.subr.bf16.mxu0 0
  %377 = vmatpush1.bf16.msra.mxu0 %v295
  %378 = vmatprep.subr.bf16.mxu0 0
  %379 = vmatpush1.bf16.msra.mxu0 %v296
  %380 = vmatprep.subr.bf16.mxu0 0
  %381 = vmatpush1.bf16.msra.mxu0 %v297
  %382 = vmatprep.subr.bf16.mxu0 0
  %383 = vmatpush1.bf16.msra.mxu0 %v298
  %384 = vmatprep.subr.bf16.mxu0 0
  %385 = vmatpush1.bf16.msra.mxu0 %v299
  %386 = vmatprep.subr.bf16.mxu0 0
  %387 = vmatpush1.bf16.msra.mxu0 %v300
  %388 = vmatprep.subr.bf16.mxu0 0
  %389 = vmatpush1.bf16.msra.mxu0 %v301
  %390 = vmatprep.subr.bf16.mxu0 0
  %391 = vmatpush1.bf16.msra.mxu0 %v302
  %392 = vmatprep.subr.bf16.mxu0 0
  %393 = vmatpush1.bf16.msra.mxu0 %v303
  %394 = vmatprep.subr.bf16.mxu0 0
  %395 = vmatpush1.bf16.msra.mxu0 %v304
  %396 = vmatprep.subr.bf16.mxu0 0
  %397 = vmatpush1.bf16.msra.mxu0 %v305
  %398 = vmatprep.subr.bf16.mxu0 0
  %399 = vmatpush1.bf16.msra.mxu0 %v306
  %400 = vmatprep.subr.bf16.mxu0 0
  %401 = vmatpush1.bf16.msra.mxu0 %v307
  %402 = vmatprep.subr.bf16.mxu0 0
  %403 = vmatpush1.bf16.msra.mxu0 %v308
  %404 = vmatprep.subr.bf16.mxu0 0
  %405 = vmatpush1.bf16.msra.mxu0 %v309
  %406 = vmatprep.mubr.bf16.mxu0 %v125
  %407 = vmatmul.mubr.bf16.gmra.mrb[0].mxu0 %v124
  %v408 = vpop.f32.mrb[0].mxu0
  %v409 = vadd.f32 %v106, %v408
  %v410 = vpop.f32.mrb[0].mxu0
  %v411 = vpop.f32.mrb[0].mxu0
  %v412 = vadd.f32 %v106, %v411
  %v413 = vpop.f32.mrb[0].mxu0
  %414 = vdwg.mxu0
  %415 = vmatprep.subr.bf16.mxu0 0
  %416 = vmatpush1.bf16.msra.mxu0 %v310
  %417 = vmatprep.subr.bf16.mxu0 0
  %418 = vmatpush1.bf16.msra.mxu0 %v311
  %419 = vmatprep.subr.bf16.mxu0 0
  %420 = vmatpush1.bf16.msra.mxu0 %v312
  %421 = vmatprep.subr.bf16.mxu0 0
  %422 = vmatpush1.bf16.msra.mxu0 %v313
  %423 = vmatprep.subr.bf16.mxu0 0
  %424 = vmatpush1.bf16.msra.mxu0 %v314
  %425 = vmatprep.subr.bf16.mxu0 0
  %426 = vmatpush1.bf16.msra.mxu0 %v315
  %427 = vmatprep.subr.bf16.mxu0 0
  %428 = vmatpush1.bf16.msra.mxu0 %v316
  %429 = vmatprep.subr.bf16.mxu0 0
  %430 = vmatpush1.bf16.msra.mxu0 %v317
  %431 = vmatprep.subr.bf16.mxu0 0
  %432 = vmatpush1.bf16.msra.mxu0 %v318
  %433 = vmatprep.subr.bf16.mxu0 0
  %434 = vmatpush1.bf16.msra.mxu0 %v319
  %435 = vmatprep.subr.bf16.mxu0 0
  %436 = vmatpush1.bf16.msra.mxu0 %v320
  %437 = vmatprep.subr.bf16.mxu0 0
  %438 = vmatpush1.bf16.msra.mxu0 %v321
  %439 = vmatprep.subr.bf16.mxu0 0
  %440 = vmatpush1.bf16.msra.mxu0 %v322
  %441 = vmatprep.subr.bf16.mxu0 0
  %442 = vmatpush1.bf16.msra.mxu0 %v323
  %443 = vmatprep.subr.bf16.mxu0 0
  %444 = vmatpush1.bf16.msra.mxu0 %v324
  %445 = vmatprep.subr.bf16.mxu0 0
  %446 = vmatpush1.bf16.msra.mxu0 %v325
  %447 = vmatprep.mubr.bf16.mxu0 %v127
  %448 = vmatmul.mubr.bf16.gmra.mrb[0].mxu0 %v126
  %v449 = vpop.f32.mrb[0].mxu0
  %v450 = vadd.f32 %v409, %v449
  %v451 = vpop.f32.mrb[0].mxu0
  %v452 = vpop.f32.mrb[0].mxu0
  %v453 = vadd.f32 %v412, %v452
  %v454 = vpop.f32.mrb[0].mxu0
  %455 = vdwg.mxu0
  %456 = vmatprep.subr.bf16.mxu0 0
  %457 = vmatpush1.bf16.msra.mxu0 %v326
  %458 = vmatprep.subr.bf16.mxu0 0
  %459 = vmatpush1.bf16.msra.mxu0 %v327
  %460 = vmatprep.subr.bf16.mxu0 0
  %461 = vmatpush1.bf16.msra.mxu0 %v328
  %462 = vmatprep.subr.bf16.mxu0 0
  %463 = vmatpush1.bf16.msra.mxu0 %v329
  %464 = vmatprep.subr.bf16.mxu0 0
  %465 = vmatpush1.bf16.msra.mxu0 %v330
  %466 = vmatprep.subr.bf16.mxu0 0
  %467 = vmatpush1.bf16.msra.mxu0 %v331
  %468 = vmatprep.subr.bf16.mxu0 0
  %469 = vmatpush1.bf16.msra.mxu0 %v332
  %470 = vmatprep.subr.bf16.mxu0 0
  %471 = vmatpush1.bf16.msra.mxu0 %v333
  %472 = vmatprep.subr.bf16.mxu0 0
  %473 = vmatpush1.bf16.msra.mxu0 0
  %474 = vmatprep.subr.bf16.mxu0 0
  %475 = vmatpush1.bf16.msra.mxu0 0
  %476 = vmatprep.subr.bf16.mxu0 0
  %477 = vmatpush1.bf16.msra.mxu0 0
  %478 = vmatprep.subr.bf16.mxu0 0
  %479 = vmatpush1.bf16.msra.mxu0 0
  %480 = vmatprep.subr.bf16.mxu0 0
  %481 = vmatpush1.bf16.msra.mxu0 0
  %482 = vmatprep.subr.bf16.mxu0 0
  %483 = vmatpush1.bf16.msra.mxu0 0
  %484 = vmatprep.subr.bf16.mxu0 0
  %485 = vmatpush1.bf16.msra.mxu0 0
  %486 = vmatprep.subr.bf16.mxu0 0
  %487 = vmatpush1.bf16.msra.mxu0 0
  %488 = vmatprep.mubr.bf16.mxu0 0
  %489 = vmatmul.mubr.bf16.gmra.mrb[0].mxu0 %v128
  %v490 = vpop.f32.mrb[0].mxu0
  %v491 = vadd.f32 %v450, %v490
  %v492 = vpop.f32.mrb[0].mxu0
  %v493 = vpop.f32.mrb[0].mxu0
  %v494 = vadd.f32 %v453, %v493
  %v495 = vpop.f32.mrb[0].mxu0
  %496 = vdwg.mxu0
  %v497 = vmax.f32 %v491, 0.0
  %v498 = vmax.f32 %v494, 0.0
  %v499 = vpack.c.bf16 %v498, %v497
  %v501 = vunpack.c.l.b16 %v499
  %v502 = vunpack.c.h.b16 %v499
  %v503 = vpack.c.b16 %v501, %v501
  %v504 = vpack.c.b16 %v502, %v502
  %vm507 = vcmask 519168
  %508 = vst.msk [vmem:[%s3] sm:$0xf] %vm507, %v503
  %509 = vst.msk [vmem:[%s3 + $0x4] sm:$0xf] %vm507, %v504
  // Predicated region
  $region14: #{categorical_dqn_forward.6} parent=0 // pred_check
    _
  $region15: #{categorical_dqn_forward.6} parent=0 // pred_check_branch
    %511 = sbr.rel (0) target = $region17
  $region16: #{categorical_dqn_forward.6} parent=0 // pred_region
    _
  $region17: #{categorical_dqn_forward.6} parent=0 // pred_fallthru
    _
  // Predicated region
  $region18: #{categorical_dqn_forward.6} parent=0 // pred_check
    _
  $region19: #{categorical_dqn_forward.6} parent=0 // pred_check_branch
    %513 = sbr.rel (0) target = $region21
  $region20: #{categorical_dqn_forward.6} parent=0 // pred_region
    _
  $region21: #{categorical_dqn_forward.6} parent=0 // pred_fallthru
    _

// kernel: categorical_dqn_forward.7
$region0: #{categorical_dqn_forward.7}
  #allocation0 [shape = 'u32[]', space=smem, size = 0x4, offset = 0x4, fixed_abs, tag = 'smem constant byte address 0x4 - core index']
  #allocation1 [shape = 'u32[144,128]{1,0:T(1,128)}', space=vmem, size = 0x12000, scoped, tag = 'internal scratch']
  %s0 = inlined_call_operand.vmem [shape: bf16[16,128], index: 0, kind: input, shape index: {}]
  %s1 = inlined_call_operand.vmem [shape: bf16[128,512], index: 1, kind: input, shape index: {}]
  %s2 = inlined_call_operand.vmem [shape: f32[1,512], index: 2, kind: input, shape index: {}]
  %s3 = inlined_call_operand.vmem [shape: bf16[512,768], index: 3, kind: input, shape index: {}]
  %s4 = inlined_call_operand.vmem [shape: f32[1,768], index: 4, kind: input, shape index: {}]
  %s5 = inlined_call_operand.vmem [shape: f32[16,768], index: 5, kind: output, shape index: {}]
  %s6 = sld [smem:[#allocation0]]
  $region30: #{categorical_dqn_forward.7} parent=0
    _
  %s8 = ssub.s32 1, %s6
  %s9 = scalar_select 0, %s8, %s6
  // Predicated region
  $region2: #{categorical_dqn_forward.7} parent=0 // pred_check
    _
  $region3: #{categorical_dqn_forward.7} parent=0 // pred_check_branch
    %11 = sbr.rel (0) target = $region5
  $region4: #{categorical_dqn_forward.7} parent=0 // pred_region
    _
  $region5: #{categorical_dqn_forward.7} parent=0 // pred_fallthru
    _
  // Predicated region
  $region6: #{categorical_dqn_forward.7} parent=0 // pred_check
    _
  $region7: #{categorical_dqn_forward.7} parent=0 // pred_check_branch
    %13 = sbr.rel (0) target = $region9
  $region8: #{categorical_dqn_forward.7} parent=0 // pred_region
    _
  $region9: #{categorical_dqn_forward.7} parent=0 // pred_fallthru
    _
  // Predicated region
  $region10: #{categorical_dqn_forward.7} parent=0 // pred_check
    _
  $region11: #{categorical_dqn_forward.7} parent=0 // pred_check_branch
    %15 = sbr.rel (0) target = $region13
  $region12: #{categorical_dqn_forward.7} parent=0 // pred_region
    _
  $region13: #{categorical_dqn_forward.7} parent=0 // pred_fallthru
    _
  // Predicated region
  $region14: #{categorical_dqn_forward.7} parent=0 // pred_check
    _
  $region15: #{categorical_dqn_forward.7} parent=0 // pred_check_branch
    %17 = sbr.rel (0) target = $region17
  $region16: #{categorical_dqn_forward.7} parent=0 // pred_region
    _
  $region17: #{categorical_dqn_forward.7} parent=0 // pred_fallthru
    _
  // Predicated region
  $region18: #{categorical_dqn_forward.7} parent=0 // pred_check
    _
  $region19: #{categorical_dqn_forward.7} parent=0 // pred_check_branch
    %19 = sbr.rel (0) target = $region21
  $region20: #{categorical_dqn_forward.7} parent=0 // pred_region
    _
  $region21: #{categorical_dqn_forward.7} parent=0 // pred_fallthru
    _
  %v21 = vld [vmem:[%s0] sm:$0xf]
  %v22 = vld [vmem:[%s0 + $0x4] sm:$0xf]
  %v23 = vld [vmem:[%s1] sm:$0xff]
  %v24 = vld [vmem:[%s1 + $0x8] sm:$0xff]
  %v25 = vld [vmem:[%s1 + $0x10] sm:$0xff]
  %v26 = vld [vmem:[%s1 + $0x18] sm:$0xff]
  %v27 = vld [vmem:[%s1 + $0x20] sm:$0xff]
  %v28 = vld [vmem:[%s1 + $0x28] sm:$0xff]
  %v29 = vld [vmem:[%s1 + $0x30] sm:$0xff]
  %v30 = vld [vmem:[%s1 + $0x38] sm:$0xff]
  %v31 = vld [vmem:[%s1 + $0x40] sm:$0xff]
  %v32 = vld [vmem:[%s1 + $0x48] sm:$0xff]
  %v33 = vld [vmem:[%s1 + $0x50] sm:$0xff]
  %v34 = vld [vmem:[%s1 + $0x58] sm:$0xff]
  %v35 = vld [vmem:[%s1 + $0x60] sm:$0xff]
  %v36 = vld [vmem:[%s1 + $0x68] sm:$0xff]
  %v37 = vld [vmem:[%s1 + $0x70] sm:$0xff]
  %v38 = vld [vmem:[%s1 + $0x78] sm:$0xff]
  %v39 = vld [vmem:[%s1 + $0x80] sm:$0xff]
  %v40 = vld [vmem:[%s1 + $0x88] sm:$0xff]
  %v41 = vld [vmem:[%s1 + $0x90] sm:$0xff]
  %v42 = vld [vmem:[%s1 + $0x98] sm:$0xff]
  %v43 = vld [vmem:[%s1 + $0xa0] sm:$0xff]
  %v44 = vld [vmem:[%s1 + $0xa8] sm:$0xff]
  %v45 = vld [vmem:[%s1 + $0xb0] sm:$0xff]
  %v46 = vld [vmem:[%s1 + $0xb8] sm:$0xff]
  %v47 = vld [vmem:[%s1 + $0xc0] sm:$0xff]
  %v48 = vld [vmem:[%s1 + $0xc8] sm:$0xff]
  %v49 = vld [vmem:[%s1 + $0xd0] sm:$0xff]
  %v50 = vld [vmem:[%s1 + $0xd8] sm:$0xff]
  %v51 = vld [vmem:[%s1 + $0xe0] sm:$0xff]
  %v52 = vld [vmem:[%s1 + $0xe8] sm:$0xff]
  %v53 = vld [vmem:[%s1 + $0xf0] sm:$0xff]
  %v54 = vld [vmem:[%s1 + $0xf8] sm:$0xff]
  %v55 = vld [vmem:[%s2] sm:$0xf]
  %v57 = vlaneseq
  %v58 = vshrl.u32 %v57, 7
  %v59 = vsub.s32 0, %v58
  %v60 = vrot.slane %v55, %v59
  %v61 = vlaneseq
  %v62 = vshrl.u32 %v61, 7
  %v63 = vsub.s32 1, %v62
  %v64 = vrot.slane %v55, %v63
  %v65 = vlaneseq
  %v66 = vshrl.u32 %v65, 7
  %v67 = vsub.s32 2, %v66
  %v68 = vrot.slane %v55, %v67
  %v69 = vlaneseq
  %v70 = vshrl.u32 %v69, 7
  %v71 = vsub.s32 3, %v70
  %v72 = vrot.slane %v55, %v71
  %v79 = vunpack.c.l.b16 %v21
  %v80 = vunpack.c.l.b16 %v22
  %v81 = vpack.c.b16 %v80, %v79
  %v115 = vunpack.c.l.b16 %v23
  %v116 = vunpack.c.h.b16 %v23
  %v117 = vunpack.c.l.b16 %v24
  %v118 = vunpack.c.h.b16 %v24
  %v119 = vunpack.c.l.b16 %v25
  %v120 = vunpack.c.h.b16 %v25
  %v121 = vunpack.c.l.b16 %v26
  %v122 = vunpack.c.h.b16 %v26
  %v123 = vunpack.c.l.b16 %v27
  %v124 = vunpack.c.h.b16 %v27
  %v125 = vunpack.c.l.b16 %v28
  %v126 = vunpack.c.h.b16 %v28
  %v127 = vunpack.c.l.b16 %v29
  %v128 = vunpack.c.h.b16 %v29
  %v129 = vunpack.c.l.b16 %v30
  %v130 = vunpack.c.h.b16 %v30
  %v131 = vunpack.c.l.b16 %v31
  %v132 = vunpack.c.h.b16 %v31
  %v133 = vunpack.c.l.b16 %v32
  %v134 = vunpack.c.h.b16 %v32
  %v135 = vunpack.c.l.b16 %v33
  %v136 = vunpack.c.h.b16 %v33
  %v137 = vunpack.c.l.b16 %v34
  %v138 = vunpack.c.h.b16 %v34
  %v139 = vunpack.c.l.b16 %v35
  %v140 = vunpack.c.h.b16 %v35
  %v141 = vunpack.c.l.b16 %v36
  %v142 = vunpack.c.h.b16 %v36
  %v143 = vunpack.c.l.b16 %v37
  %v144 = vunpack.c.h.b16 %v37
  %v145 = vunpack.c.l.b16 %v38
  %v146 = vunpack.c.h.b16 %v38
  %v147 = vunpack.c.l.b16 %v39
  %v148 = vunpack.c.h.b16 %v39
  %v149 = vunpack.c.l.b16 %v40
  %v150 = vunpack.c.h.b16 %v40
  %v151 = vunpack.c.l.b16 %v41
  %v152 = vunpack.c.h.b16 %v41
  %v153 = vunpack.c.l.b16 %v42
  %v154 = vunpack.c.h.b16 %v42
  %v155 = vunpack.c.l.b16 %v43
  %v156 = vunpack.c.h.b16 %v43
  %v157 = vunpack.c.l.b16 %v44
  %v158 = vunpack.c.h.b16 %v44
  %v159 = vunpack.c.l.b16 %v45
  %v160 = vunpack.c.h.b16 %v45
  %v161 = vunpack.c.l.b16 %v46
  %v162 = vunpack.c.h.b16 %v46
  %v163 = vunpack.c.l.b16 %v47
  %v164 = vunpack.c.h.b16 %v47
  %v165 = vunpack.c.l.b16 %v48
  %v166 = vunpack.c.h.b16 %v48
  %v167 = vunpack.c.l.b16 %v49
  %v168 = vunpack.c.h.b16 %v49
  %v169 = vunpack.c.l.b16 %v50
  %v170 = vunpack.c.h.b16 %v50
  %v171 = vunpack.c.l.b16 %v51
  %v172 = vunpack.c.h.b16 %v51
  %v173 = vunpack.c.l.b16 %v52
  %v174 = vunpack.c.h.b16 %v52
  %v175 = vunpack.c.l.b16 %v53
  %v176 = vunpack.c.h.b16 %v53
  %v177 = vunpack.c.l.b16 %v54
  %v178 = vunpack.c.h.b16 %v54
  %v179 = vpack.c.b16 %v119, %v115
  %v180 = vpack.c.b16 %v120, %v116
  %v181 = vpack.c.b16 %v121, %v117
  %v182 = vpack.c.b16 %v122, %v118
  %v183 = vpack.c.b16 %v127, %v123
  %v184 = vpack.c.b16 %v128, %v124
  %v185 = vpack.c.b16 %v129, %v125
  %v186 = vpack.c.b16 %v130, %v126
  %v187 = vpack.c.b16 %v135, %v131
  %v188 = vpack.c.b16 %v136, %v132
  %v189 = vpack.c.b16 %v137, %v133
  %v190 = vpack.c.b16 %v138, %v134
  %v191 = vpack.c.b16 %v143, %v139
  %v192 = vpack.c.b16 %v144, %v140
  %v193 = vpack.c.b16 %v145, %v141
  %v194 = vpack.c.b16 %v146, %v142
  %v195 = vpack.c.b16 %v151, %v147
  %v196 = vpack.c.b16 %v152, %v148
  %v197 = vpack.c.b16 %v153, %v149
  %v198 = vpack.c.b16 %v154, %v150
  %v199 = vpack.c.b16 %v159, %v155
  %v200 = vpack.c.b16 %v160, %v156
  %v201 = vpack.c.b16 %v161, %v157
  %v202 = vpack.c.b16 %v162, %v158
  %v203 = vpack.c.b16 %v167, %v163
  %v204 = vpack.c.b16 %v168, %v164
  %v205 = vpack.c.b16 %v169, %v165
  %v206 = vpack.c.b16 %v170, %v166
  %v207 = vpack.c.b16 %v175, %v171
  %v208 = vpack.c.b16 %v176, %v172
  %v209 = vpack.c.b16 %v177, %v173
  %v210 = vpack.c.b16 %v178, %v174
  %243 = vmatprep.subr.bf16.mxu0 %v180
  %244 = vmatpush1.bf16.msra.mxu0 %v179
  %245 = vmatprep.subr.bf16.mxu0 %v184
  %246 = vmatpush1.bf16.msra.mxu0 %v183
  %247 = vmatprep.subr.bf16.mxu0 %v188
  %248 = vmatpush1.bf16.msra.mxu0 %v187
  %249 = vmatprep.subr.bf16.mxu0 %v192
  %250 = vmatpush1.bf16.msra.mxu0 %v191
  %251 = vmatprep.subr.bf16.mxu0 %v196
  %252 = vmatpush1.bf16.msra.mxu0 %v195
  %253 = vmatprep.subr.bf16.mxu0 %v200
  %254 = vmatpush1.bf16.msra.mxu0 %v199
  %255 = vmatprep.subr.bf16.mxu0 %v204
  %256 = vmatpush1.bf16.msra.mxu0 %v203
  %257 = vmatprep.subr.bf16.mxu0 %v208
  %258 = vmatpush1.bf16.msra.mxu0 %v207
  %259 = vmatprep.subr.bf16.mxu0 0
  %260 = vmatpush1.bf16.msra.mxu0 0
  %261 = vmatprep.subr.bf16.mxu0 0
  %262 = vmatpush1.bf16.msra.mxu0 0
  %263 = vmatprep.subr.bf16.mxu0 0
  %264 = vmatpush1.bf16.msra.mxu0 0
  %265 = vmatprep.subr.bf16.mxu0 0
  %266 = vmatpush1.bf16.msra.mxu0 0
  %267 = vmatprep.subr.bf16.mxu0 0
  %268 = vmatpush1.bf16.msra.mxu0 0
  %269 = vmatprep.subr.bf16.mxu0 0
  %270 = vmatpush1.bf16.msra.mxu0 0
  %271 = vmatprep.subr.bf16.mxu0 0
  %272 = vmatpush1.bf16.msra.mxu0 0
  %273 = vmatprep.subr.bf16.mxu0 0
  %274 = vmatpush1.bf16.msra.mxu0 0
  %275 = vmatprep.mubr.bf16.mxu0 0
  %276 = vmatmul.mubr.bf16.gmra.mrb[0].mxu0 %v81
  %v277 = vpop.f32.mrb[0].mxu0
  %v278 = vadd.f32 %v60, %v277
  %v279 = vpop.f32.mrb[0].mxu0
  %v280 = vadd.f32 %v64, %v279
  %v281 = vpop.f32.mrb[0].mxu0
  %v282 = vadd.f32 %v60, %v281
  %v283 = vpop.f32.mrb[0].mxu0
  %v284 = vadd.f32 %v64, %v283
  %285 = vdwg.mxu0
  %286 = vmatprep.subr.bf16.mxu0 %v182
  %287 = vmatpush1.bf16.msra.mxu0 %v181
  %288 = vmatprep.subr.bf16.mxu0 %v186
  %289 = vmatpush1.bf16.msra.mxu0 %v185
  %290 = vmatprep.subr.bf16.mxu0 %v190
  %291 = vmatpush1.bf16.msra.mxu0 %v189
  %292 = vmatprep.subr.bf16.mxu0 %v194
  %293 = vmatpush1.bf16.msra.mxu0 %v193
  %294 = vmatprep.subr.bf16.mxu0 %v198
  %295 = vmatpush1.bf16.msra.mxu0 %v197
  %296 = vmatprep.subr.bf16.mxu0 %v202
  %297 = vmatpush1.bf16.msra.mxu0 %v201
  %298 = vmatprep.subr.bf16.mxu0 %v206
  %299 = vmatpush1.bf16.msra.mxu0 %v205
  %300 = vmatprep.subr.bf16.mxu0 %v210
  %301 = vmatpush1.bf16.msra.mxu0 %v209
  %302 = vmatprep.subr.bf16.mxu0 0
  %303 = vmatpush1.bf16.msra.mxu0 0
  %304 = vmatprep.subr.bf16.mxu0 0
  %305 = vmatpush1.bf16.msra.mxu0 0
  %306 = vmatprep.subr.bf16.mxu0 0
  %307 = vmatpush1.bf16.msra.mxu0 0
  %308 = vmatprep.subr.bf16.mxu0 0
  %309 = vmatpush1.bf16.msra.mxu0 0
  %310 = vmatprep.subr.bf16.mxu0 0
  %311 = vmatpush1.bf16.msra.mxu0 0
  %312 = vmatprep.subr.bf16.mxu0 0
  %313 = vmatpush1.bf16.msra.mxu0 0
  %314 = vmatprep.subr.bf16.mxu0 0
  %315 = vmatpush1.bf16.msra.mxu0 0
  %316 = vmatprep.subr.bf16.mxu0 0
  %317 = vmatpush1.bf16.msra.mxu0 0
  %318 = vmatprep.mubr.bf16.mxu0 0
  %319 = vmatmul.mubr.bf16.gmra.mrb[0].mxu0 %v81
  %v320 = vpop.f32.mrb[0].mxu0
  %v321 = vadd.f32 %v68, %v320
  %v322 = vpop.f32.mrb[0].mxu0
  %v323 = vadd.f32 %v72, %v322
  %v324 = vpop.f32.mrb[0].mxu0
  %v325 = vadd.f32 %v68, %v324
  %v326 = vpop.f32.mrb[0].mxu0
  %v327 = vadd.f32 %v72, %v326
  %328 = vdwg.mxu0
  %v329 = vmax.f32 %v278, 0.0
  %v330 = vmax.f32 %v280, 0.0
  %v331 = vmax.f32 %v321, 0.0
  %v332 = vmax.f32 %v323, 0.0
  %v333 = vmax.f32 %v282, 0.0
  %v334 = vmax.f32 %v284, 0.0
  %v335 = vmax.f32 %v325, 0.0
  %v336 = vmax.f32 %v327, 0.0
  %v337 = vpack.c.bf16 %v333, %v329
  %v338 = vpack.c.bf16 %v334, %v330
  %v339 = vpack.c.bf16 %v335, %v331
  %v340 = vpack.c.bf16 %v336, %v332
  %v341 = vld [vmem:[%s3] sm:$0xff]
  %v342 = vld [vmem:[%s3 + $0x8] sm:$0xff]
  %v343 = vld [vmem:[%s3 + $0x10] sm:$0xff]
  %v344 = vld [vmem:[%s3 + $0x18] sm:$0xff]
  %v345 = vld [vmem:[%s3 + $0x20] sm:$0xff]
  %v346 = vld [vmem:[%s3 + $0x28] sm:$0xff]
  %v347 = vld [vmem:[%s3 + $0x30] sm:$0xff]
  %v348 = vld [vmem:[%s3 + $0x38] sm:$0xff]
  %v349 = vld [vmem:[%s3 + $0x40] sm:$0xff]
  %v350 = vld [vmem:[%s3 + $0x48] sm:$0xff]
  %v351 = vld [vmem:[%s3 + $0x50] sm:$0xff]
  %v352 = vld [vmem:[%s3 + $0x58] sm:$0xff]
  %v353 = vld [vmem:[%s3 + $0x60] sm:$0xff]
  %v354 = vld [vmem:[%s3 + $0x68] sm:$0xff]
  %v355 = vld [vmem:[%s3 + $0x70] sm:$0xff]
  %v356 = vld [vmem:[%s3 + $0x78] sm:$0xff]
  %v357 = vld [vmem:[%s3 + $0x80] sm:$0xff]
  %v358 = vld [vmem:[%s3 + $0x88] sm:$0xff]
  %v359 = vld [vmem:[%s3 + $0x90] sm:$0xff]
  %v360 = vld [vmem:[%s3 + $0x98] sm:$0xff]
  %v361 = vld [vmem:[%s3 + $0xa0] sm:$0xff]
  %v362 = vld [vmem:[%s3 + $0xa8] sm:$0xff]
  %v363 = vld [vmem:[%s3 + $0xb0] sm:$0xff]
  %v364 = vld [vmem:[%s3 + $0xb8] sm:$0xff]
  %v365 = vld [vmem:[%s3 + $0xc0] sm:$0xff]
  %v366 = vld [vmem:[%s3 + $0xc8] sm:$0xff]
  %v367 = vld [vmem:[%s3 + $0xd0] sm:$0xff]
  %v368 = vld [vmem:[%s3 + $0xd8] sm:$0xff]
  %v369 = vld [vmem:[%s3 + $0xe0] sm:$0xff]
  %v370 = vld [vmem:[%s3 + $0xe8] sm:$0xff]
  %v371 = vld [vmem:[%s3 + $0xf0] sm:$0xff]
  %v372 = vld [vmem:[%s3 + $0xf8] sm:$0xff]
  %v373 = vld [vmem:[%s3 + $0x100] sm:$0xff]
  %v374 = vld [vmem:[%s3 + $0x108] sm:$0xff]
  %v375 = vld [vmem:[%s3 + $0x110] sm:$0xff]
  %v376 = vld [vmem:[%s3 + $0x118] sm:$0xff]
  %v377 = vld [vmem:[%s3 + $0x120] sm:$0xff]
  %v378 = vld [vmem:[%s3 + $0x128] sm:$0xff]
  %v379 = vld [vmem:[%s3 + $0x130] sm:$0xff]
  %v380 = vld [vmem:[%s3 + $0x138] sm:$0xff]
  %v381 = vld [vmem:[%s3 + $0x140] sm:$0xff]
  %v382 = vld [vmem:[%s3 + $0x148] sm:$0xff]
  %v383 = vld [vmem:[%s3 + $0x150] sm:$0xff]
  %v384 = vld [vmem:[%s3 + $0x158] sm:$0xff]
  %v385 = vld [vmem:[%s3 + $0x160] sm:$0xff]
  %v386 = vld [vmem:[%s3 + $0x168] sm:$0xff]
  %v387 = vld [vmem:[%s3 + $0x170] sm:$0xff]
  %v388 = vld [vmem:[%s3 + $0x178] sm:$0xff]
  %v389 = vld [vmem:[%s3 + $0x180] sm:$0xff]
  %v390 = vld [vmem:[%s3 + $0x188] sm:$0xff]
  %v391 = vld [vmem:[%s3 + $0x190] sm:$0xff]
  %v392 = vld [vmem:[%s3 + $0x198] sm:$0xff]
  %v393 = vld [vmem:[%s3 + $0x1a0] sm:$0xff]
  %v394 = vld [vmem:[%s3 + $0x1a8] sm:$0xff]
  %v395 = vld [vmem:[%s3 + $0x1b0] sm:$0xff]
  %v396 = vld [vmem:[%s3 + $0x1b8] sm:$0xff]
  %v397 = vld [vmem:[%s3 + $0x1c0] sm:$0xff]
  %v398 = vld [vmem:[%s3 + $0x1c8] sm:$0xff]
  %v399 = vld [vmem:[%s3 + $0x1d0] sm:$0xff]
  %v400 = vld [vmem:[%s3 + $0x1d8] sm:$0xff]
  %v401 = vld [vmem:[%s3 + $0x1e0] sm:$0xff]
  %v402 = vld [vmem:[%s3 + $0x1e8] sm:$0xff]
  %v403 = vld [vmem:[%s3 + $0x1f0] sm:$0xff]
  %v404 = vld [vmem:[%s3 + $0x1f8] sm:$0xff]
  %v405 = vld [vmem:[%s3 + $0x200] sm:$0xff]
  %v406 = vld [vmem:[%s3 + $0x208] sm:$0xff]
  %v407 = vld [vmem:[%s3 + $0x210] sm:$0xff]
  %v408 = vld [vmem:[%s3 + $0x218] sm:$0xff]
  %v409 = vld [vmem:[%s3 + $0x220] sm:$0xff]
  %v410 = vld [vmem:[%s3 + $0x228] sm:$0xff]
  %v411 = vld [vmem:[%s3 + $0x230] sm:$0xff]
  %v412 = vld [vmem:[%s3 + $0x238] sm:$0xff]
  %v413 = vld [vmem:[%s3 + $0x240] sm:$0xff]
  %v414 = vld [vmem:[%s3 + $0x248] sm:$0xff]
  %v415 = vld [vmem:[%s3 + $0x250] sm:$0xff]
  %v416 = vld [vmem:[%s3 + $0x258] sm:$0xff]
  %v417 = vld [vmem:[%s3 + $0x260] sm:$0xff]
  %v418 = vld [vmem:[%s3 + $0x268] sm:$0xff]
  %v419 = vld [vmem:[%s3 + $0x270] sm:$0xff]
  %v420 = vld [vmem:[%s3 + $0x278] sm:$0xff]
  %v421 = vld [vmem:[%s3 + $0x280] sm:$0xff]
  %v422 = vld [vmem:[%s3 + $0x288] sm:$0xff]
  %v423 = vld [vmem:[%s3 + $0x290] sm:$0xff]
  %v424 = vld [vmem:[%s3 + $0x298] sm:$0xff]
  %v425 = vld [vmem:[%s3 + $0x2a0] sm:$0xff]
  %v426 = vld [vmem:[%s3 + $0x2a8] sm:$0xff]
  %v427 = vld [vmem:[%s3 + $0x2b0] sm:$0xff]
  %v428 = vld [vmem:[%s3 + $0x2b8] sm:$0xff]
  %v429 = vld [vmem:[%s3 + $0x2c0] sm:$0xff]
  %v430 = vld [vmem:[%s3 + $0x2c8] sm:$0xff]
  %v431 = vld [vmem:[%s3 + $0x2d0] sm:$0xff]
  %v432 = vld [vmem:[%s3 + $0x2d8] sm:$0xff]
  %v433 = vld [vmem:[%s3 + $0x2e0] sm:$0xff]
  %v434 = vld [vmem:[%s3 + $0x2e8] sm:$0xff]
  %v435 = vld [vmem:[%s3 + $0x2f0] sm:$0xff]
  %v436 = vld [vmem:[%s3 + $0x2f8] sm:$0xff]
  %v437 = vld [vmem:[%s3 + $0x300] sm:$0xff]
  %v438 = vld [vmem:[%s3 + $0x308] sm:$0xff]
  %v439 = vld [vmem:[%s3 + $0x310] sm:$0xff]
  %v440 = vld [vmem:[%s3 + $0x318] sm:$0xff]
  %v441 = vld [vmem:[%s3 + $0x320] sm:$0xff]
  %v442 = vld [vmem:[%s3 + $0x328] sm:$0xff]
  %v443 = vld [vmem:[%s3 + $0x330] sm:$0xff]
  %v444 = vld [vmem:[%s3 + $0x338] sm:$0xff]
  %v445 = vld [vmem:[%s3 + $0x340] sm:$0xff]
  %v446 = vld [vmem:[%s3 + $0x348] sm:$0xff]
  %v447 = vld [vmem:[%s3 + $0x350] sm:$0xff]
  %v448 = vld [vmem:[%s3 + $0x358] sm:$0xff]
  %v449 = vld [vmem:[%s3 + $0x360] sm:$0xff]
  %v450 = vld [vmem:[%s3 + $0x368] sm:$0xff]
  %v451 = vld [vmem:[%s3 + $0x370] sm:$0xff]
  %v452 = vld [vmem:[%s3 + $0x378] sm:$0xff]
  %v453 = vld [vmem:[%s3 + $0x380] sm:$0xff]
  %v454 = vld [vmem:[%s3 + $0x388] sm:$0xff]
  %v455 = vld [vmem:[%s3 + $0x390] sm:$0xff]
  %v456 = vld [vmem:[%s3 + $0x398] sm:$0xff]
  %v457 = vld [vmem:[%s3 + $0x3a0] sm:$0xff]
  %v458 = vld [vmem:[%s3 + $0x3a8] sm:$0xff]
  %v459 = vld [vmem:[%s3 + $0x3b0] sm:$0xff]
  %v460 = vld [vmem:[%s3 + $0x3b8] sm:$0xff]
  %v461 = vld [vmem:[%s3 + $0x3c0] sm:$0xff]
  %v462 = vld [vmem:[%s3 + $0x3c8] sm:$0xff]
  %v463 = vld [vmem:[%s3 + $0x3d0] sm:$0xff]
  %v464 = vld [vmem:[%s3 + $0x3d8] sm:$0xff]
  %v465 = vld [vmem:[%s3 + $0x3e0] sm:$0xff]
  %v466 = vld [vmem:[%s3 + $0x3e8] sm:$0xff]
  %v467 = vld [vmem:[%s3 + $0x3f0] sm:$0xff]
  %v468 = vld [vmem:[%s3 + $0x3f8] sm:$0xff]
  %v469 = vld [vmem:[%s3 + $0x400] sm:$0xff]
  %v470 = vld [vmem:[%s3 + $0x408] sm:$0xff]
  %v471 = vld [vmem:[%s3 + $0x410] sm:$0xff]
  %v472 = vld [vmem:[%s3 + $0x418] sm:$0xff]
  %v473 = vld [vmem:[%s3 + $0x420] sm:$0xff]
  %v474 = vld [vmem:[%s3 + $0x428] sm:$0xff]
  %v475 = vld [vmem:[%s3 + $0x430] sm:$0xff]
  %v476 = vld [vmem:[%s3 + $0x438] sm:$0xff]
  %v477 = vld [vmem:[%s3 + $0x440] sm:$0xff]
  %v478 = vld [vmem:[%s3 + $0x448] sm:$0xff]
  %v479 = vld [vmem:[%s3 + $0x450] sm:$0xff]
  %v480 = vld [vmem:[%s3 + $0x458] sm:$0xff]
  %v481 = vld [vmem:[%s3 + $0x460] sm:$0xff]
  %v482 = vld [vmem:[%s3 + $0x468] sm:$0xff]
  %v483 = vld [vmem:[%s3 + $0x470] sm:$0xff]
  %v484 = vld [vmem:[%s3 + $0x478] sm:$0xff]
  %v485 = vld [vmem:[%s3 + $0x480] sm:$0xff]
  %v486 = vld [vmem:[%s3 + $0x488] sm:$0xff]
  %v487 = vld [vmem:[%s3 + $0x490] sm:$0xff]
  %v488 = vld [vmem:[%s3 + $0x498] sm:$0xff]
  %v489 = vld [vmem:[%s3 + $0x4a0] sm:$0xff]
  %v490 = vld [vmem:[%s3 + $0x4a8] sm:$0xff]
  %v491 = vld [vmem:[%s3 + $0x4b0] sm:$0xff]
  %v492 = vld [vmem:[%s3 + $0x4b8] sm:$0xff]
  %v493 = vld [vmem:[%s3 + $0x4c0] sm:$0xff]
  %v494 = vld [vmem:[%s3 + $0x4c8] sm:$0xff]
  %v495 = vld [vmem:[%s3 + $0x4d0] sm:$0xff]
  %v496 = vld [vmem:[%s3 + $0x4d8] sm:$0xff]
  %v497 = vld [vmem:[%s3 + $0x4e0] sm:$0xff]
  %v498 = vld [vmem:[%s3 + $0x4e8] sm:$0xff]
  %v499 = vld [vmem:[%s3 + $0x4f0] sm:$0xff]
  %v500 = vld [vmem:[%s3 + $0x4f8] sm:$0xff]
  %v501 = vld [vmem:[%s3 + $0x500] sm:$0xff]
  %v502 = vld [vmem:[%s3 + $0x508] sm:$0xff]
  %v503 = vld [vmem:[%s3 + $0x510] sm:$0xff]
  %v504 = vld [vmem:[%s3 + $0x518] sm:$0xff]
  %v505 = vld [vmem:[%s3 + $0x520] sm:$0xff]
  %v506 = vld [vmem:[%s3 + $0x528] sm:$0xff]
  %v507 = vld [vmem:[%s3 + $0x530] sm:$0xff]
  %v508 = vld [vmem:[%s3 + $0x538] sm:$0xff]
  %v509 = vld [vmem:[%s3 + $0x540] sm:$0xff]
  %v510 = vld [vmem:[%s3 + $0x548] sm:$0xff]
  %v511 = vld [vmem:[%s3 + $0x550] sm:$0xff]
  %v512 = vld [vmem:[%s3 + $0x558] sm:$0xff]
  %v513 = vld [vmem:[%s3 + $0x560] sm:$0xff]
  %v514 = vld [vmem:[%s3 + $0x568] sm:$0xff]
  %v515 = vld [vmem:[%s3 + $0x570] sm:$0xff]
  %v516 = vld [vmem:[%s3 + $0x578] sm:$0xff]
  %v517 = vld [vmem:[%s3 + $0x580] sm:$0xff]
  %v518 = vld [vmem:[%s3 + $0x588] sm:$0xff]
  %v519 = vld [vmem:[%s3 + $0x590] sm:$0xff]
  %v520 = vld [vmem:[%s3 + $0x598] sm:$0xff]
  %v521 = vld [vmem:[%s3 + $0x5a0] sm:$0xff]
  %v522 = vld [vmem:[%s3 + $0x5a8] sm:$0xff]
  %v523 = vld [vmem:[%s3 + $0x5b0] sm:$0xff]
  %v524 = vld [vmem:[%s3 + $0x5b8] sm:$0xff]
  %v525 = vld [vmem:[%s3 + $0x5c0] sm:$0xff]
  %v526 = vld [vmem:[%s3 + $0x5c8] sm:$0xff]
  %v527 = vld [vmem:[%s3 + $0x5d0] sm:$0xff]
  %v528 = vld [vmem:[%s3 + $0x5d8] sm:$0xff]
  %v529 = vld [vmem:[%s3 + $0x5e0] sm:$0xff]
  %v530 = vld [vmem:[%s3 + $0x5e8] sm:$0xff]
  %v531 = vld [vmem:[%s3 + $0x5f0] sm:$0xff]
  %v532 = vld [vmem:[%s3 + $0x5f8] sm:$0xff]
  %v533 = vld [vmem:[%s4] sm:$0x3f]
  %v535 = vlaneseq
  %v536 = vshrl.u32 %v535, 7
  %v537 = vsub.s32 0, %v536
  %v538 = vrot.slane %v533, %v537
  %v539 = vlaneseq
  %v540 = vshrl.u32 %v539, 7
  %v541 = vsub.s32 1, %v540
  %v542 = vrot.slane %v533, %v541
  %v543 = vlaneseq
  %v544 = vshrl.u32 %v543, 7
  %v545 = vsub.s32 2, %v544
  %v546 = vrot.slane %v533, %v545
  %v547 = vlaneseq
  %v548 = vshrl.u32 %v547, 7
  %v549 = vsub.s32 3, %v548
  %v550 = vrot.slane %v533, %v549
  %v551 = vlaneseq
  %v552 = vshrl.u32 %v551, 7
  %v553 = vsub.s32 4, %v552
  %v554 = vrot.slane %v533, %v553
  %v555 = vlaneseq
  %v556 = vshrl.u32 %v555, 7
  %v557 = vsub.s32 5, %v556
  %v558 = vrot.slane %v533, %v557
  %v757 = vunpack.c.l.b16 %v341
  %v758 = vunpack.c.h.b16 %v341
  %v759 = vunpack.c.l.b16 %v342
  %v760 = vunpack.c.h.b16 %v342
  %v761 = vunpack.c.l.b16 %v343
  %v762 = vunpack.c.h.b16 %v343
  %v763 = vunpack.c.l.b16 %v344
  %v764 = vunpack.c.h.b16 %v344
  %v765 = vunpack.c.l.b16 %v345
  %v766 = vunpack.c.h.b16 %v345
  %v767 = vunpack.c.l.b16 %v346
  %v768 = vunpack.c.h.b16 %v346
  %v769 = vunpack.c.l.b16 %v347
  %v770 = vunpack.c.h.b16 %v347
  %v771 = vunpack.c.l.b16 %v348
  %v772 = vunpack.c.h.b16 %v348
  %v773 = vunpack.c.l.b16 %v349
  %v774 = vunpack.c.h.b16 %v349
  %v775 = vunpack.c.l.b16 %v350
  %v776 = vunpack.c.h.b16 %v350
  %v777 = vunpack.c.l.b16 %v351
  %v778 = vunpack.c.h.b16 %v351
  %v779 = vunpack.c.l.b16 %v352
  %v780 = vunpack.c.h.b16 %v352
  %v781 = vunpack.c.l.b16 %v353
  %v782 = vunpack.c.h.b16 %v353
  %v783 = vunpack.c.l.b16 %v354
  %v784 = vunpack.c.h.b16 %v354
  %v785 = vunpack.c.l.b16 %v355
  %v786 = vunpack.c.h.b16 %v355
  %v787 = vunpack.c.l.b16 %v356
  %v788 = vunpack.c.h.b16 %v356
  %v789 = vunpack.c.l.b16 %v357
  %v790 = vunpack.c.h.b16 %v357
  %v791 = vunpack.c.l.b16 %v358
  %v792 = vunpack.c.h.b16 %v358
  %v793 = vunpack.c.l.b16 %v359
  %v794 = vunpack.c.h.b16 %v359
  %v795 = vunpack.c.l.b16 %v360
  %v796 = vunpack.c.h.b16 %v360
  %v797 = vunpack.c.l.b16 %v361
  %v798 = vunpack.c.h.b16 %v361
  %v799 = vunpack.c.l.b16 %v362
  %v800 = vunpack.c.h.b16 %v362
  %v801 = vunpack.c.l.b16 %v363
  %v802 = vunpack.c.h.b16 %v363
  %v803 = vunpack.c.l.b16 %v364
  %v804 = vunpack.c.h.b16 %v364
  %v805 = vunpack.c.l.b16 %v365
  %v806 = vunpack.c.h.b16 %v365
  %v807 = vunpack.c.l.b16 %v366
  %v808 = vunpack.c.h.b16 %v366
  %v809 = vunpack.c.l.b16 %v367
  %v810 = vunpack.c.h.b16 %v367
  %v811 = vunpack.c.l.b16 %v368
  %v812 = vunpack.c.h.b16 %v368
  %v813 = vunpack.c.l.b16 %v369
  %v814 = vunpack.c.h.b16 %v369
  %v815 = vunpack.c.l.b16 %v370
  %v816 = vunpack.c.h.b16 %v370
  %v817 = vunpack.c.l.b16 %v371
  %v818 = vunpack.c.h.b16 %v371
  %v819 = vunpack.c.l.b16 %v372
  %v820 = vunpack.c.h.b16 %v372
  %v821 = vunpack.c.l.b16 %v373
  %v822 = vunpack.c.h.b16 %v373
  %v823 = vunpack.c.l.b16 %v374
  %v824 = vunpack.c.h.b16 %v374
  %v825 = vunpack.c.l.b16 %v375
  %v826 = vunpack.c.h.b16 %v375
  %v827 = vunpack.c.l.b16 %v376
  %v828 = vunpack.c.h.b16 %v376
  %v829 = vunpack.c.l.b16 %v377
  %v830 = vunpack.c.h.b16 %v377
  %v831 = vunpack.c.l.b16 %v378
  %v832 = vunpack.c.h.b16 %v378
  %v833 = vunpack.c.l.b16 %v379
  %v834 = vunpack.c.h.b16 %v379
  %v835 = vunpack.c.l.b16 %v380
  %v836 = vunpack.c.h.b16 %v380
  %v837 = vunpack.c.l.b16 %v381
  %v838 = vunpack.c.h.b16 %v381
  %v839 = vunpack.c.l.b16 %v382
  %v840 = vunpack.c.h.b16 %v382
  %v841 = vunpack.c.l.b16 %v383
  %v842 = vunpack.c.h.b16 %v383
  %v843 = vunpack.c.l.b16 %v384
  %v844 = vunpack.c.h.b16 %v384
  %v845 = vunpack.c.l.b16 %v385
  %v846 = vunpack.c.h.b16 %v385
  %v847 = vunpack.c.l.b16 %v386
  %v848 = vunpack.c.h.b16 %v386
  %v849 = vunpack.c.l.b16 %v387
  %v850 = vunpack.c.h.b16 %v387
  %v851 = vunpack.c.l.b16 %v388
  %v852 = vunpack.c.h.b16 %v388
  %v853 = vunpack.c.l.b16 %v389
  %v854 = vunpack.c.h.b16 %v389
  %v855 = vunpack.c.l.b16 %v390
  %v856 = vunpack.c.h.b16 %v390
  %v857 = vunpack.c.l.b16 %v391
  %v858 = vunpack.c.h.b16 %v391
  %v859 = vunpack.c.l.b16 %v392
  %v860 = vunpack.c.h.b16 %v392
  %v861 = vunpack.c.l.b16 %v393
  %v862 = vunpack.c.h.b16 %v393
  %v863 = vunpack.c.l.b16 %v394
  %v864 = vunpack.c.h.b16 %v394
  %v865 = vunpack.c.l.b16 %v395
  %v866 = vunpack.c.h.b16 %v395
  %v867 = vunpack.c.l.b16 %v396
  %v868 = vunpack.c.h.b16 %v396
  %v869 = vunpack.c.l.b16 %v397
  %v870 = vunpack.c.h.b16 %v397
  %v871 = vunpack.c.l.b16 %v398
  %v872 = vunpack.c.h.b16 %v398
  %v873 = vunpack.c.l.b16 %v399
  %v874 = vunpack.c.h.b16 %v399
  %v875 = vunpack.c.l.b16 %v400
  %v876 = vunpack.c.h.b16 %v400
  %v877 = vunpack.c.l.b16 %v401
  %v878 = vunpack.c.h.b16 %v401
  %v879 = vunpack.c.l.b16 %v402
  %v880 = vunpack.c.h.b16 %v402
  %v881 = vunpack.c.l.b16 %v403
  %v882 = vunpack.c.h.b16 %v403
  %v883 = vunpack.c.l.b16 %v404
  %v884 = vunpack.c.h.b16 %v404
  %v885 = vunpack.c.l.b16 %v405
  %v886 = vunpack.c.h.b16 %v405
  %v887 = vunpack.c.l.b16 %v406
  %v888 = vunpack.c.h.b16 %v406
  %v889 = vunpack.c.l.b16 %v407
  %v890 = vunpack.c.h.b16 %v407
  %v891 = vunpack.c.l.b16 %v408
  %v892 = vunpack.c.h.b16 %v408
  %v893 = vunpack.c.l.b16 %v409
  %v894 = vunpack.c.h.b16 %v409
  %v895 = vunpack.c.l.b16 %v410
  %v896 = vunpack.c.h.b16 %v410
  %v897 = vunpack.c.l.b16 %v411
  %v898 = vunpack.c.h.b16 %v411
  %v899 = vunpack.c.l.b16 %v412
  %v900 = vunpack.c.h.b16 %v412
  %v901 = vunpack.c.l.b16 %v413
  %v902 = vunpack.c.h.b16 %v413
  %v903 = vunpack.c.l.b16 %v414
  %v904 = vunpack.c.h.b16 %v414
  %v905 = vunpack.c.l.b16 %v415
  %v906 = vunpack.c.h.b16 %v415
  %v907 = vunpack.c.l.b16 %v416
  %v908 = vunpack.c.h.b16 %v416
  %v909 = vunpack.c.l.b16 %v417
  %v910 = vunpack.c.h.b16 %v417
  %v911 = vunpack.c.l.b16 %v418
  %v912 = vunpack.c.h.b16 %v418
  %v913 = vunpack.c.l.b16 %v419
  %v914 = vunpack.c.h.b16 %v419
  %v915 = vunpack.c.l.b16 %v420
  %v916 = vunpack.c.h.b16 %v420
  %v917 = vunpack.c.l.b16 %v421
  %v918 = vunpack.c.h.b16 %v421
  %v919 = vunpack.c.l.b16 %v422
  %v920 = vunpack.c.h.b16 %v422
  %v921 = vunpack.c.l.b16 %v423
  %v922 = vunpack.c.h.b16 %v423
  %v923 = vunpack.c.l.b16 %v424
  %v924 = vunpack.c.h.b16 %v424
  %v925 = vunpack.c.l.b16 %v425
  %v926 = vunpack.c.h.b16 %v425
  %v927 = vunpack.c.l.b16 %v426
  %v928 = vunpack.c.h.b16 %v426
  %v929 = vunpack.c.l.b16 %v427
  %v930 = vunpack.c.h.b16 %v427
  %v931 = vunpack.c.l.b16 %v428
  %v932 = vunpack.c.h.b16 %v428
  %v933 = vunpack.c.l.b16 %v429
  %v934 = vunpack.c.h.b16 %v429
  %v935 = vunpack.c.l.b16 %v430
  %v936 = vunpack.c.h.b16 %v430
  %v937 = vunpack.c.l.b16 %v431
  %v938 = vunpack.c.h.b16 %v431
  %v939 = vunpack.c.l.b16 %v432
  %v940 = vunpack.c.h.b16 %v432
  %v941 = vunpack.c.l.b16 %v433
  %v942 = vunpack.c.h.b16 %v433
  %v943 = vunpack.c.l.b16 %v434
  %v944 = vunpack.c.h.b16 %v434
  %v945 = vunpack.c.l.b16 %v435
  %v946 = vunpack.c.h.b16 %v435
  %v947 = vunpack.c.l.b16 %v436
  %v948 = vunpack.c.h.b16 %v436
  %v949 = vunpack.c.l.b16 %v437
  %v950 = vunpack.c.h.b16 %v437
  %v951 = vunpack.c.l.b16 %v438
  %v952 = vunpack.c.h.b16 %v438
  %v953 = vunpack.c.l.b16 %v439
  %v954 = vunpack.c.h.b16 %v439
  %v955 = vunpack.c.l.b16 %v440
  %v956 = vunpack.c.h.b16 %v440
  %v957 = vunpack.c.l.b16 %v441
  %v958 = vunpack.c.h.b16 %v441
  %v959 = vunpack.c.l.b16 %v442
  %v960 = vunpack.c.h.b16 %v442
  %v961 = vunpack.c.l.b16 %v443
  %v962 = vunpack.c.h.b16 %v443
  %v963 = vunpack.c.l.b16 %v444
  %v964 = vunpack.c.h.b16 %v444
  %v965 = vunpack.c.l.b16 %v445
  %v966 = vunpack.c.h.b16 %v445
  %v967 = vunpack.c.l.b16 %v446
  %v968 = vunpack.c.h.b16 %v446
  %v969 = vunpack.c.l.b16 %v447
  %v970 = vunpack.c.h.b16 %v447
  %v971 = vunpack.c.l.b16 %v448
  %v972 = vunpack.c.h.b16 %v448
  %v973 = vunpack.c.l.b16 %v449
  %v974 = vunpack.c.h.b16 %v449
  %v975 = vunpack.c.l.b16 %v450
  %v976 = vunpack.c.h.b16 %v450
  %v977 = vunpack.c.l.b16 %v451
  %v978 = vunpack.c.h.b16 %v451
  %v979 = vunpack.c.l.b16 %v452
  %v980 = vunpack.c.h.b16 %v452
  %v981 = vunpack.c.l.b16 %v453
  %v982 = vunpack.c.h.b16 %v453
  %v983 = vunpack.c.l.b16 %v454
  %v984 = vunpack.c.h.b16 %v454
  %v985 = vunpack.c.l.b16 %v455
  %v986 = vunpack.c.h.b16 %v455
  %v987 = vunpack.c.l.b16 %v456
  %v988 = vunpack.c.h.b16 %v456
  %v989 = vunpack.c.l.b16 %v457
  %v990 = vunpack.c.h.b16 %v457
  %v991 = vunpack.c.l.b16 %v458
  %v992 = vunpack.c.h.b16 %v458
  %v993 = vunpack.c.l.b16 %v459
  %v994 = vunpack.c.h.b16 %v459
  %v995 = vunpack.c.l.b16 %v460
  %v996 = vunpack.c.h.b16 %v460
  %v997 = vunpack.c.l.b16 %v461
  %v998 = vunpack.c.h.b16 %v461
  %v999 = vunpack.c.l.b16 %v462
  %v1000 = vunpack.c.h.b16 %v462
  %v1001 = vunpack.c.l.b16 %v463
  %v1002 = vunpack.c.h.b16 %v463
  %v1003 = vunpack.c.l.b16 %v464
  %v1004 = vunpack.c.h.b16 %v464
  %v1005 = vunpack.c.l.b16 %v465
  %v1006 = vunpack.c.h.b16 %v465
  %v1007 = vunpack.c.l.b16 %v466
  %v1008 = vunpack.c.h.b16 %v466
  %v1009 = vunpack.c.l.b16 %v467
  %v1010 = vunpack.c.h.b16 %v467
  %v1011 = vunpack.c.l.b16 %v468
  %v1012 = vunpack.c.h.b16 %v468
  %v1013 = vunpack.c.l.b16 %v469
  %v1014 = vunpack.c.h.b16 %v469
  %v1015 = vunpack.c.l.b16 %v470
  %v1016 = vunpack.c.h.b16 %v470
  %v1017 = vunpack.c.l.b16 %v471
  %v1018 = vunpack.c.h.b16 %v471
  %v1019 = vunpack.c.l.b16 %v472
  %v1020 = vunpack.c.h.b16 %v472
  %v1021 = vunpack.c.l.b16 %v473
  %v1022 = vunpack.c.h.b16 %v473
  %v1023 = vunpack.c.l.b16 %v474
  %v1024 = vunpack.c.h.b16 %v474
  %v1025 = vunpack.c.l.b16 %v475
  %v1026 = vunpack.c.h.b16 %v475
  %v1027 = vunpack.c.l.b16 %v476
  %v1028 = vunpack.c.h.b16 %v476
  %v1029 = vunpack.c.l.b16 %v477
  %v1030 = vunpack.c.h.b16 %v477
  %v1031 = vunpack.c.l.b16 %v478
  %v1032 = vunpack.c.h.b16 %v478
  %v1033 = vunpack.c.l.b16 %v479
  %v1034 = vunpack.c.h.b16 %v479
  %v1035 = vunpack.c.l.b16 %v480
  %v1036 = vunpack.c.h.b16 %v480
  %v1037 = vunpack.c.l.b16 %v481
  %v1038 = vunpack.c.h.b16 %v481
  %v1039 = vunpack.c.l.b16 %v482
  %v1040 = vunpack.c.h.b16 %v482
  %v1041 = vunpack.c.l.b16 %v483
  %v1042 = vunpack.c.h.b16 %v483
  %v1043 = vunpack.c.l.b16 %v484
  %v1044 = vunpack.c.h.b16 %v484
  %v1045 = vunpack.c.l.b16 %v485
  %v1046 = vunpack.c.h.b16 %v485
  %v1047 = vunpack.c.l.b16 %v486
  %v1048 = vunpack.c.h.b16 %v486
  %v1049 = vunpack.c.l.b16 %v487
  %v1050 = vunpack.c.h.b16 %v487
  %v1051 = vunpack.c.l.b16 %v488
  %v1052 = vunpack.c.h.b16 %v488
  %v1053 = vunpack.c.l.b16 %v489
  %v1054 = vunpack.c.h.b16 %v489
  %v1055 = vunpack.c.l.b16 %v490
  %v1056 = vunpack.c.h.b16 %v490
  %v1057 = vunpack.c.l.b16 %v491
  %v1058 = vunpack.c.h.b16 %v491
  %v1059 = vunpack.c.l.b16 %v492
  %v1060 = vunpack.c.h.b16 %v492
  %v1061 = vunpack.c.l.b16 %v493
  %v1062 = vunpack.c.h.b16 %v493
  %v1063 = vunpack.c.l.b16 %v494
  %v1064 = vunpack.c.h.b16 %v494
  %v1065 = vunpack.c.l.b16 %v495
  %v1066 = vunpack.c.h.b16 %v495
  %v1067 = vunpack.c.l.b16 %v496
  %v1068 = vunpack.c.h.b16 %v496
  %v1069 = vunpack.c.l.b16 %v497
  %v1070 = vunpack.c.h.b16 %v497
  %v1071 = vunpack.c.l.b16 %v498
  %v1072 = vunpack.c.h.b16 %v498
  %v1073 = vunpack.c.l.b16 %v499
  %v1074 = vunpack.c.h.b16 %v499
  %v1075 = vunpack.c.l.b16 %v500
  %v1076 = vunpack.c.h.b16 %v500
  %v1077 = vunpack.c.l.b16 %v501
  %v1078 = vunpack.c.h.b16 %v501
  %v1079 = vunpack.c.l.b16 %v502
  %v1080 = vunpack.c.h.b16 %v502
  %v1081 = vunpack.c.l.b16 %v503
  %v1082 = vunpack.c.h.b16 %v503
  %v1083 = vunpack.c.l.b16 %v504
  %v1084 = vunpack.c.h.b16 %v504
  %v1085 = vunpack.c.l.b16 %v505
  %v1086 = vunpack.c.h.b16 %v505
  %v1087 = vunpack.c.l.b16 %v506
  %v1088 = vunpack.c.h.b16 %v506
  %v1089 = vunpack.c.l.b16 %v507
  %v1090 = vunpack.c.h.b16 %v507
  %v1091 = vunpack.c.l.b16 %v508
  %v1092 = vunpack.c.h.b16 %v508
  %v1093 = vunpack.c.l.b16 %v509
  %v1094 = vunpack.c.h.b16 %v509
  %v1095 = vunpack.c.l.b16 %v510
  %v1096 = vunpack.c.h.b16 %v510
  %v1097 = vunpack.c.l.b16 %v511
  %v1098 = vunpack.c.h.b16 %v511
  %v1099 = vunpack.c.l.b16 %v512
  %v1100 = vunpack.c.h.b16 %v512
  %v1101 = vunpack.c.l.b16 %v513
  %v1102 = vunpack.c.h.b16 %v513
  %v1103 = vunpack.c.l.b16 %v514
  %v1104 = vunpack.c.h.b16 %v514
  %v1105 = vunpack.c.l.b16 %v515
  %v1106 = vunpack.c.h.b16 %v515
  %v1107 = vunpack.c.l.b16 %v516
  %v1108 = vunpack.c.h.b16 %v516
  %v1109 = vunpack.c.l.b16 %v517
  %v1110 = vunpack.c.h.b16 %v517
  %v1111 = vunpack.c.l.b16 %v518
  %v1112 = vunpack.c.h.b16 %v518
  %v1113 = vunpack.c.l.b16 %v519
  %v1114 = vunpack.c.h.b16 %v519
  %v1115 = vunpack.c.l.b16 %v520
  %v1116 = vunpack.c.h.b16 %v520
  %v1117 = vunpack.c.l.b16 %v521
  %v1118 = vunpack.c.h.b16 %v521
  %v1119 = vunpack.c.l.b16 %v522
  %v1120 = vunpack.c.h.b16 %v522
  %v1121 = vunpack.c.l.b16 %v523
  %v1122 = vunpack.c.h.b16 %v523
  %v1123 = vunpack.c.l.b16 %v524
  %v1124 = vunpack.c.h.b16 %v524
  %v1125 = vunpack.c.l.b16 %v525
  %v1126 = vunpack.c.h.b16 %v525
  %v1127 = vunpack.c.l.b16 %v526
  %v1128 = vunpack.c.h.b16 %v526
  %v1129 = vunpack.c.l.b16 %v527
  %v1130 = vunpack.c.h.b16 %v527
  %v1131 = vunpack.c.l.b16 %v528
  %v1132 = vunpack.c.h.b16 %v528
  %v1133 = vunpack.c.l.b16 %v529
  %v1134 = vunpack.c.h.b16 %v529
  %v1135 = vunpack.c.l.b16 %v530
  %v1136 = vunpack.c.h.b16 %v530
  %v1137 = vunpack.c.l.b16 %v531
  %v1138 = vunpack.c.h.b16 %v531
  %v1139 = vunpack.c.l.b16 %v532
  %v1140 = vunpack.c.h.b16 %v532
  %v1141 = vpack.c.b16 %v763, %v757
  %v1142 = vpack.c.b16 %v764, %v758
  %v1143 = vpack.c.b16 %v765, %v759
  %v1144 = vpack.c.b16 %v766, %v760
  %v1145 = vpack.c.b16 %v767, %v761
  %v1146 = vpack.c.b16 %v768, %v762
  %v1147 = vpack.c.b16 %v775, %v769
  %v1148 = vpack.c.b16 %v776, %v770
  %v1149 = vpack.c.b16 %v777, %v771
  %v1150 = vpack.c.b16 %v778, %v772
  %v1151 = vpack.c.b16 %v779, %v773
  %v1152 = vpack.c.b16 %v780, %v774
  %v1153 = vpack.c.b16 %v787, %v781
  %v1154 = vpack.c.b16 %v788, %v782
  %v1155 = vpack.c.b16 %v789, %v783
  %v1156 = vpack.c.b16 %v790, %v784
  %v1157 = vpack.c.b16 %v791, %v785
  %v1158 = vpack.c.b16 %v792, %v786
  %v1159 = vpack.c.b16 %v799, %v793
  %v1160 = vpack.c.b16 %v800, %v794
  %v1161 = vpack.c.b16 %v801, %v795
  %v1162 = vpack.c.b16 %v802, %v796
  %v1163 = vpack.c.b16 %v803, %v797
  %v1164 = vpack.c.b16 %v804, %v798
  %v1165 = vpack.c.b16 %v811, %v805
  %v1166 = vpack.c.b16 %v812, %v806
  %v1167 = vpack.c.b16 %v813, %v807
  %v1168 = vpack.c.b16 %v814, %v808
  %v1169 = vpack.c.b16 %v815, %v809
  %v1170 = vpack.c.b16 %v816, %v810
  %v1171 = vpack.c.b16 %v823, %v817
  %v1172 = vpack.c.b16 %v824, %v818
  %v1173 = vpack.c.b16 %v825, %v819
  %v1174 = vpack.c.b16 %v826, %v820
  %v1175 = vpack.c.b16 %v827, %v821
  %v1176 = vpack.c.b16 %v828, %v822
  %v1177 = vpack.c.b16 %v835, %v829
  %v1178 = vpack.c.b16 %v836, %v830
  %v1179 = vpack.c.b16 %v837, %v831
  %v1180 = vpack.c.b16 %v838, %v832
  %v1181 = vpack.c.b16 %v839, %v833
  %v1182 = vpack.c.b16 %v840, %v834
  %v1183 = vpack.c.b16 %v847, %v841
  %v1184 = vpack.c.b16 %v848, %v842
  %v1185 = vpack.c.b16 %v849, %v843
  %v1186 = vpack.c.b16 %v850, %v844
  %v1187 = vpack.c.b16 %v851, %v845
  %v1188 = vpack.c.b16 %v852, %v846
  %v1189 = vpack.c.b16 %v859, %v853
  %v1190 = vpack.c.b16 %v860, %v854
  %v1191 = vpack.c.b16 %v861, %v855
  %v1192 = vpack.c.b16 %v862, %v856
  %v1193 = vpack.c.b16 %v863, %v857
  %v1194 = vpack.c.b16 %v864, %v858
  %v1195 = vpack.c.b16 %v871, %v865
  %v1196 = vpack.c.b16 %v872, %v866
  %v1197 = vpack.c.b16 %v873, %v867
  %v1198 = vpack.c.b16 %v874, %v868
  %v1199 = vpack.c.b16 %v875, %v869
  %v1200 = vpack.c.b16 %v876, %v870
  %v1201 = vpack.c.b16 %v883, %v877
  %v1202 = vpack.c.b16 %v884, %v878
  %v1203 = vpack.c.b16 %v885, %v879
  %v1204 = vpack.c.b16 %v886, %v880
  %v1205 = vpack.c.b16 %v887, %v881
  %v1206 = vpack.c.b16 %v888, %v882
  %v1207 = vpack.c.b16 %v895, %v889
  %v1208 = vpack.c.b16 %v896, %v890
  %v1209 = vpack.c.b16 %v897, %v891
  %v1210 = vpack.c.b16 %v898, %v892
  %v1211 = vpack.c.b16 %v899, %v893
  %v1212 = vpack.c.b16 %v900, %v894
  %v1213 = vpack.c.b16 %v907, %v901
  %v1214 = vpack.c.b16 %v908, %v902
  %v1215 = vpack.c.b16 %v909, %v903
  %v1216 = vpack.c.b16 %v910, %v904
  %v1217 = vpack.c.b16 %v911, %v905
  %v1218 = vpack.c.b16 %v912, %v906
  %v1219 = vpack.c.b16 %v919, %v913
  %v1220 = vpack.c.b16 %v920, %v914
  %v1221 = vpack.c.b16 %v921, %v915
  %v1222 = vpack.c.b16 %v922, %v916
  %v1223 = vpack.c.b16 %v923, %v917
  %v1224 = vpack.c.b16 %v924, %v918
  %v1225 = vpack.c.b16 %v931, %v925
  %v1226 = vpack.c.b16 %v932, %v926
  %v1227 = vpack.c.b16 %v933, %v927
  %v1228 = vpack.c.b16 %v934, %v928
  %v1229 = vpack.c.b16 %v935, %v929
  %v1230 = vpack.c.b16 %v936, %v930
  %v1231 = vpack.c.b16 %v943, %v937
  %v1232 = vpack.c.b16 %v944, %v938
  %v1233 = vpack.c.b16 %v945, %v939
  %v1234 = vpack.c.b16 %v946, %v940
  %v1235 = vpack.c.b16 %v947, %v941
  %v1236 = vpack.c.b16 %v948, %v942
  %v1237 = vpack.c.b16 %v955, %v949
  %v1238 = vpack.c.b16 %v956, %v950
  %v1239 = vpack.c.b16 %v957, %v951
  %v1240 = vpack.c.b16 %v958, %v952
  %v1241 = vpack.c.b16 %v959, %v953
  %v1242 = vpack.c.b16 %v960, %v954
  %v1243 = vpack.c.b16 %v967, %v961
  %v1244 = vpack.c.b16 %v968, %v962
  %v1245 = vpack.c.b16 %v969, %v963
  %v1246 = vpack.c.b16 %v970, %v964
  %v1247 = vpack.c.b16 %v971, %v965
  %v1248 = vpack.c.b16 %v972, %v966
  %v1249 = vpack.c.b16 %v979, %v973
  %v1250 = vpack.c.b16 %v980, %v974
  %v1251 = vpack.c.b16 %v981, %v975
  %v1252 = vpack.c.b16 %v982, %v976
  %v1253 = vpack.c.b16 %v983, %v977
  %v1254 = vpack.c.b16 %v984, %v978
  %v1255 = vpack.c.b16 %v991, %v985
  %v1256 = vpack.c.b16 %v992, %v986
  %v1257 = vpack.c.b16 %v993, %v987
  %v1258 = vpack.c.b16 %v994, %v988
  %v1259 = vpack.c.b16 %v995, %v989
  %v1260 = vpack.c.b16 %v996, %v990
  %v1261 = vpack.c.b16 %v1003, %v997
  %v1262 = vpack.c.b16 %v1004, %v998
  %v1263 = vpack.c.b16 %v1005, %v999
  %v1264 = vpack.c.b16 %v1006, %v1000
  %v1265 = vpack.c.b16 %v1007, %v1001
  %v1266 = vpack.c.b16 %v1008, %v1002
  %v1267 = vpack.c.b16 %v1015, %v1009
  %v1268 = vpack.c.b16 %v1016, %v1010
  %v1269 = vpack.c.b16 %v1017, %v1011
  %v1270 = vpack.c.b16 %v1018, %v1012
  %v1271 = vpack.c.b16 %v1019, %v1013
  %v1272 = vpack.c.b16 %v1020, %v1014
  %v1273 = vpack.c.b16 %v1027, %v1021
  %v1274 = vpack.c.b16 %v1028, %v1022
  %v1275 = vpack.c.b16 %v1029, %v1023
  %v1276 = vpack.c.b16 %v1030, %v1024
  %v1277 = vpack.c.b16 %v1031, %v1025
  %v1278 = vpack.c.b16 %v1032, %v1026
  %v1279 = vpack.c.b16 %v1039, %v1033
  %v1280 = vpack.c.b16 %v1040, %v1034
  %v1281 = vpack.c.b16 %v1041, %v1035
  %v1282 = vpack.c.b16 %v1042, %v1036
  %v1283 = vpack.c.b16 %v1043, %v1037
  %v1284 = vpack.c.b16 %v1044, %v1038
  %v1285 = vpack.c.b16 %v1051, %v1045
  %v1286 = vpack.c.b16 %v1052, %v1046
  %v1287 = vpack.c.b16 %v1053, %v1047
  %v1288 = vpack.c.b16 %v1054, %v1048
  %v1289 = vpack.c.b16 %v1055, %v1049
  %v1290 = vpack.c.b16 %v1056, %v1050
  %v1291 = vpack.c.b16 %v1063, %v1057
  %v1292 = vpack.c.b16 %v1064, %v1058
  %v1293 = vpack.c.b16 %v1065, %v1059
  %v1294 = vpack.c.b16 %v1066, %v1060
  %v1295 = vpack.c.b16 %v1067, %v1061
  %v1296 = vpack.c.b16 %v1068, %v1062
  %v1297 = vpack.c.b16 %v1075, %v1069
  %v1298 = vpack.c.b16 %v1076, %v1070
  %v1299 = vpack.c.b16 %v1077, %v1071
  %v1300 = vpack.c.b16 %v1078, %v1072
  %v1301 = vpack.c.b16 %v1079, %v1073
  %v1302 = vpack.c.b16 %v1080, %v1074
  %v1303 = vpack.c.b16 %v1087, %v1081
  %v1304 = vpack.c.b16 %v1088, %v1082
  %v1305 = vpack.c.b16 %v1089, %v1083
  %v1306 = vpack.c.b16 %v1090, %v1084
  %v1307 = vpack.c.b16 %v1091, %v1085
  %v1308 = vpack.c.b16 %v1092, %v1086
  %v1309 = vpack.c.b16 %v1099, %v1093
  %v1310 = vpack.c.b16 %v1100, %v1094
  %v1311 = vpack.c.b16 %v1101, %v1095
  %v1312 = vpack.c.b16 %v1102, %v1096
  %v1313 = vpack.c.b16 %v1103, %v1097
  %v1314 = vpack.c.b16 %v1104, %v1098
  %v1315 = vpack.c.b16 %v1111, %v1105
  %v1316 = vpack.c.b16 %v1112, %v1106
  %v1317 = vpack.c.b16 %v1113, %v1107
  %v1318 = vpack.c.b16 %v1114, %v1108
  %v1319 = vpack.c.b16 %v1115, %v1109
  %v1320 = vpack.c.b16 %v1116, %v1110
  %v1321 = vpack.c.b16 %v1123, %v1117
  %v1322 = vpack.c.b16 %v1124, %v1118
  %v1323 = vpack.c.b16 %v1125, %v1119
  %v1324 = vpack.c.b16 %v1126, %v1120
  %v1325 = vpack.c.b16 %v1127, %v1121
  %v1326 = vpack.c.b16 %v1128, %v1122
  %v1327 = vpack.c.b16 %v1135, %v1129
  %v1328 = vpack.c.b16 %v1136, %v1130
  %v1329 = vpack.c.b16 %v1137, %v1131
  %v1330 = vpack.c.b16 %v1138, %v1132
  %v1331 = vpack.c.b16 %v1139, %v1133
  %v1332 = vpack.c.b16 %v1140, %v1134
  %1525 = vmatprep.subr.bf16.mxu0 %v1142
  %1526 = vmatpush1.bf16.msra.mxu0 %v1141
  %1527 = vmatprep.subr.bf16.mxu0 %v1148
  %1528 = vmatpush1.bf16.msra.mxu0 %v1147
  %1529 = vmatprep.subr.bf16.mxu0 %v1154
  %1530 = vmatpush1.bf16.msra.mxu0 %v1153
  %1531 = vmatprep.subr.bf16.mxu0 %v1160
  %1532 = vmatpush1.bf16.msra.mxu0 %v1159
  %1533 = vmatprep.subr.bf16.mxu0 %v1166
  %1534 = vmatpush1.bf16.msra.mxu0 %v1165
  %1535 = vmatprep.subr.bf16.mxu0 %v1172
  %1536 = vmatpush1.bf16.msra.mxu0 %v1171
  %1537 = vmatprep.subr.bf16.mxu0 %v1178
  %1538 = vmatpush1.bf16.msra.mxu0 %v1177
  %1539 = vmatprep.subr.bf16.mxu0 %v1184
  %1540 = vmatpush1.bf16.msra.mxu0 %v1183
  %1541 = vmatprep.subr.bf16.mxu0 %v1190
  %1542 = vmatpush1.bf16.msra.mxu0 %v1189
  %1543 = vmatprep.subr.bf16.mxu0 %v1196
  %1544 = vmatpush1.bf16.msra.mxu0 %v1195
  %1545 = vmatprep.subr.bf16.mxu0 %v1202
  %1546 = vmatpush1.bf16.msra.mxu0 %v1201
  %1547 = vmatprep.subr.bf16.mxu0 %v1208
  %1548 = vmatpush1.bf16.msra.mxu0 %v1207
  %1549 = vmatprep.subr.bf16.mxu0 %v1214
  %1550 = vmatpush1.bf16.msra.mxu0 %v1213
  %1551 = vmatprep.subr.bf16.mxu0 %v1220
  %1552 = vmatpush1.bf16.msra.mxu0 %v1219
  %1553 = vmatprep.subr.bf16.mxu0 %v1226
  %1554 = vmatpush1.bf16.msra.mxu0 %v1225
  %1555 = vmatprep.subr.bf16.mxu0 %v1232
  %1556 = vmatpush1.bf16.msra.mxu0 %v1231
  %1557 = vmatprep.mubr.bf16.mxu0 %v338
  %1558 = vmatmul.mubr.bf16.gmra.mrb[0].mxu0 %v337
  %v1559 = vpop.f32.mrb[0].mxu0
  %v1560 = vadd.f32 %v538, %v1559
  %v1561 = vpop.f32.mrb[0].mxu0
  %v1562 = vadd.f32 %v542, %v1561
  %v1563 = vpop.f32.mrb[0].mxu0
  %v1564 = vadd.f32 %v538, %v1563
  %v1565 = vpop.f32.mrb[0].mxu0
  %v1566 = vadd.f32 %v542, %v1565
  %1567 = vdwg.mxu0
  %1568 = vmatprep.subr.bf16.mxu0 %v1238
  %1569 = vmatpush1.bf16.msra.mxu0 %v1237
  %1570 = vmatprep.subr.bf16.mxu0 %v1244
  %1571 = vmatpush1.bf16.msra.mxu0 %v1243
  %1572 = vmatprep.subr.bf16.mxu0 %v1250
  %1573 = vmatpush1.bf16.msra.mxu0 %v1249
  %1574 = vmatprep.subr.bf16.mxu0 %v1256
  %1575 = vmatpush1.bf16.msra.mxu0 %v1255
  %1576 = vmatprep.subr.bf16.mxu0 %v1262
  %1577 = vmatpush1.bf16.msra.mxu0 %v1261
  %1578 = vmatprep.subr.bf16.mxu0 %v1268
  %1579 = vmatpush1.bf16.msra.mxu0 %v1267
  %1580 = vmatprep.subr.bf16.mxu0 %v1274
  %1581 = vmatpush1.bf16.msra.mxu0 %v1273
  %1582 = vmatprep.subr.bf16.mxu0 %v1280
  %1583 = vmatpush1.bf16.msra.mxu0 %v1279
  %1584 = vmatprep.subr.bf16.mxu0 %v1286
  %1585 = vmatpush1.bf16.msra.mxu0 %v1285
  %1586 = vmatprep.subr.bf16.mxu0 %v1292
  %1587 = vmatpush1.bf16.msra.mxu0 %v1291
  %1588 = vmatprep.subr.bf16.mxu0 %v1298
  %1589 = vmatpush1.bf16.msra.mxu0 %v1297
  %1590 = vmatprep.subr.bf16.mxu0 %v1304
  %1591 = vmatpush1.bf16.msra.mxu0 %v1303
  %1592 = vmatprep.subr.bf16.mxu0 %v1310
  %1593 = vmatpush1.bf16.msra.mxu0 %v1309
  %1594 = vmatprep.subr.bf16.mxu0 %v1316
  %1595 = vmatpush1.bf16.msra.mxu0 %v1315
  %1596 = vmatprep.subr.bf16.mxu0 %v1322
  %1597 = vmatpush1.bf16.msra.mxu0 %v1321
  %1598 = vmatprep.subr.bf16.mxu0 %v1328
  %1599 = vmatpush1.bf16.msra.mxu0 %v1327
  %1600 = vmatprep.mubr.bf16.mxu0 %v340
  %1601 = vmatmul.mubr.bf16.gmra.mrb[0].mxu0 %v339
  %v1602 = vpop.f32.mrb[0].mxu0
  %v1603 = vadd.f32 %v1560, %v1602
  %v1604 = vpop.f32.mrb[0].mxu0
  %v1605 = vadd.f32 %v1562, %v1604
  %v1606 = vpop.f32.mrb[0].mxu0
  %v1607 = vadd.f32 %v1564, %v1606
  %v1608 = vpop.f32.mrb[0].mxu0
  %v1609 = vadd.f32 %v1566, %v1608
  %1610 = vdwg.mxu0
  %1611 = vmatprep.subr.bf16.mxu0 %v1144
  %1612 = vmatpush1.bf16.msra.mxu0 %v1143
  %1613 = vmatprep.subr.bf16.mxu0 %v1150
  %1614 = vmatpush1.bf16.msra.mxu0 %v1149
  %1615 = vmatprep.subr.bf16.mxu0 %v1156
  %1616 = vmatpush1.bf16.msra.mxu0 %v1155
  %1617 = vmatprep.subr.bf16.mxu0 %v1162
  %1618 = vmatpush1.bf16.msra.mxu0 %v1161
  %1619 = vmatprep.subr.bf16.mxu0 %v1168
  %1620 = vmatpush1.bf16.msra.mxu0 %v1167
  %1621 = vmatprep.subr.bf16.mxu0 %v1174
  %1622 = vmatpush1.bf16.msra.mxu0 %v1173
  %1623 = vmatprep.subr.bf16.mxu0 %v1180
  %1624 = vmatpush1.bf16.msra.mxu0 %v1179
  %1625 = vmatprep.subr.bf16.mxu0 %v1186
  %1626 = vmatpush1.bf16.msra.mxu0 %v1185
  %1627 = vmatprep.subr.bf16.mxu0 %v1192
  %1628 = vmatpush1.bf16.msra.mxu0 %v1191
  %1629 = vmatprep.subr.bf16.mxu0 %v1198
  %1630 = vmatpush1.bf16.msra.mxu0 %v1197
  %1631 = vmatprep.subr.bf16.mxu0 %v1204
  %1632 = vmatpush1.bf16.msra.mxu0 %v1203
  %1633 = vmatprep.subr.bf16.mxu0 %v1210
  %1634 = vmatpush1.bf16.msra.mxu0 %v1209
  %1635 = vmatprep.subr.bf16.mxu0 %v1216
  %1636 = vmatpush1.bf16.msra.mxu0 %v1215
  %1637 = vmatprep.subr.bf16.mxu0 %v1222
  %1638 = vmatpush1.bf16.msra.mxu0 %v1221
  %1639 = vmatprep.subr.bf16.mxu0 %v1228
  %1640 = vmatpush1.bf16.msra.mxu0 %v1227
  %1641 = vmatprep.subr.bf16.mxu0 %v1234
  %1642 = vmatpush1.bf16.msra.mxu0 %v1233
  %1643 = vmatprep.mubr.bf16.mxu0 %v338
  %1644 = vmatmul.mubr.bf16.gmra.mrb[0].mxu0 %v337
  %v1645 = vpop.f32.mrb[0].mxu0
  %v1646 = vadd.f32 %v546, %v1645
  %v1647 = vpop.f32.mrb[0].mxu0
  %v1648 = vadd.f32 %v550, %v1647
  %v1649 = vpop.f32.mrb[0].mxu0
  %v1650 = vadd.f32 %v546, %v1649
  %v1651 = vpop.f32.mrb[0].mxu0
  %v1652 = vadd.f32 %v550, %v1651
  %1653 = vdwg.mxu0
  %1654 = vmatprep.subr.bf16.mxu0 %v1240
  %1655 = vmatpush1.bf16.msra.mxu0 %v1239
  %1656 = vmatprep.subr.bf16.mxu0 %v1246
  %1657 = vmatpush1.bf16.msra.mxu0 %v1245
  %1658 = vmatprep.subr.bf16.mxu0 %v1252
  %1659 = vmatpush1.bf16.msra.mxu0 %v1251
  %1660 = vmatprep.subr.bf16.mxu0 %v1258
  %1661 = vmatpush1.bf16.msra.mxu0 %v1257
  %1662 = vmatprep.subr.bf16.mxu0 %v1264
  %1663 = vmatpush1.bf16.msra.mxu0 %v1263
  %1664 = vmatprep.subr.bf16.mxu0 %v1270
  %1665 = vmatpush1.bf16.msra.mxu0 %v1269
  %1666 = vmatprep.subr.bf16.mxu0 %v1276
  %1667 = vmatpush1.bf16.msra.mxu0 %v1275
  %1668 = vmatprep.subr.bf16.mxu0 %v1282
  %1669 = vmatpush1.bf16.msra.mxu0 %v1281
  %1670 = vmatprep.subr.bf16.mxu0 %v1288
  %1671 = vmatpush1.bf16.msra.mxu0 %v1287
  %1672 = vmatprep.subr.bf16.mxu0 %v1294
  %1673 = vmatpush1.bf16.msra.mxu0 %v1293
  %1674 = vmatprep.subr.bf16.mxu0 %v1300
  %1675 = vmatpush1.bf16.msra.mxu0 %v1299
  %1676 = vmatprep.subr.bf16.mxu0 %v1306
  %1677 = vmatpush1.bf16.msra.mxu0 %v1305
  %1678 = vmatprep.subr.bf16.mxu0 %v1312
  %1679 = vmatpush1.bf16.msra.mxu0 %v1311
  %1680 = vmatprep.subr.bf16.mxu0 %v1318
  %1681 = vmatpush1.bf16.msra.mxu0 %v1317
  %1682 = vmatprep.subr.bf16.mxu0 %v1324
  %1683 = vmatpush1.bf16.msra.mxu0 %v1323
  %1684 = vmatprep.subr.bf16.mxu0 %v1330
  %1685 = vmatpush1.bf16.msra.mxu0 %v1329
  %1686 = vmatprep.mubr.bf16.mxu0 %v340
  %1687 = vmatmul.mubr.bf16.gmra.mrb[0].mxu0 %v339
  %v1688 = vpop.f32.mrb[0].mxu0
  %v1689 = vadd.f32 %v1646, %v1688
  %v1690 = vpop.f32.mrb[0].mxu0
  %v1691 = vadd.f32 %v1648, %v1690
  %v1692 = vpop.f32.mrb[0].mxu0
  %v1693 = vadd.f32 %v1650, %v1692
  %v1694 = vpop.f32.mrb[0].mxu0
  %v1695 = vadd.f32 %v1652, %v1694
  %1696 = vdwg.mxu0
  %1697 = vmatprep.subr.bf16.mxu0 %v1146
  %1698 = vmatpush1.bf16.msra.mxu0 %v1145
  %1699 = vmatprep.subr.bf16.mxu0 %v1152
  %1700 = vmatpush1.bf16.msra.mxu0 %v1151
  %1701 = vmatprep.subr.bf16.mxu0 %v1158
  %1702 = vmatpush1.bf16.msra.mxu0 %v1157
  %1703 = vmatprep.subr.bf16.mxu0 %v1164
  %1704 = vmatpush1.bf16.msra.mxu0 %v1163
  %1705 = vmatprep.subr.bf16.mxu0 %v1170
  %1706 = vmatpush1.bf16.msra.mxu0 %v1169
  %1707 = vmatprep.subr.bf16.mxu0 %v1176
  %1708 = vmatpush1.bf16.msra.mxu0 %v1175
  %1709 = vmatprep.subr.bf16.mxu0 %v1182
  %1710 = vmatpush1.bf16.msra.mxu0 %v1181
  %1711 = vmatprep.subr.bf16.mxu0 %v1188
  %1712 = vmatpush1.bf16.msra.mxu0 %v1187
  %1713 = vmatprep.subr.bf16.mxu0 %v1194
  %1714 = vmatpush1.bf16.msra.mxu0 %v1193
  %1715 = vmatprep.subr.bf16.mxu0 %v1200
  %1716 = vmatpush1.bf16.msra.mxu0 %v1199
  %1717 = vmatprep.subr.bf16.mxu0 %v1206
  %1718 = vmatpush1.bf16.msra.mxu0 %v1205
  %1719 = vmatprep.subr.bf16.mxu0 %v1212
  %1720 = vmatpush1.bf16.msra.mxu0 %v1211
  %1721 = vmatprep.subr.bf16.mxu0 %v1218
  %1722 = vmatpush1.bf16.msra.mxu0 %v1217
  %1723 = vmatprep.subr.bf16.mxu0 %v1224
  %1724 = vmatpush1.bf16.msra.mxu0 %v1223
  %1725 = vmatprep.subr.bf16.mxu0 %v1230
  %1726 = vmatpush1.bf16.msra.mxu0 %v1229
  %1727 = vmatprep.subr.bf16.mxu0 %v1236
  %1728 = vmatpush1.bf16.msra.mxu0 %v1235
  %1729 = vmatprep.mubr.bf16.mxu0 %v338
  %1730 = vmatmul.mubr.bf16.gmra.mrb[0].mxu0 %v337
  %v1731 = vpop.f32.mrb[0].mxu0
  %v1732 = vadd.f32 %v554, %v1731
  %v1733 = vpop.f32.mrb[0].mxu0
  %v1734 = vadd.f32 %v558, %v1733
  %v1735 = vpop.f32.mrb[0].mxu0
  %v1736 = vadd.f32 %v554, %v1735
  %v1737 = vpop.f32.mrb[0].mxu0
  %v1738 = vadd.f32 %v558, %v1737
  %1739 = vdwg.mxu0
  %1740 = vmatprep.subr.bf16.mxu0 %v1242
  %1741 = vmatpush1.bf16.msra.mxu0 %v1241
  %1742 = vmatprep.subr.bf16.mxu0 %v1248
  %1743 = vmatpush1.bf16.msra.mxu0 %v1247
  %1744 = vmatprep.subr.bf16.mxu0 %v1254
  %1745 = vmatpush1.bf16.msra.mxu0 %v1253
  %1746 = vmatprep.subr.bf16.mxu0 %v1260
  %1747 = vmatpush1.bf16.msra.mxu0 %v1259
  %1748 = vmatprep.subr.bf16.mxu0 %v1266
  %1749 = vmatpush1.bf16.msra.mxu0 %v1265
  %1750 = vmatprep.subr.bf16.mxu0 %v1272
  %1751 = vmatpush1.bf16.msra.mxu0 %v1271
  %1752 = vmatprep.subr.bf16.mxu0 %v1278
  %1753 = vmatpush1.bf16.msra.mxu0 %v1277
  %1754 = vmatprep.subr.bf16.mxu0 %v1284
  %1755 = vmatpush1.bf16.msra.mxu0 %v1283
  %1756 = vmatprep.subr.bf16.mxu0 %v1290
  %1757 = vmatpush1.bf16.msra.mxu0 %v1289
  %1758 = vmatprep.subr.bf16.mxu0 %v1296
  %1759 = vmatpush1.bf16.msra.mxu0 %v1295
  %1760 = vmatprep.subr.bf16.mxu0 %v1302
  %1761 = vmatpush1.bf16.msra.mxu0 %v1301
  %1762 = vmatprep.subr.bf16.mxu0 %v1308
  %1763 = vmatpush1.bf16.msra.mxu0 %v1307
  %1764 = vmatprep.subr.bf16.mxu0 %v1314
  %1765 = vmatpush1.bf16.msra.mxu0 %v1313
  %1766 = vmatprep.subr.bf16.mxu0 %v1320
  %1767 = vmatpush1.bf16.msra.mxu0 %v1319
  %1768 = vmatprep.subr.bf16.mxu0 %v1326
  %1769 = vmatpush1.bf16.msra.mxu0 %v1325
  %1770 = vmatprep.subr.bf16.mxu0 %v1332
  %1771 = vmatpush1.bf16.msra.mxu0 %v1331
  %1772 = vmatprep.mubr.bf16.mxu0 %v340
  %1773 = vmatmul.mubr.bf16.gmra.mrb[0].mxu0 %v339
  %v1774 = vpop.f32.mrb[0].mxu0
  %v1775 = vadd.f32 %v1732, %v1774
  %v1776 = vpop.f32.mrb[0].mxu0
  %v1777 = vadd.f32 %v1734, %v1776
  %v1778 = vpop.f32.mrb[0].mxu0
  %v1779 = vadd.f32 %v1736, %v1778
  %v1780 = vpop.f32.mrb[0].mxu0
  %v1781 = vadd.f32 %v1738, %v1780
  %1782 = vdwg.mxu0
  %1783 = vmax.xlane.f32.xlu0 %v1603
  %v1784 = vpop.xlane.xlu0 %1783
  %1785 = vmax.xlane.f32.xlu0 %v1607
  %v1786 = vpop.xlane.xlu0 %1785
  %v1787 = vsub.f32 %v1603, %v1784
  %v1788 = vsub.f32 %v1607, %v1786
  %v1789 = vmul.f32 %v1787, 1.442695
  %v1790 = vpow.pop %v1789
  %v1791 = vmul.f32 %v1788, 1.442695
  %v1792 = vpow.pop %v1791
  %1793 = vadd.xlane.f32.xlu0 %v1790
  %v1794 = vpop.xlane.xlu0 %1793
  %1795 = vadd.xlane.f32.xlu0 %v1792
  %v1796 = vpop.xlane.xlu0 %1795
  %v1797 = vrcp.pop %v1794
  %v1798 = vmul.f32 %v1790, %v1797
  %v1799 = vrcp.pop %v1796
  %v1800 = vmul.f32 %v1792, %v1799
  %1801 = vst [vmem:[%s5] sm:$0xff] %v1798
  %1802 = vst [vmem:[%s5 + $0x30] sm:$0xff] %v1800
  %1803 = vmax.xlane.f32.xlu0 %v1605
  %v1804 = vpop.xlane.xlu0 %1803
  %1805 = vmax.xlane.f32.xlu0 %v1609
  %v1806 = vpop.xlane.xlu0 %1805
  %v1807 = vsub.f32 %v1605, %v1804
  %v1808 = vsub.f32 %v1609, %v1806
  %v1809 = vmul.f32 %v1807, 1.442695
  %v1810 = vpow.pop %v1809
  %v1811 = vmul.f32 %v1808, 1.442695
  %v1812 = vpow.pop %v1811
  %1813 = vadd.xlane.f32.xlu0 %v1810
  %v1814 = vpop.xlane.xlu0 %1813
  %1815 = vadd.xlane.f32.xlu0 %v1812
  %v1816 = vpop.xlane.xlu0 %1815
  %v1817 = vrcp.pop %v1814
  %v1818 = vmul.f32 %v1810, %v1817
  %v1819 = vrcp.pop %v1816
  %v1820 = vmul.f32 %v1812, %v1819
  %1821 = vst [vmem:[%s5 + $0x8] sm:$0xff] %v1818
  %1822 = vst [vmem:[%s5 + $0x38] sm:$0xff] %v1820
  %1823 = vmax.xlane.f32.xlu0 %v1689
  %v1824 = vpop.xlane.xlu0 %1823
  %1825 = vmax.xlane.f32.xlu0 %v1693
  %v1826 = vpop.xlane.xlu0 %1825
  %v1827 = vsub.f32 %v1689, %v1824
  %v1828 = vsub.f32 %v1693, %v1826
  %v1829 = vmul.f32 %v1827, 1.442695
  %v1830 = vpow.pop %v1829
  %v1831 = vmul.f32 %v1828, 1.442695
  %v1832 = vpow.pop %v1831
  %1833 = vadd.xlane.f32.xlu0 %v1830
  %v1834 = vpop.xlane.xlu0 %1833
  %1835 = vadd.xlane.f32.xlu0 %v1832
  %v1836 = vpop.xlane.xlu0 %1835
  %v1837 = vrcp.pop %v1834
  %v1838 = vmul.f32 %v1830, %v1837
  %v1839 = vrcp.pop %v1836
  %v1840 = vmul.f32 %v1832, %v1839
  %1841 = vst [vmem:[%s5 + $0x10] sm:$0xff] %v1838
  %1842 = vst [vmem:[%s5 + $0x40] sm:$0xff] %v1840
  %1843 = vmax.xlane.f32.xlu0 %v1691
  %v1844 = vpop.xlane.xlu0 %1843
  %1845 = vmax.xlane.f32.xlu0 %v1695
  %v1846 = vpop.xlane.xlu0 %1845
  %v1847 = vsub.f32 %v1691, %v1844
  %v1848 = vsub.f32 %v1695, %v1846
  %v1849 = vmul.f32 %v1847, 1.442695
  %v1850 = vpow.pop %v1849
  %v1851 = vmul.f32 %v1848, 1.442695
  %v1852 = vpow.pop %v1851
  %1853 = vadd.xlane.f32.xlu0 %v1850
  %v1854 = vpop.xlane.xlu0 %1853
  %1855 = vadd.xlane.f32.xlu0 %v1852
  %v1856 = vpop.xlane.xlu0 %1855
  %v1857 = vrcp.pop %v1854
  %v1858 = vmul.f32 %v1850, %v1857
  %v1859 = vrcp.pop %v1856
  %v1860 = vmul.f32 %v1852, %v1859
  %1861 = vst [vmem:[%s5 + $0x18] sm:$0xff] %v1858
  %1862 = vst [vmem:[%s5 + $0x48] sm:$0xff] %v1860
  %1863 = vmax.xlane.f32.xlu0 %v1775
  %v1864 = vpop.xlane.xlu0 %1863
  %1865 = vmax.xlane.f32.xlu0 %v1779
  %v1866 = vpop.xlane.xlu0 %1865
  %v1867 = vsub.f32 %v1775, %v1864
  %v1868 = vsub.f32 %v1779, %v1866
  %v1869 = vmul.f32 %v1867, 1.442695
  %v1870 = vpow.pop %v1869
  %v1871 = vmul.f32 %v1868, 1.442695
  %v1872 = vpow.pop %v1871
  %1873 = vadd.xlane.f32.xlu0 %v1870
  %v1874 = vpop.xlane.xlu0 %1873
  %1875 = vadd.xlane.f32.xlu0 %v1872
  %v1876 = vpop.xlane.xlu0 %1875
  %v1877 = vrcp.pop %v1874
  %v1878 = vmul.f32 %v1870, %v1877
  %v1879 = vrcp.pop %v1876
  %v1880 = vmul.f32 %v1872, %v1879
  %1881 = vst [vmem:[%s5 + $0x20] sm:$0xff] %v1878
  %1882 = vst [vmem:[%s5 + $0x50] sm:$0xff] %v1880
  %1883 = vmax.xlane.f32.xlu0 %v1777
  %v1884 = vpop.xlane.xlu0 %1883
  %1885 = vmax.xlane.f32.xlu0 %v1781
  %v1886 = vpop.xlane.xlu0 %1885
  %v1887 = vsub.f32 %v1777, %v1884
  %v1888 = vsub.f32 %v1781, %v1886
  %v1889 = vmul.f32 %v1887, 1.442695
  %v1890 = vpow.pop %v1889
  %v1891 = vmul.f32 %v1888, 1.442695
  %v1892 = vpow.pop %v1891
  %1893 = vadd.xlane.f32.xlu0 %v1890
  %v1894 = vpop.xlane.xlu0 %1893
  %1895 = vadd.xlane.f32.xlu0 %v1892
  %v1896 = vpop.xlane.xlu0 %1895
  %v1897 = vrcp.pop %v1894
  %v1898 = vmul.f32 %v1890, %v1897
  %v1899 = vrcp.pop %v1896
  %v1900 = vmul.f32 %v1892, %v1899
  %1901 = vst [vmem:[%s5 + $0x28] sm:$0xff] %v1898
  %1902 = vst [vmem:[%s5 + $0x58] sm:$0xff] %v1900
  // Predicated region
  $region22: #{categorical_dqn_forward.7} parent=0 // pred_check
    _
  $region23: #{categorical_dqn_forward.7} parent=0 // pred_check_branch
    %1904 = sbr.rel (0) target = $region25
  $region24: #{categorical_dqn_forward.7} parent=0 // pred_region
    _
  $region25: #{categorical_dqn_forward.7} parent=0 // pred_fallthru
    _
  // Predicated region
  $region26: #{categorical_dqn_forward.7} parent=0 // pred_check
    _
  $region27: #{categorical_dqn_forward.7} parent=0 // pred_check_branch
    %1906 = sbr.rel (0) target = $region29
  $region28: #{categorical_dqn_forward.7} parent=0 // pred_region
    _
  $region29: #{categorical_dqn_forward.7} parent=0 // pred_fallthru
    _

</llo_original>
